<compile_context>
chip_gen: v7x
topology: tpu7x:2x2x1
jax: 0.10.0
libtpu: 0.0.40
codegen_flags: <defaults>
</compile_context>

<pallas_src>
import functools

import jax
import jax.numpy as jnp
import numpy as np
from jax.experimental import pallas as pl
from jax.experimental.pallas import tpu as pltpu


def _graph_norm_kernel(x_ref,                       # (TR, F)   rows of h for this tile
                       gs_col_ref, ge_col_ref,      # (G_pad,1) segment [start,end) bounds
                       gs_row_ref, ge_row_ref,      # (1,G_pad) same bounds, lane-oriented
                       gamma_ref, beta_ref,         # (1, F)
                       out_ref,                     # (TR, F)
                       stat0_ref, stat1_ref,        # (G_pad,F) scratch: sums -> scale/shift
                       shift_ref,                   # (1, F)    scratch: variance shift
                       *, eps, n_rows, mask_oob_rows):
    phase = pl.program_id(0)      # 0: accumulate per-graph stats, 1: normalize rows
    t = pl.program_id(1)          # row-tile index
    tile_rows, _ = x_ref.shape
    g_pad = gs_col_ref.shape[0]
    row0 = t * tile_rows

    x = x_ref[...]                # (TR, F) f32

    # ---------------- phase 0: per-graph sum(x-c), sum((x-c)^2) ----------------
    @pl.when(phase == 0)
    def _():
        @pl.when(t == 0)
        def _():
            stat0_ref[...] = jnp.zeros_like(stat0_ref)
            stat1_ref[...] = jnp.zeros_like(stat1_ref)
            # Per-feature shift (first row of h) for a numerically stable
            # single-pass variance: var = (sum d^2 - (sum d)^2/n) / (n-1),
            # d = x - c.  Algebraically exact, kills cancellation for data
            # with a large common offset.
            shift_ref[...] = x[0:1, :]

        # Segment membership matrix in (G_pad, TR) orientation, built from the
        # contiguous segment bounds -> plain (G_pad,TR)@(TR,F) MXU matmuls,
        # no transposed dot_general.  Rows beyond N never satisfy col < end.
        col = jax.lax.broadcasted_iota(jnp.int32, (g_pad, tile_rows), 1) + row0
        sel = jnp.where((col >= gs_col_ref[...]) & (col < ge_col_ref[...]), 1.0, 0.0)

        xs = x - shift_ref[...]
        if mask_oob_rows:
            # Last partial tile: zero out-of-bounds rows so uninitialized VMEM
            # garbage (possibly NaN) cannot leak into the sums via 0*NaN.
            rr = jax.lax.broadcasted_iota(jnp.int32, (tile_rows, 1), 0) + row0
            xs = jnp.where(rr < n_rows, xs, 0.0)

        stat0_ref[...] += jnp.dot(sel, xs,
                                  precision=jax.lax.Precision.HIGHEST,
                                  preferred_element_type=jnp.float32)
        stat1_ref[...] += jnp.dot(sel, xs * xs,
                                  precision=jax.lax.Precision.HIGHEST,
                                  preferred_element_type=jnp.float32)

    # ---------------- phase 1: y = gamma*(x-mean)/(std+eps) + beta ----------------
    @pl.when(phase == 1)
    def _():
        @pl.when(t == 0)
        def _():
            cnt = (ge_col_ref[...] - gs_col_ref[...]).astype(jnp.float32)  # (G_pad,1)
            s1 = stat0_ref[...]
            s2 = stat1_ref[...]
            n_safe = jnp.maximum(cnt, 1.0)            # padded slots: cnt = 0
            mean = shift_ref[...] + s1 / n_safe
            # unbiased variance (ddof=1); denominator clamped so size-0 (padded)
            # and size-1 graphs stay finite and cannot NaN-contaminate the
            # membership matmul below.
            var = (s2 - s1 * s1 / n_safe) / jnp.maximum(cnt - 1.0, 1.0)
            std = jnp.sqrt(jnp.maximum(var, 0.0))
            # One-time (G_pad,F) op, off the hot path -> exact reciprocal keeps
            # the 1e-5 reference check tight (approx EUP rcp buys nothing here).
            inv = pl.reciprocal(std + eps, approx=False)
            a = gamma_ref[...] * inv                  # (G_pad, F) per-graph scale
            b = beta_ref[...] - mean * a              # (G_pad, F) per-graph shift
            stat0_ref[...] = a                        # reuse scratch in place
            stat1_ref[...] = b

        # Row-oriented membership (TR, G_pad): gathers each row's graph scale /
        # shift with a standard-orientation matmul, then one FMA per element.
        row = jax.lax.broadcasted_iota(jnp.int32, (tile_rows, g_pad), 0) + row0
        sel = jnp.where((row >= gs_row_ref[...]) & (row < ge_row_ref[...]), 1.0, 0.0)
        a_rows = jnp.dot(sel, stat0_ref[...],
                         precision=jax.lax.Precision.HIGHEST,
                         preferred_element_type=jnp.float32)
        b_rows = jnp.dot(sel, stat1_ref[...],
                         precision=jax.lax.Precision.HIGHEST,
                         preferred_element_type=jnp.float32)
        out_ref[...] = x * a_rows + b_rows


def graph_norm(h, graph_sizes, gamma, beta, *, eps=1e-5):
    """h: (N, F) float; graph_sizes: host-known (G,) ints summing to N.

    graph_sizes must be concrete (host-side), mirroring the PyTorch module's
    torch.split(h, graph_size.tolist()).
    """
    h = jnp.asarray(h, jnp.float32)
    N, F = h.shape
    sizes = np.asarray(graph_sizes, dtype=np.int64)
    G = int(sizes.shape[0])
    if int(sizes.sum()) != N:
        raise ValueError("graph_sizes must sum to the number of rows in h")

    bounds = np.zeros((G + 1,), np.int64)
    bounds[1:] = np.cumsum(sizes)

    # Pad the graph axis to a lane-multiple; padded slots get start = end = 0
    # (empty segments -> never selected, clamped denominators keep them finite).
    G_pad = ((max(G, 1) + 127) // 128) * 128
    gstart = np.zeros((G_pad,), np.int32)
    gend = np.zeros((G_pad,), np.int32)
    gstart[:G] = bounds[:G]
    gend[:G] = bounds[1:]

    # Large uniform row tiles: up to 512 rows (~64 KiB block) per grid step,
    # independent of the graph-size histogram.  Easily double-buffered in VMEM
    # on every generation (incl. v7x's 64 MiB).
    TR = min(512, ((N + 7) // 8) * 8)
    num_tiles = -(-N // TR)
    mask_oob_rows = (N % TR) != 0

    gamma2 = jnp.asarray(gamma, jnp.float32).reshape(1, F)
    beta2 = jnp.asarray(beta, jnp.float32).reshape(1, F)

    kernel = functools.partial(_graph_norm_kernel, eps=float(eps), n_rows=N,
                               mask_oob_rows=mask_oob_rows)

    return pl.pallas_call(
        kernel,
        out_shape=jax.ShapeDtypeStruct((N, F), jnp.float32),
        grid=(2, num_tiles),
        in_specs=[
            pl.BlockSpec((TR, F), lambda p, t: (t, 0)),        # h rows (read per phase)
            pl.BlockSpec((G_pad, 1), lambda p, t: (0, 0)),     # segment starts (col)
            pl.BlockSpec((G_pad, 1), lambda p, t: (0, 0)),     # segment ends   (col)
            pl.BlockSpec((1, G_pad), lambda p, t: (0, 0)),     # segment starts (row)
            pl.BlockSpec((1, G_pad), lambda p, t: (0, 0)),     # segment ends   (row)
            pl.BlockSpec((1, F), lambda p, t: (0, 0)),         # gamma
            pl.BlockSpec((1, F), lambda p, t: (0, 0)),         # beta
        ],
        # Park the output block at index 0 during the stats phase (p == 0) so
        # no garbage block ever gets written back; phase 1 streams block t.
        out_specs=pl.BlockSpec((TR, F), lambda p, t: (p * t, 0)),
        scratch_shapes=[
            pltpu.VMEM((G_pad, F), jnp.float32),   # sum(x-c)      -> per-graph scale a
            pltpu.VMEM((G_pad, F), jnp.float32),   # sum((x-c)^2)  -> per-graph shift b
            pltpu.VMEM((1, F), jnp.float32),       # variance shift c (= h[0, :])
        ],
        compiler_params=pltpu.CompilerParams(
            # Both axes carry dependencies through the scratch accumulator.
            dimension_semantics=("arbitrary", "arbitrary")),
    )(h,
      jnp.asarray(gstart.reshape(G_pad, 1)), jnp.asarray(gend.reshape(G_pad, 1)),
      jnp.asarray(gstart.reshape(1, G_pad)), jnp.asarray(gend.reshape(1, G_pad)),
      gamma2, beta2)


def _reference(h, graph_sizes, gamma, beta, eps=1e-5):
    h = np.asarray(h, np.float32)
    outs = []
    start = 0
    for s in np.asarray(graph_sizes):
        x = h[start:start + int(s)]
        mean = x.mean(axis=0, keepdims=True)
        std = x.std(axis=0, keepdims=True, ddof=1)
        outs.append((x - mean) / (std + eps))
        start += int(s)
    nx = np.concatenate(outs, axis=0)
    return np.asarray(gamma).reshape(1, -1) * nx + np.asarray(beta).reshape(1, -1)


if __name__ == "__main__":
    num_features = 32
    graph_sizes = np.array([10, 8, 14], dtype=np.int32)   # 3 graphs, 32 nodes total
    N = int(graph_sizes.sum())

    key = jax.random.PRNGKey(0)
    h = jax.random.normal(key, (N, num_features), dtype=jnp.float32)

    # Deterministic parameter init (matches nn.Parameter(ones/zeros) in __init__)
    gamma = jnp.ones((num_features,), jnp.float32)
    beta = jnp.zeros((num_features,), jnp.float32)

    out = graph_norm(h, graph_sizes, gamma, beta, eps=1e-5)
    out = jax.block_until_ready(out)

    ref = _reference(np.asarray(h), graph_sizes, np.asarray(gamma), np.asarray(beta), eps=1e-5)
    np.testing.assert_allclose(np.asarray(out), ref, rtol=1e-5, atol=1e-5)

    print("KERNEL_OK")
</pallas_src>

<mosaic_0001>
module attributes {stable_mosaic.version = 11 : i64} {
  func.func @_graph_norm_kernel(%arg0: i32, %arg1: i32, %arg2: memref<32x32xf32, #tpu.memory_space<vmem>>, %arg3: memref<128x1xi32, #tpu.memory_space<vmem>>, %arg4: memref<128x1xi32, #tpu.memory_space<vmem>>, %arg5: memref<1x128xi32, #tpu.memory_space<vmem>>, %arg6: memref<1x128xi32, #tpu.memory_space<vmem>>, %arg7: memref<1x32xf32, #tpu.memory_space<vmem>>, %arg8: memref<1x32xf32, #tpu.memory_space<vmem>>, %arg9: memref<32x32xf32, #tpu.memory_space<vmem>>, %arg10: memref<128x32xf32, #tpu.memory_space<vmem>>, %arg11: memref<128x32xf32, #tpu.memory_space<vmem>>, %arg12: memref<1x32xf32, #tpu.memory_space<vmem>>) attributes {dimension_semantics = [#tpu.dimension_semantics<arbitrary>, #tpu.dimension_semantics<arbitrary>], iteration_bounds = array<i64: 2, 1>, scalar_prefetch = 0 : i64, scratch_operands = 3 : i64, tpu.core_type = #tpu.core_type<tc>, window_params = [{transform_indices = @transform_0, window_bounds = array<i64: 32, 32>}, {pipeline_mode = #tpu.pipeline_mode<synchronous>, transform_indices = @transform_1, window_bounds = array<i64: 128, 1>}, {pipeline_mode = #tpu.pipeline_mode<synchronous>, transform_indices = @transform_2, window_bounds = array<i64: 128, 1>}, {pipeline_mode = #tpu.pipeline_mode<synchronous>, transform_indices = @transform_3, window_bounds = array<i64: 1, 128>}, {pipeline_mode = #tpu.pipeline_mode<synchronous>, transform_indices = @transform_4, window_bounds = array<i64: 1, 128>}, {pipeline_mode = #tpu.pipeline_mode<synchronous>, transform_indices = @transform_5, window_bounds = array<i64: 1, 32>}, {pipeline_mode = #tpu.pipeline_mode<synchronous>, transform_indices = @transform_6, window_bounds = array<i64: 1, 32>}, {transform_indices = @transform_7, window_bounds = array<i64: 32, 32>}]} {
    %c32_i32 = arith.constant 32 : i32
    %0 = arith.muli %arg1, %c32_i32 : i32
    %c0 = arith.constant 0 : index
    %c0_0 = arith.constant 0 : index
    %1 = vector.load %arg2[%c0, %c0_0] : memref<32x32xf32, #tpu.memory_space<vmem>>, vector<32x32xf32>
    %c0_i32 = arith.constant 0 : i32
    %2 = arith.cmpi eq, %arg0, %c0_i32 : i32
    %3 = arith.extui %2 : i1 to i32
    %c0_i32_1 = arith.constant 0 : i32
    %4 = arith.cmpi ne, %3, %c0_i32_1 : i32
    scf.if %4 {
      %c0_i32_3 = arith.constant 0 : i32
      %8 = arith.cmpi eq, %arg1, %c0_i32_3 : i32
      %9 = arith.extui %8 : i1 to i32
      %c0_i32_4 = arith.constant 0 : i32
      %10 = arith.cmpi ne, %9, %c0_i32_4 : i32
      scf.if %10 {
        %cst_22 = arith.constant 0.000000e+00 : f32
        %36 = vector.broadcast %cst_22 : f32 to vector<128x32xf32>
        %c0_23 = arith.constant 0 : index
        %c0_24 = arith.constant 0 : index
        %37 = vector.load %arg10[%c0_23, %c0_24] : memref<128x32xf32, #tpu.memory_space<vmem>>, vector<128x32xf32>
        tpu.vector_store %arg10[%c0_23, %c0_24], %36 {strides = array<i32>} : memref<128x32xf32, #tpu.memory_space<vmem>>, vector<128x32xf32>,
        %cst_25 = arith.constant 0.000000e+00 : f32
        %38 = vector.broadcast %cst_25 : f32 to vector<128x32xf32>
        %c0_26 = arith.constant 0 : index
        %c0_27 = arith.constant 0 : index
        %39 = vector.load %arg11[%c0_26, %c0_27] : memref<128x32xf32, #tpu.memory_space<vmem>>, vector<128x32xf32>
        tpu.vector_store %arg11[%c0_26, %c0_27], %38 {strides = array<i32>} : memref<128x32xf32, #tpu.memory_space<vmem>>, vector<128x32xf32>,
        %40 = vector.extract_strided_slice %1 {offsets = [0, 0], sizes = [1, 32], strides = [1, 1]} : vector<32x32xf32> to vector<1x32xf32>
        %c0_28 = arith.constant 0 : index
        %c0_29 = arith.constant 0 : index
        %41 = vector.load %arg12[%c0_28, %c0_29] : memref<1x32xf32, #tpu.memory_space<vmem>>, vector<1x32xf32>
        tpu.vector_store %arg12[%c0_28, %c0_29], %40 {strides = array<i32>} : memref<1x32xf32, #tpu.memory_space<vmem>>, vector<1x32xf32>,
      } else {
      }
      %11 = tpu.iota {dimensions = array<i32: 1>} : vector<128x32xi32>
      %12 = vector.broadcast %0 : i32 to vector<128x32xi32>
      %13 = arith.addi %11, %12 : vector<128x32xi32>
      %c0_5 = arith.constant 0 : index
      %c0_6 = arith.constant 0 : index
      %14 = vector.load %arg3[%c0_5, %c0_6] : memref<128x1xi32, #tpu.memory_space<vmem>>, vector<128x1xi32>
      %15 = vector.broadcast %14 : vector<128x1xi32> to vector<128x32xi32>
      %16 = arith.cmpi sge, %13, %15 : vector<128x32xi32>
      %c0_7 = arith.constant 0 : index
      %c0_8 = arith.constant 0 : index
      %17 = vector.load %arg4[%c0_7, %c0_8] : memref<128x1xi32, #tpu.memory_space<vmem>>, vector<128x1xi32>
      %18 = vector.broadcast %17 : vector<128x1xi32> to vector<128x32xi32>
      %19 = arith.cmpi slt, %13, %18 : vector<128x32xi32>
      %20 = arith.andi %16, %19 : vector<128x32xi1>
      %cst = arith.constant 1.000000e+00 : f32
      %cst_9 = arith.constant 0.000000e+00 : f32
      %21 = vector.broadcast %cst : f32 to vector<128x32xf32>
      %22 = vector.broadcast %cst_9 : f32 to vector<128x32xf32>
      %23 = arith.select %20, %21, %22 : vector<128x32xi1>, vector<128x32xf32>
      %c0_10 = arith.constant 0 : index
      %c0_11 = arith.constant 0 : index
      %24 = vector.load %arg12[%c0_10, %c0_11] : memref<1x32xf32, #tpu.memory_space<vmem>>, vector<1x32xf32>
      %25 = vector.broadcast %24 : vector<1x32xf32> to vector<32x32xf32>
      %26 = arith.subf %1, %25 : vector<32x32xf32>
      %c0_12 = arith.constant 0 : index
      %c0_13 = arith.constant 0 : index
      %27 = vector.load %arg10[%c0_12, %c0_13] : memref<128x32xf32, #tpu.memory_space<vmem>>, vector<128x32xf32>
      %cst_14 = arith.constant dense<0.000000e+00> : vector<128x32xf32>
      %28 = tpu.matmul %23, %26, %cst_14 {dimension_numbers = #tpu.dot_dimension_numbers<[1], [0], [0], [1], [0, 0, 1, 1], [], []>, precision = #tpu.contract_precision<fp32>} : vector<128x32xf32>, vector<32x32xf32>, vector<128x32xf32> -> vector<128x32xf32>
      %29 = arith.addf %27, %28 : vector<128x32xf32>
      %c0_15 = arith.constant 0 : index
      %c0_16 = arith.constant 0 : index
      %30 = vector.load %arg10[%c0_15, %c0_16] : memref<128x32xf32, #tpu.memory_space<vmem>>, vector<128x32xf32>
      tpu.vector_store %arg10[%c0_15, %c0_16], %29 {strides = array<i32>} : memref<128x32xf32, #tpu.memory_space<vmem>>, vector<128x32xf32>,
      %c0_17 = arith.constant 0 : index
      %c0_18 = arith.constant 0 : index
      %31 = vector.load %arg11[%c0_17, %c0_18] : memref<128x32xf32, #tpu.memory_space<vmem>>, vector<128x32xf32>
      %32 = arith.mulf %26, %26 : vector<32x32xf32>
      %cst_19 = arith.constant dense<0.000000e+00> : vector<128x32xf32>
      %33 = tpu.matmul %23, %32, %cst_19 {dimension_numbers = #tpu.dot_dimension_numbers<[1], [0], [0], [1], [0, 0, 1, 1], [], []>, precision = #tpu.contract_precision<fp32>} : vector<128x32xf32>, vector<32x32xf32>, vector<128x32xf32> -> vector<128x32xf32>
      %34 = arith.addf %31, %33 : vector<128x32xf32>
      %c0_20 = arith.constant 0 : index
      %c0_21 = arith.constant 0 : index
      %35 = vector.load %arg11[%c0_20, %c0_21] : memref<128x32xf32, #tpu.memory_space<vmem>>, vector<128x32xf32>
      tpu.vector_store %arg11[%c0_20, %c0_21], %34 {strides = array<i32>} : memref<128x32xf32, #tpu.memory_space<vmem>>, vector<128x32xf32>,
    } else {
    }
    %c1_i32 = arith.constant 1 : i32
    %5 = arith.cmpi eq, %arg0, %c1_i32 : i32
    %6 = arith.extui %5 : i1 to i32
    %c0_i32_2 = arith.constant 0 : i32
    %7 = arith.cmpi ne, %6, %c0_i32_2 : i32
    scf.if %7 {
      %c0_i32_3 = arith.constant 0 : i32
      %8 = arith.cmpi eq, %arg1, %c0_i32_3 : i32
      %9 = arith.extui %8 : i1 to i32
      %c0_i32_4 = arith.constant 0 : i32
      %10 = arith.cmpi ne, %9, %c0_i32_4 : i32
      scf.if %10 {
        %c0_18 = arith.constant 0 : index
        %c0_19 = arith.constant 0 : index
        %31 = vector.load %arg4[%c0_18, %c0_19] : memref<128x1xi32, #tpu.memory_space<vmem>>, vector<128x1xi32>
        %c0_20 = arith.constant 0 : index
        %c0_21 = arith.constant 0 : index
        %32 = vector.load %arg3[%c0_20, %c0_21] : memref<128x1xi32, #tpu.memory_space<vmem>>, vector<128x1xi32>
        %33 = arith.subi %31, %32 : vector<128x1xi32>
        %34 = arith.sitofp %33 : vector<128x1xi32> to vector<128x1xf32>
        %c0_22 = arith.constant 0 : index
        %c0_23 = arith.constant 0 : index
        %35 = vector.load %arg10[%c0_22, %c0_23] : memref<128x32xf32, #tpu.memory_space<vmem>>, vector<128x32xf32>
        %c0_24 = arith.constant 0 : index
        %c0_25 = arith.constant 0 : index
        %36 = vector.load %arg11[%c0_24, %c0_25] : memref<128x32xf32, #tpu.memory_space<vmem>>, vector<128x32xf32>
        %cst_26 = arith.constant 1.000000e+00 : f32
        %37 = vector.broadcast %cst_26 : f32 to vector<128x1xf32>
        %38 = arith.maximumf %34, %37 : vector<128x1xf32>
        %c0_27 = arith.constant 0 : index
        %c0_28 = arith.constant 0 : index
        %39 = vector.load %arg12[%c0_27, %c0_28] : memref<1x32xf32, #tpu.memory_space<vmem>>, vector<1x32xf32>
        %40 = vector.broadcast %38 : vector<128x1xf32> to vector<128x32xf32>
        %41 = arith.divf %35, %40 : vector<128x32xf32>
        %42 = vector.broadcast %39 : vector<1x32xf32> to vector<128x32xf32>
        %43 = arith.addf %42, %41 : vector<128x32xf32>
        %44 = arith.mulf %35, %35 : vector<128x32xf32>
        %45 = vector.broadcast %38 : vector<128x1xf32> to vector<128x32xf32>
        %46 = arith.divf %44, %45 : vector<128x32xf32>
        %47 = arith.subf %36, %46 : vector<128x32xf32>
        %cst_29 = arith.constant 1.000000e+00 : f32
        %48 = vector.broadcast %cst_29 : f32 to vector<128x1xf32>
        %49 = arith.subf %34, %48 : vector<128x1xf32>
        %cst_30 = arith.constant 1.000000e+00 : f32
        %50 = vector.broadcast %cst_30 : f32 to vector<128x1xf32>
        %51 = arith.maximumf %49, %50 : vector<128x1xf32>
        %52 = vector.broadcast %51 : vector<128x1xf32> to vector<128x32xf32>
        %53 = arith.divf %47, %52 : vector<128x32xf32>
        %cst_31 = arith.constant 0.000000e+00 : f32
        %54 = vector.broadcast %cst_31 : f32 to vector<128x32xf32>
        %55 = arith.maximumf %53, %54 : vector<128x32xf32>
        %56 = math.sqrt %55 : vector<128x32xf32>
        %cst_32 = arith.constant 9.99999974E-6 : f32
        %57 = vector.broadcast %cst_32 : f32 to vector<128x32xf32>
        %58 = arith.addf %56, %57 : vector<128x32xf32>
        %59 = tpu.reciprocal %58 : vector<128x32xf32> -> vector<128x32xf32>
        %c0_33 = arith.constant 0 : index
        %c0_34 = arith.constant 0 : index
        %60 = vector.load %arg7[%c0_33, %c0_34] : memref<1x32xf32, #tpu.memory_space<vmem>>, vector<1x32xf32>
        %61 = vector.broadcast %60 : vector<1x32xf32> to vector<128x32xf32>
        %62 = arith.mulf %61, %59 : vector<128x32xf32>
        %c0_35 = arith.constant 0 : index
        %c0_36 = arith.constant 0 : index
        %63 = vector.load %arg8[%c0_35, %c0_36] : memref<1x32xf32, #tpu.memory_space<vmem>>, vector<1x32xf32>
        %64 = arith.mulf %43, %62 : vector<128x32xf32>
        %65 = vector.broadcast %63 : vector<1x32xf32> to vector<128x32xf32>
        %66 = arith.subf %65, %64 : vector<128x32xf32>
        %c0_37 = arith.constant 0 : index
        %c0_38 = arith.constant 0 : index
        %67 = vector.load %arg10[%c0_37, %c0_38] : memref<128x32xf32, #tpu.memory_space<vmem>>, vector<128x32xf32>
        tpu.vector_store %arg10[%c0_37, %c0_38], %62 {strides = array<i32>} : memref<128x32xf32, #tpu.memory_space<vmem>>, vector<128x32xf32>,
        %c0_39 = arith.constant 0 : index
        %c0_40 = arith.constant 0 : index
        %68 = vector.load %arg11[%c0_39, %c0_40] : memref<128x32xf32, #tpu.memory_space<vmem>>, vector<128x32xf32>
        tpu.vector_store %arg11[%c0_39, %c0_40], %66 {strides = array<i32>} : memref<128x32xf32, #tpu.memory_space<vmem>>, vector<128x32xf32>,
      } else {
      }
      %11 = tpu.iota {dimensions = array<i32: 0>} : vector<32x128xi32>
      %12 = vector.broadcast %0 : i32 to vector<32x128xi32>
      %13 = arith.addi %11, %12 : vector<32x128xi32>
      %c0_5 = arith.constant 0 : index
      %c0_6 = arith.constant 0 : index
      %14 = vector.load %arg5[%c0_5, %c0_6] : memref<1x128xi32, #tpu.memory_space<vmem>>, vector<1x128xi32>
      %15 = vector.broadcast %14 : vector<1x128xi32> to vector<32x128xi32>
      %16 = arith.cmpi sge, %13, %15 : vector<32x128xi32>
      %c0_7 = arith.constant 0 : index
      %c0_8 = arith.constant 0 : index
      %17 = vector.load %arg6[%c0_7, %c0_8] : memref<1x128xi32, #tpu.memory_space<vmem>>, vector<1x128xi32>
      %18 = vector.broadcast %17 : vector<1x128xi32> to vector<32x128xi32>
      %19 = arith.cmpi slt, %13, %18 : vector<32x128xi32>
      %20 = arith.andi %16, %19 : vector<32x128xi1>
      %cst = arith.constant 1.000000e+00 : f32
      %cst_9 = arith.constant 0.000000e+00 : f32
      %21 = vector.broadcast %cst : f32 to vector<32x128xf32>
      %22 = vector.broadcast %cst_9 : f32 to vector<32x128xf32>
      %23 = arith.select %20, %21, %22 : vector<32x128xi1>, vector<32x128xf32>
      %c0_10 = arith.constant 0 : index
      %c0_11 = arith.constant 0 : index
      %24 = vector.load %arg10[%c0_10, %c0_11] : memref<128x32xf32, #tpu.memory_space<vmem>>, vector<128x32xf32>
      %cst_12 = arith.constant dense<0.000000e+00> : vector<32x32xf32>
      %25 = tpu.matmul %23, %24, %cst_12 {dimension_numbers = #tpu.dot_dimension_numbers<[1], [0], [0], [1], [0, 0, 1, 1], [], []>, precision = #tpu.contract_precision<fp32>} : vector<32x128xf32>, vector<128x32xf32>, vector<32x32xf32> -> vector<32x32xf32>
      %c0_13 = arith.constant 0 : index
      %c0_14 = arith.constant 0 : index
      %26 = vector.load %arg11[%c0_13, %c0_14] : memref<128x32xf32, #tpu.memory_space<vmem>>, vector<128x32xf32>
      %cst_15 = arith.constant dense<0.000000e+00> : vector<32x32xf32>
      %27 = tpu.matmul %23, %26, %cst_15 {dimension_numbers = #tpu.dot_dimension_numbers<[1], [0], [0], [1], [0, 0, 1, 1], [], []>, precision = #tpu.contract_precision<fp32>} : vector<32x128xf32>, vector<128x32xf32>, vector<32x32xf32> -> vector<32x32xf32>
      %28 = arith.mulf %1, %25 : vector<32x32xf32>
      %29 = arith.addf %28, %27 : vector<32x32xf32>
      %c0_16 = arith.constant 0 : index
      %c0_17 = arith.constant 0 : index
      %30 = vector.load %arg9[%c0_16, %c0_17] : memref<32x32xf32, #tpu.memory_space<vmem>>, vector<32x32xf32>
      tpu.vector_store %arg9[%c0_16, %c0_17], %29 {strides = array<i32>} : memref<32x32xf32, #tpu.memory_space<vmem>>, vector<32x32xf32>,
    } else {
    }
    return
  }
  func.func @transform_0(%arg0: i32, %arg1: i32) -> (i32, i32) {
    %c0_i32 = arith.constant 0 : i32
    %c0_i32_0 = arith.constant 0 : i32
    return %arg1, %c0_i32 : i32, i32
  }
  func.func @transform_1(%arg0: i32, %arg1: i32) -> (i32, i32) {
    %c0_i32 = arith.constant 0 : i32
    %c0_i32_0 = arith.constant 0 : i32
    %c0_i32_1 = arith.constant 0 : i32
    return %c0_i32, %c0_i32_0 : i32, i32
  }
  func.func @transform_2(%arg0: i32, %arg1: i32) -> (i32, i32) {
    %c0_i32 = arith.constant 0 : i32
    %c0_i32_0 = arith.constant 0 : i32
    %c0_i32_1 = arith.constant 0 : i32
    return %c0_i32, %c0_i32_0 : i32, i32
  }
  func.func @transform_3(%arg0: i32, %arg1: i32) -> (i32, i32) {
    %c0_i32 = arith.constant 0 : i32
    %c0_i32_0 = arith.constant 0 : i32
    %c0_i32_1 = arith.constant 0 : i32
    return %c0_i32, %c0_i32_0 : i32, i32
  }
  func.func @transform_4(%arg0: i32, %arg1: i32) -> (i32, i32) {
    %c0_i32 = arith.constant 0 : i32
    %c0_i32_0 = arith.constant 0 : i32
    %c0_i32_1 = arith.constant 0 : i32
    return %c0_i32, %c0_i32_0 : i32, i32
  }
  func.func @transform_5(%arg0: i32, %arg1: i32) -> (i32, i32) {
    %c0_i32 = arith.constant 0 : i32
    %c0_i32_0 = arith.constant 0 : i32
    %c0_i32_1 = arith.constant 0 : i32
    return %c0_i32, %c0_i32_0 : i32, i32
  }
  func.func @transform_6(%arg0: i32, %arg1: i32) -> (i32, i32) {
    %c0_i32 = arith.constant 0 : i32
    %c0_i32_0 = arith.constant 0 : i32
    %c0_i32_1 = arith.constant 0 : i32
    return %c0_i32, %c0_i32_0 : i32, i32
  }
  func.func @transform_7(%arg0: i32, %arg1: i32) -> (i32, i32) {
    %0 = arith.muli %arg0, %arg1 : i32
    %c0_i32 = arith.constant 0 : i32
    %c0_i32_0 = arith.constant 0 : i32
    return %0, %c0_i32 : i32, i32
  }
}

</mosaic_0001>

<llo_original>
// kernel: tpu_custom_call.1
$region0: #{tpu_custom_call.1}
  #allocation0 [shape = 'u32[]', space=smem, size = 0x4, offset = 0x4, fixed_abs, tag = 'smem constant byte address 0x4 - core index']
  #allocation1 [shape = 'u32[144,128]{1,0:T(1,128)}', space=vmem, size = 0x12000, scoped, tag = 'internal scratch']
  #allocation2 [shape = 'f32[128,32]{1,0:T(8,128)}', space=vmem, size = 0x10000, scoped, tag = 'scratch operand']
  #allocation3 [shape = 'f32[128,32]{1,0:T(8,128)}', space=vmem, size = 0x10000, scoped, tag = 'scratch operand']
  #allocation4 [shape = 'f32[1,32]{1,0:T(1,128)}', space=vmem, size = 0x200, scoped, tag = 'scratch operand']
  %s0 = inlined_call_operand.vmem [shape: f32[32,32], index: 0, kind: input, shape index: {}]
  %s1 = inlined_call_operand.vmem [shape: s32[128,1], index: 1, kind: input, shape index: {}]
  %s2 = inlined_call_operand.vmem [shape: s32[128,1], index: 2, kind: input, shape index: {}]
  %s3 = inlined_call_operand.vmem [shape: s32[1,128], index: 3, kind: input, shape index: {}]
  %s4 = inlined_call_operand.vmem [shape: s32[1,128], index: 4, kind: input, shape index: {}]
  %s5 = inlined_call_operand.vmem [shape: f32[1,32], index: 5, kind: input, shape index: {}]
  %s6 = inlined_call_operand.vmem [shape: f32[1,32], index: 6, kind: input, shape index: {}]
  %s7 = inlined_call_operand.hbm [shape: f32[32,32], index: 7, kind: output, shape index: {}]
  %s8 = sld [smem:[#allocation0]]
  $region77: #{tpu_custom_call.1} parent=0
    _
  %s10 = ssub.s32 1, %s8
  %s11 = scalar_select 0, %s10, %s8
  $region1: #{tpu_custom_call.1} parent=0
    #allocation5 [shape = 'u8[32768]{0}', space=vmem, size = 0x8000, scoped, tag = 'output window, operand 0']
    #allocation6 [shape = 's32[2]{0}', space=sflag, size = 0x8, scoped, tag = 'scoped memory for tpu_custom_call.1']
    %12 = vsyncpa [#allocation6], 0
    %s13 = scalar_lea.sflag [#allocation6], 1
    %14 = vsyncpa %s13, 0
    loop: start=0, step=1, limit=4
    $region2: #{tpu_custom_call.1} parent=1 // loop_pre_header
      _
    $region3: #{tpu_custom_call.1} parent=1 // loop_header
      %s16 = sphi 0, %s20
      %p17 = scmp.ge.s32.totalorder %s16, 4
      %s23 = sphi 0, %s35
      %s24 = sphi 0, %s31
      %s25 = sphi 0, %s23
      %s26 = sphi 0, %s24
      %s27 = sphi 0, %s25
      %s28 = sphi 0, %s26
      %s38 = sphi 0, %s40
      %s41 = sphi 0, %s38
      %s42 = sphi 0, %s41
      %s58 = sphi 0, %s42
      %s62 = sphi 0, %s62
      %s64 = sphi 0, %s62
      %s65 = sphi 0, %s64
      %s79 = sphi 0, %s65
      %s83 = sphi 0, %s83
      %s85 = sphi 0, %s83
      %s86 = sphi 0, %s85
      %s100 = sphi 0, %s86
      %s104 = sphi 0, %s104
      %s106 = sphi 0, %s104
      %s107 = sphi 0, %s106
      %s121 = sphi 0, %s107
      %s125 = sphi 0, %s125
      %s127 = sphi 0, %s125
      %s128 = sphi 0, %s127
      %s142 = sphi 0, %s128
      %s146 = sphi 0, %s146
      %s148 = sphi 0, %s146
      %s149 = sphi 0, %s148
      %s163 = sphi 0, %s149
      %s167 = sphi 0, %s167
      %s169 = sphi 0, %s167
      %s170 = sphi 0, %s169
      %s184 = sphi 0, %s170
      %s192 = sphi 0, %s194
      %s195 = sphi 0, %s192
      %s196 = sphi 0, %s195
      %s212 = sphi 0, %s196
    $region4: #{tpu_custom_call.1} parent=1 // loop_header_branch
      %19 = sbr.rel (%p17) target = $region8
    $region5: #{tpu_custom_call.1} parent=1 // loop_body
      %s21 = ssub.s32 %s16, 1
      %s22 = ssub.s32 %s16, 2
      %s29 = sadd.s32 1, %s24
      %p30 = scmp.ge.s32.totalorder %s29, 1
      %s31 = scalar_select %p30, 0, %s29
      %s32 = sadd.s32 1, %s23
      %s33 = scalar_select %p30, %s32, %s23
      %p34 = scmp.ge.s32.totalorder %s33, 2
      %s35 = scalar_select %p34, 0, %s33
      %s36 = ssub.s32 %s24, %s31
      %p37 = scmp.eq.s32.totalorder %s36, 0
      %s39 = sadd.s32 %s38, 1
      %s40 = scalar_select %p37, %s38, %s39
      %p43 = pneg %p37
      %p44 = scmp.eq.s32.totalorder %s16, 1
      %p45 = por %p43, %p44
      %p46 = scmp.ne.s32.totalorder %s38, %s41
      %p47 = scmp.eq.s32.totalorder %s16, 0
      %p48 = por %p46, %p47
      %p49 = scmp.ne.s32.totalorder %s38, %s41
      %p50 = scmp.eq.s32.totalorder %s21, 1
      %p51 = por %p49, %p50
      %p52 = scmp.ne.s32.totalorder %s41, %s42
      %p53 = scmp.eq.s32.totalorder %s21, 0
      %p54 = por %p52, %p53
      %p55 = scmp.ne.s32.totalorder %s41, %s42
      %p56 = scmp.eq.s32.totalorder %s22, 1
      %p57 = por %p55, %p56
      %p59 = scmp.ne.s32.totalorder %s42, %s58
      %p60 = scmp.eq.s32.totalorder %s22, 0
      %p61 = por %p59, %p60
      %s63 = sadd.s32 %s62, 1
      %p66 = scmp.eq.s32.totalorder %s16, 1
      %p67 = scmp.ne.s32.totalorder %s62, %s64
      %p68 = scmp.eq.s32.totalorder %s16, 0
      %p69 = por %p67, %p68
      %p70 = scmp.ne.s32.totalorder %s62, %s64
      %p71 = scmp.eq.s32.totalorder %s21, 1
      %p72 = por %p70, %p71
      %p73 = scmp.ne.s32.totalorder %s64, %s65
      %p74 = scmp.eq.s32.totalorder %s21, 0
      %p75 = por %p73, %p74
      %p76 = scmp.ne.s32.totalorder %s64, %s65
      %p77 = scmp.eq.s32.totalorder %s22, 1
      %p78 = por %p76, %p77
      %p80 = scmp.ne.s32.totalorder %s65, %s79
      %p81 = scmp.eq.s32.totalorder %s22, 0
      %p82 = por %p80, %p81
      %s84 = sadd.s32 %s83, 1
      %p87 = scmp.eq.s32.totalorder %s16, 1
      %p88 = scmp.ne.s32.totalorder %s83, %s85
      %p89 = scmp.eq.s32.totalorder %s16, 0
      %p90 = por %p88, %p89
      %p91 = scmp.ne.s32.totalorder %s83, %s85
      %p92 = scmp.eq.s32.totalorder %s21, 1
      %p93 = por %p91, %p92
      %p94 = scmp.ne.s32.totalorder %s85, %s86
      %p95 = scmp.eq.s32.totalorder %s21, 0
      %p96 = por %p94, %p95
      %p97 = scmp.ne.s32.totalorder %s85, %s86
      %p98 = scmp.eq.s32.totalorder %s22, 1
      %p99 = por %p97, %p98
      %p101 = scmp.ne.s32.totalorder %s86, %s100
      %p102 = scmp.eq.s32.totalorder %s22, 0
      %p103 = por %p101, %p102
      %s105 = sadd.s32 %s104, 1
      %p108 = scmp.eq.s32.totalorder %s16, 1
      %p109 = scmp.ne.s32.totalorder %s104, %s106
      %p110 = scmp.eq.s32.totalorder %s16, 0
      %p111 = por %p109, %p110
      %p112 = scmp.ne.s32.totalorder %s104, %s106
      %p113 = scmp.eq.s32.totalorder %s21, 1
      %p114 = por %p112, %p113
      %p115 = scmp.ne.s32.totalorder %s106, %s107
      %p116 = scmp.eq.s32.totalorder %s21, 0
      %p117 = por %p115, %p116
      %p118 = scmp.ne.s32.totalorder %s106, %s107
      %p119 = scmp.eq.s32.totalorder %s22, 1
      %p120 = por %p118, %p119
      %p122 = scmp.ne.s32.totalorder %s107, %s121
      %p123 = scmp.eq.s32.totalorder %s22, 0
      %p124 = por %p122, %p123
      %s126 = sadd.s32 %s125, 1
      %p129 = scmp.eq.s32.totalorder %s16, 1
      %p130 = scmp.ne.s32.totalorder %s125, %s127
      %p131 = scmp.eq.s32.totalorder %s16, 0
      %p132 = por %p130, %p131
      %p133 = scmp.ne.s32.totalorder %s125, %s127
      %p134 = scmp.eq.s32.totalorder %s21, 1
      %p135 = por %p133, %p134
      %p136 = scmp.ne.s32.totalorder %s127, %s128
      %p137 = scmp.eq.s32.totalorder %s21, 0
      %p138 = por %p136, %p137
      %p139 = scmp.ne.s32.totalorder %s127, %s128
      %p140 = scmp.eq.s32.totalorder %s22, 1
      %p141 = por %p139, %p140
      %p143 = scmp.ne.s32.totalorder %s128, %s142
      %p144 = scmp.eq.s32.totalorder %s22, 0
      %p145 = por %p143, %p144
      %s147 = sadd.s32 %s146, 1
      %p150 = scmp.eq.s32.totalorder %s16, 1
      %p151 = scmp.ne.s32.totalorder %s146, %s148
      %p152 = scmp.eq.s32.totalorder %s16, 0
      %p153 = por %p151, %p152
      %p154 = scmp.ne.s32.totalorder %s146, %s148
      %p155 = scmp.eq.s32.totalorder %s21, 1
      %p156 = por %p154, %p155
      %p157 = scmp.ne.s32.totalorder %s148, %s149
      %p158 = scmp.eq.s32.totalorder %s21, 0
      %p159 = por %p157, %p158
      %p160 = scmp.ne.s32.totalorder %s148, %s149
      %p161 = scmp.eq.s32.totalorder %s22, 1
      %p162 = por %p160, %p161
      %p164 = scmp.ne.s32.totalorder %s149, %s163
      %p165 = scmp.eq.s32.totalorder %s22, 0
      %p166 = por %p164, %p165
      %s168 = sadd.s32 %s167, 1
      %p171 = scmp.eq.s32.totalorder %s16, 1
      %p172 = scmp.ne.s32.totalorder %s167, %s169
      %p173 = scmp.eq.s32.totalorder %s16, 0
      %p174 = por %p172, %p173
      %p175 = scmp.ne.s32.totalorder %s167, %s169
      %p176 = scmp.eq.s32.totalorder %s21, 1
      %p177 = por %p175, %p176
      %p178 = scmp.ne.s32.totalorder %s169, %s170
      %p179 = scmp.eq.s32.totalorder %s21, 0
      %p180 = por %p178, %p179
      %p181 = scmp.ne.s32.totalorder %s169, %s170
      %p182 = scmp.eq.s32.totalorder %s22, 1
      %p183 = por %p181, %p182
      %p185 = scmp.ne.s32.totalorder %s170, %s184
      %p186 = scmp.eq.s32.totalorder %s22, 0
      %p187 = por %p185, %p186
      %s188 = smul.u32 %s23, %s24
      %s189 = smul.u32 %s35, %s31
      %s190 = ssub.s32 %s188, %s189
      %p191 = scmp.eq.s32.totalorder %s190, 0
      %s193 = sadd.s32 %s192, 1
      %s194 = scalar_select %p191, %s192, %s193
      %p197 = pneg %p191
      %p198 = scmp.eq.s32.totalorder %s16, 1
      %p199 = por %p197, %p198
      %p200 = scmp.ne.s32.totalorder %s192, %s195
      %p201 = scmp.eq.s32.totalorder %s16, 0
      %p202 = por %p200, %p201
      %p203 = scmp.ne.s32.totalorder %s192, %s195
      %p204 = scmp.eq.s32.totalorder %s21, 1
      %p205 = por %p203, %p204
      %p206 = scmp.ne.s32.totalorder %s195, %s196
      %p207 = scmp.eq.s32.totalorder %s21, 0
      %p208 = por %p206, %p207
      %p209 = scmp.ne.s32.totalorder %s195, %s196
      %p210 = scmp.eq.s32.totalorder %s22, 1
      %p211 = por %p209, %p210
      %p213 = scmp.ne.s32.totalorder %s196, %s212
      %p214 = scmp.eq.s32.totalorder %s22, 0
      %p215 = por %p213, %p214
      %p216 = scmp.le.s32.totalorder 1, %s16
      %p217 = scmp.lt.s32.totalorder %s16, 3
      %p218 = pnand %p216, %p217
      %p219 = pneg %p218
      // Predicated region
      $region9: #{tpu_custom_call.1} parent=5 // pred_check
        _
      $region10: #{tpu_custom_call.1} parent=5 // pred_check_branch
        %221 = sbr.rel (%p218) target = $region12
      $region11: #{tpu_custom_call.1} parent=5 // pred_region
        %s222 = ssub.s32 %s16, 1
        // Predicated region
        $region13: #{tpu_custom_call.1} parent=11 // pred_check
          %p223 = pneg %p54
        $region14: #{tpu_custom_call.1} parent=11 // pred_check_branch
          %225 = sbr.rel (%p223) target = $region16
        $region15: #{tpu_custom_call.1} parent=11 // pred_region
          %s226 = smul.u32 4, %s26
          %p227 = scmp.lt.s32.totalorder %s226, 3
          %s228 = scalar_select %p227, %s226, 3
          %s229 = smul.addr %s228, 8
          %s230 = scalar_lea.vmem %s0, %s229
          %s231 = smul.u32 4, %s26
        $region16: #{tpu_custom_call.1} parent=11 // pred_fallthru
          _
        // Predicated region
        $region17: #{tpu_custom_call.1} parent=11 // pred_check
          %p232 = pneg %p75
        $region18: #{tpu_custom_call.1} parent=11 // pred_check_branch
          %234 = sbr.rel (%p232) target = $region20
        $region19: #{tpu_custom_call.1} parent=11 // pred_region
          _
        $region20: #{tpu_custom_call.1} parent=11 // pred_fallthru
          _
        // Predicated region
        $region21: #{tpu_custom_call.1} parent=11 // pred_check
          %p235 = pneg %p96
        $region22: #{tpu_custom_call.1} parent=11 // pred_check_branch
          %237 = sbr.rel (%p235) target = $region24
        $region23: #{tpu_custom_call.1} parent=11 // pred_region
          _
        $region24: #{tpu_custom_call.1} parent=11 // pred_fallthru
          _
        // Predicated region
        $region25: #{tpu_custom_call.1} parent=11 // pred_check
          %p238 = pneg %p117
        $region26: #{tpu_custom_call.1} parent=11 // pred_check_branch
          %240 = sbr.rel (%p238) target = $region28
        $region27: #{tpu_custom_call.1} parent=11 // pred_region
          _
        $region28: #{tpu_custom_call.1} parent=11 // pred_fallthru
          _
        // Predicated region
        $region29: #{tpu_custom_call.1} parent=11 // pred_check
          %p241 = pneg %p138
        $region30: #{tpu_custom_call.1} parent=11 // pred_check_branch
          %243 = sbr.rel (%p241) target = $region32
        $region31: #{tpu_custom_call.1} parent=11 // pred_region
          _
        $region32: #{tpu_custom_call.1} parent=11 // pred_fallthru
          _
        // Predicated region
        $region33: #{tpu_custom_call.1} parent=11 // pred_check
          %p244 = pneg %p159
        $region34: #{tpu_custom_call.1} parent=11 // pred_check_branch
          %246 = sbr.rel (%p244) target = $region36
        $region35: #{tpu_custom_call.1} parent=11 // pred_region
          _
        $region36: #{tpu_custom_call.1} parent=11 // pred_fallthru
          _
        // Predicated region
        $region37: #{tpu_custom_call.1} parent=11 // pred_check
          %p247 = pneg %p180
        $region38: #{tpu_custom_call.1} parent=11 // pred_check_branch
          %249 = sbr.rel (%p247) target = $region40
        $region39: #{tpu_custom_call.1} parent=11 // pred_region
          _
        $region40: #{tpu_custom_call.1} parent=11 // pred_fallthru
          _
      $region12: #{tpu_custom_call.1} parent=5 // pred_fallthru
        _
      %p250 = scmp.lt.s32.totalorder %s16, 2
      // Predicated region
      $region41: #{tpu_custom_call.1} parent=5 // pred_check
        %p251 = pneg %p250
      $region42: #{tpu_custom_call.1} parent=5 // pred_check_branch
        %253 = sbr.rel (%p251) target = $region44
      $region43: #{tpu_custom_call.1} parent=5 // pred_region
        _
      $region44: #{tpu_custom_call.1} parent=5 // pred_fallthru
        _
      %p254 = scmp.le.s32.totalorder 1, %s16
      %p255 = scmp.lt.s32.totalorder %s16, 3
      %p256 = pnand %p254, %p255
      %p257 = pneg %p256
      // Predicated region
      $region45: #{tpu_custom_call.1} parent=5 // pred_check
        _
      $region46: #{tpu_custom_call.1} parent=5 // pred_check_branch
        %259 = sbr.rel (%p256) target = $region48
      $region47: #{tpu_custom_call.1} parent=5 // pred_region
        %s260 = ssub.s32 %s16, 1
        %s261 = smul.u32 4, %s26
        %p262 = scmp.lt.s32.totalorder %s261, 3
        %s263 = scalar_select %p262, %s261, 3
        %s264 = smul.addr %s263, 8
        %s265 = scalar_lea.vmem %s0, %s264
        %p266 = pneg %p54
        %p267 = pneg %p51
        %p268 = pneg %p75
        %p269 = pneg %p72
        %p270 = pneg %p96
        %p271 = pneg %p93
        %p272 = pneg %p117
        %p273 = pneg %p114
        %p274 = pneg %p138
        %p275 = pneg %p135
        %p276 = pneg %p159
        %p277 = pneg %p156
        %p278 = pneg %p180
        %p279 = pneg %p177
        %p280 = pneg %p208
        %p281 = pneg %p205
        %s282 = sand.u32 %s195, 1
        %s283 = scalar_lea.sflag [#allocation6], %s282
        %s284 = sand.u32 %s195, 1
        %s285 = smul.addr %s284, 32
        %s286 = scalar_lea.vmem [#allocation5], %s285
        %s287 = smul.u32 4, %s26
        %p288 = scmp.lt.s32.totalorder %s287, 3
        %s289 = scalar_select %p288, %s287, 3
        %s290 = smul.addr %s289, 8
        %s291 = scalar_lea.vmem %s0, %s290
        %s292 = smul.u32 4, %s26
        %s293 = smul.u32 %s25, %s26
        %s294 = smul.u32 4, %s293
        %s295 = smul.u32 %s26, 32
        %v296 = vld [vmem:[%s291] sm:$0xff]
        %v297 = vld [vmem:[%s291 + $0x8] sm:$0xff]
        %v298 = vld [vmem:[%s291 + $0x10] sm:$0xff]
        %v299 = vld [vmem:[%s291 + $0x18] sm:$0xff]
        %p300 = scmp.eq.s32.totalorder %s25, 0
        // Predicated region
        $region49: #{tpu_custom_call.1} parent=47 // pred_check
          %p301 = pneg %p300
        $region50: #{tpu_custom_call.1} parent=47 // pred_check_branch
          %303 = sbr.rel (%p301) target = $region52
        $region51: #{tpu_custom_call.1} parent=47 // pred_region
          %p304 = scmp.eq.s32.totalorder %s26, 0
          // Predicated region
          $region53: #{tpu_custom_call.1} parent=51 // pred_check
            %p305 = pneg %p304
          $region54: #{tpu_custom_call.1} parent=51 // pred_check_branch
            %307 = sbr.rel (%p305) target = $region56
          $region55: #{tpu_custom_call.1} parent=51 // pred_region
            %vm308 = vcmask 261120
            %309 = vst.msk [vmem:[#allocation2] sm:$0xff] %vm308, 0.0
            %310 = vst.msk [vmem:[#allocation2 + $0x8] sm:$0xff] %vm308, 0.0
            %311 = vst.msk [vmem:[#allocation2 + $0x10] sm:$0xff] %vm308, 0.0
            %312 = vst.msk [vmem:[#allocation2 + $0x18] sm:$0xff] %vm308, 0.0
            %313 = vst.msk [vmem:[#allocation2 + $0x20] sm:$0xff] %vm308, 0.0
            %314 = vst.msk [vmem:[#allocation2 + $0x28] sm:$0xff] %vm308, 0.0
            %315 = vst.msk [vmem:[#allocation2 + $0x30] sm:$0xff] %vm308, 0.0
            %316 = vst.msk [vmem:[#allocation2 + $0x38] sm:$0xff] %vm308, 0.0
            %317 = vst.msk [vmem:[#allocation2 + $0x40] sm:$0xff] %vm308, 0.0
            %318 = vst.msk [vmem:[#allocation2 + $0x48] sm:$0xff] %vm308, 0.0
            %319 = vst.msk [vmem:[#allocation2 + $0x50] sm:$0xff] %vm308, 0.0
            %320 = vst.msk [vmem:[#allocation2 + $0x58] sm:$0xff] %vm308, 0.0
            %321 = vst.msk [vmem:[#allocation2 + $0x60] sm:$0xff] %vm308, 0.0
            %322 = vst.msk [vmem:[#allocation2 + $0x68] sm:$0xff] %vm308, 0.0
            %323 = vst.msk [vmem:[#allocation2 + $0x70] sm:$0xff] %vm308, 0.0
            %324 = vst.msk [vmem:[#allocation2 + $0x78] sm:$0xff] %vm308, 0.0
            %325 = vst.msk [vmem:[#allocation3] sm:$0xff] %vm308, 0.0
            %326 = vst.msk [vmem:[#allocation3 + $0x8] sm:$0xff] %vm308, 0.0
            %327 = vst.msk [vmem:[#allocation3 + $0x10] sm:$0xff] %vm308, 0.0
            %328 = vst.msk [vmem:[#allocation3 + $0x18] sm:$0xff] %vm308, 0.0
            %329 = vst.msk [vmem:[#allocation3 + $0x20] sm:$0xff] %vm308, 0.0
            %330 = vst.msk [vmem:[#allocation3 + $0x28] sm:$0xff] %vm308, 0.0
            %331 = vst.msk [vmem:[#allocation3 + $0x30] sm:$0xff] %vm308, 0.0
            %332 = vst.msk [vmem:[#allocation3 + $0x38] sm:$0xff] %vm308, 0.0
            %333 = vst.msk [vmem:[#allocation3 + $0x40] sm:$0xff] %vm308, 0.0
            %334 = vst.msk [vmem:[#allocation3 + $0x48] sm:$0xff] %vm308, 0.0
            %335 = vst.msk [vmem:[#allocation3 + $0x50] sm:$0xff] %vm308, 0.0
            %336 = vst.msk [vmem:[#allocation3 + $0x58] sm:$0xff] %vm308, 0.0
            %337 = vst.msk [vmem:[#allocation3 + $0x60] sm:$0xff] %vm308, 0.0
            %338 = vst.msk [vmem:[#allocation3 + $0x68] sm:$0xff] %vm308, 0.0
            %339 = vst.msk [vmem:[#allocation3 + $0x70] sm:$0xff] %vm308, 0.0
            %340 = vst.msk [vmem:[#allocation3 + $0x78] sm:$0xff] %vm308, 0.0
            %vm341 = vcmask 253952
            %342 = vst.msk [vmem:[#allocation4] sm:$0x1] %vm341, %v296
          $region56: #{tpu_custom_call.1} parent=51 // pred_fallthru
            _
          %v343 = vlaneseq
          %v344 = vand.u32 %v343, 127
          %v345 = vstv %s295
          %v346 = vadd.s32 %v344, %v345
          %v347 = vld [vmem:[%s1] sm:$0xff]
          %v348 = vld [vmem:[%s1 + $0x8] sm:$0xff]
          %v349 = vld [vmem:[%s1 + $0x10] sm:$0xff]
          %v350 = vld [vmem:[%s1 + $0x18] sm:$0xff]
          %v351 = vld [vmem:[%s1 + $0x20] sm:$0xff]
          %v352 = vld [vmem:[%s1 + $0x28] sm:$0xff]
          %v353 = vld [vmem:[%s1 + $0x30] sm:$0xff]
          %v354 = vld [vmem:[%s1 + $0x38] sm:$0xff]
          %v355 = vld [vmem:[%s1 + $0x40] sm:$0xff]
          %v356 = vld [vmem:[%s1 + $0x48] sm:$0xff]
          %v357 = vld [vmem:[%s1 + $0x50] sm:$0xff]
          %v358 = vld [vmem:[%s1 + $0x58] sm:$0xff]
          %v359 = vld [vmem:[%s1 + $0x60] sm:$0xff]
          %v360 = vld [vmem:[%s1 + $0x68] sm:$0xff]
          %v361 = vld [vmem:[%s1 + $0x70] sm:$0xff]
          %v362 = vld [vmem:[%s1 + $0x78] sm:$0xff]
          %363 = vset.pattern.permute.xlu0 0
          %364 = vperm.xlu0 %363, %v347
          %v365 = vpop.permute.xlu0 %364
          %366 = vset.pattern.permute.xlu0 0
          %367 = vperm.xlu0 %366, %v348
          %v368 = vpop.permute.xlu0 %367
          %369 = vset.pattern.permute.xlu0 0
          %370 = vperm.xlu0 %369, %v349
          %v371 = vpop.permute.xlu0 %370
          %372 = vset.pattern.permute.xlu0 0
          %373 = vperm.xlu0 %372, %v350
          %v374 = vpop.permute.xlu0 %373
          %375 = vset.pattern.permute.xlu0 0
          %376 = vperm.xlu0 %375, %v351
          %v377 = vpop.permute.xlu0 %376
          %378 = vset.pattern.permute.xlu0 0
          %379 = vperm.xlu0 %378, %v352
          %v380 = vpop.permute.xlu0 %379
          %381 = vset.pattern.permute.xlu0 0
          %382 = vperm.xlu0 %381, %v353
          %v383 = vpop.permute.xlu0 %382
          %384 = vset.pattern.permute.xlu0 0
          %385 = vperm.xlu0 %384, %v354
          %v386 = vpop.permute.xlu0 %385
          %387 = vset.pattern.permute.xlu0 0
          %388 = vperm.xlu0 %387, %v355
          %v389 = vpop.permute.xlu0 %388
          %390 = vset.pattern.permute.xlu0 0
          %391 = vperm.xlu0 %390, %v356
          %v392 = vpop.permute.xlu0 %391
          %393 = vset.pattern.permute.xlu0 0
          %394 = vperm.xlu0 %393, %v357
          %v395 = vpop.permute.xlu0 %394
          %396 = vset.pattern.permute.xlu0 0
          %397 = vperm.xlu0 %396, %v358
          %v398 = vpop.permute.xlu0 %397
          %399 = vset.pattern.permute.xlu0 0
          %400 = vperm.xlu0 %399, %v359
          %v401 = vpop.permute.xlu0 %400
          %402 = vset.pattern.permute.xlu0 0
          %403 = vperm.xlu0 %402, %v360
          %v404 = vpop.permute.xlu0 %403
          %405 = vset.pattern.permute.xlu0 0
          %406 = vperm.xlu0 %405, %v361
          %v407 = vpop.permute.xlu0 %406
          %408 = vset.pattern.permute.xlu0 0
          %409 = vperm.xlu0 %408, %v362
          %v410 = vpop.permute.xlu0 %409
          %vm411 = vcmp.ge.s32.totalorder %v346, %v365
          %vm412 = vcmp.ge.s32.totalorder %v346, %v368
          %vm413 = vcmp.ge.s32.totalorder %v346, %v371
          %vm414 = vcmp.ge.s32.totalorder %v346, %v374
          %vm415 = vcmp.ge.s32.totalorder %v346, %v377
          %vm416 = vcmp.ge.s32.totalorder %v346, %v380
          %vm417 = vcmp.ge.s32.totalorder %v346, %v383
          %vm418 = vcmp.ge.s32.totalorder %v346, %v386
          %vm419 = vcmp.ge.s32.totalorder %v346, %v389
          %vm420 = vcmp.ge.s32.totalorder %v346, %v392
          %vm421 = vcmp.ge.s32.totalorder %v346, %v395
          %vm422 = vcmp.ge.s32.totalorder %v346, %v398
          %vm423 = vcmp.ge.s32.totalorder %v346, %v401
          %vm424 = vcmp.ge.s32.totalorder %v346, %v404
          %vm425 = vcmp.ge.s32.totalorder %v346, %v407
          %vm426 = vcmp.ge.s32.totalorder %v346, %v410
          %v427 = vld [vmem:[%s2] sm:$0xff]
          %v428 = vld [vmem:[%s2 + $0x8] sm:$0xff]
          %v429 = vld [vmem:[%s2 + $0x10] sm:$0xff]
          %v430 = vld [vmem:[%s2 + $0x18] sm:$0xff]
          %v431 = vld [vmem:[%s2 + $0x20] sm:$0xff]
          %v432 = vld [vmem:[%s2 + $0x28] sm:$0xff]
          %v433 = vld [vmem:[%s2 + $0x30] sm:$0xff]
          %v434 = vld [vmem:[%s2 + $0x38] sm:$0xff]
          %v435 = vld [vmem:[%s2 + $0x40] sm:$0xff]
          %v436 = vld [vmem:[%s2 + $0x48] sm:$0xff]
          %v437 = vld [vmem:[%s2 + $0x50] sm:$0xff]
          %v438 = vld [vmem:[%s2 + $0x58] sm:$0xff]
          %v439 = vld [vmem:[%s2 + $0x60] sm:$0xff]
          %v440 = vld [vmem:[%s2 + $0x68] sm:$0xff]
          %v441 = vld [vmem:[%s2 + $0x70] sm:$0xff]
          %v442 = vld [vmem:[%s2 + $0x78] sm:$0xff]
          %443 = vset.pattern.permute.xlu0 0
          %444 = vperm.xlu0 %443, %v427
          %v445 = vpop.permute.xlu0 %444
          %446 = vset.pattern.permute.xlu0 0
          %447 = vperm.xlu0 %446, %v428
          %v448 = vpop.permute.xlu0 %447
          %449 = vset.pattern.permute.xlu0 0
          %450 = vperm.xlu0 %449, %v429
          %v451 = vpop.permute.xlu0 %450
          %452 = vset.pattern.permute.xlu0 0
          %453 = vperm.xlu0 %452, %v430
          %v454 = vpop.permute.xlu0 %453
          %455 = vset.pattern.permute.xlu0 0
          %456 = vperm.xlu0 %455, %v431
          %v457 = vpop.permute.xlu0 %456
          %458 = vset.pattern.permute.xlu0 0
          %459 = vperm.xlu0 %458, %v432
          %v460 = vpop.permute.xlu0 %459
          %461 = vset.pattern.permute.xlu0 0
          %462 = vperm.xlu0 %461, %v433
          %v463 = vpop.permute.xlu0 %462
          %464 = vset.pattern.permute.xlu0 0
          %465 = vperm.xlu0 %464, %v434
          %v466 = vpop.permute.xlu0 %465
          %467 = vset.pattern.permute.xlu0 0
          %468 = vperm.xlu0 %467, %v435
          %v469 = vpop.permute.xlu0 %468
          %470 = vset.pattern.permute.xlu0 0
          %471 = vperm.xlu0 %470, %v436
          %v472 = vpop.permute.xlu0 %471
          %473 = vset.pattern.permute.xlu0 0
          %474 = vperm.xlu0 %473, %v437
          %v475 = vpop.permute.xlu0 %474
          %476 = vset.pattern.permute.xlu0 0
          %477 = vperm.xlu0 %476, %v438
          %v478 = vpop.permute.xlu0 %477
          %479 = vset.pattern.permute.xlu0 0
          %480 = vperm.xlu0 %479, %v439
          %v481 = vpop.permute.xlu0 %480
          %482 = vset.pattern.permute.xlu0 0
          %483 = vperm.xlu0 %482, %v440
          %v484 = vpop.permute.xlu0 %483
          %485 = vset.pattern.permute.xlu0 0
          %486 = vperm.xlu0 %485, %v441
          %v487 = vpop.permute.xlu0 %486
          %488 = vset.pattern.permute.xlu0 0
          %489 = vperm.xlu0 %488, %v442
          %v490 = vpop.permute.xlu0 %489
          %vm491 = vcmp.lt.s32.totalorder %v346, %v445
          %vm492 = vcmp.lt.s32.totalorder %v346, %v448
          %vm493 = vcmp.lt.s32.totalorder %v346, %v451
          %vm494 = vcmp.lt.s32.totalorder %v346, %v454
          %vm495 = vcmp.lt.s32.totalorder %v346, %v457
          %vm496 = vcmp.lt.s32.totalorder %v346, %v460
          %vm497 = vcmp.lt.s32.totalorder %v346, %v463
          %vm498 = vcmp.lt.s32.totalorder %v346, %v466
          %vm499 = vcmp.lt.s32.totalorder %v346, %v469
          %vm500 = vcmp.lt.s32.totalorder %v346, %v472
          %vm501 = vcmp.lt.s32.totalorder %v346, %v475
          %vm502 = vcmp.lt.s32.totalorder %v346, %v478
          %vm503 = vcmp.lt.s32.totalorder %v346, %v481
          %vm504 = vcmp.lt.s32.totalorder %v346, %v484
          %vm505 = vcmp.lt.s32.totalorder %v346, %v487
          %vm506 = vcmp.lt.s32.totalorder %v346, %v490
          %vm507 = vmand %vm411, %vm491
          %vm508 = vmand %vm412, %vm492
          %vm509 = vmand %vm413, %vm493
          %vm510 = vmand %vm414, %vm494
          %vm511 = vmand %vm415, %vm495
          %vm512 = vmand %vm416, %vm496
          %vm513 = vmand %vm417, %vm497
          %vm514 = vmand %vm418, %vm498
          %vm515 = vmand %vm419, %vm499
          %vm516 = vmand %vm420, %vm500
          %vm517 = vmand %vm421, %vm501
          %vm518 = vmand %vm422, %vm502
          %vm519 = vmand %vm423, %vm503
          %vm520 = vmand %vm424, %vm504
          %vm521 = vmand %vm425, %vm505
          %vm522 = vmand %vm426, %vm506
          %v523 = vsel %vm507, 1.0, 0.0
          %v524 = vsel %vm508, 1.0, 0.0
          %v525 = vsel %vm509, 1.0, 0.0
          %v526 = vsel %vm510, 1.0, 0.0
          %v527 = vsel %vm511, 1.0, 0.0
          %v528 = vsel %vm512, 1.0, 0.0
          %v529 = vsel %vm513, 1.0, 0.0
          %v530 = vsel %vm514, 1.0, 0.0
          %v531 = vsel %vm515, 1.0, 0.0
          %v532 = vsel %vm516, 1.0, 0.0
          %v533 = vsel %vm517, 1.0, 0.0
          %v534 = vsel %vm518, 1.0, 0.0
          %v535 = vsel %vm519, 1.0, 0.0
          %v536 = vsel %vm520, 1.0, 0.0
          %v537 = vsel %vm521, 1.0, 0.0
          %v538 = vsel %vm522, 1.0, 0.0
          %v539 = vld [vmem:[#allocation4] sm:$0x1]
          %v541 = vlaneseq
          %v542 = vshrl.u32 %v541, 7
          %v543 = vsub.s32 0, %v542
          %v544 = vrot.slane %v539, %v543
          %v546 = vsub.f32 %v296, %v544
          %v547 = vsub.f32 %v297, %v544
          %v548 = vsub.f32 %v298, %v544
          %v549 = vsub.f32 %v299, %v544
          %v550 = vld [vmem:[#allocation2] sm:$0xff]
          %v551 = vld [vmem:[#allocation2 + $0x8] sm:$0xff]
          %v552 = vld [vmem:[#allocation2 + $0x10] sm:$0xff]
          %v553 = vld [vmem:[#allocation2 + $0x18] sm:$0xff]
          %v554 = vld [vmem:[#allocation2 + $0x20] sm:$0xff]
          %v555 = vld [vmem:[#allocation2 + $0x28] sm:$0xff]
          %v556 = vld [vmem:[#allocation2 + $0x30] sm:$0xff]
          %v557 = vld [vmem:[#allocation2 + $0x38] sm:$0xff]
          %v558 = vld [vmem:[#allocation2 + $0x40] sm:$0xff]
          %v559 = vld [vmem:[#allocation2 + $0x48] sm:$0xff]
          %v560 = vld [vmem:[#allocation2 + $0x50] sm:$0xff]
          %v561 = vld [vmem:[#allocation2 + $0x58] sm:$0xff]
          %v562 = vld [vmem:[#allocation2 + $0x60] sm:$0xff]
          %v563 = vld [vmem:[#allocation2 + $0x68] sm:$0xff]
          %v564 = vld [vmem:[#allocation2 + $0x70] sm:$0xff]
          %v565 = vld [vmem:[#allocation2 + $0x78] sm:$0xff]
          %vm566 = vcmask 261120
          %v568 = vsel %vm566, %v523, 0
          %v571 = vsel %vm566, %v524, 0
          %v574 = vsel %vm566, %v525, 0
          %v577 = vsel %vm566, %v526, 0
          %v580 = vsel %vm566, %v527, 0
          %v583 = vsel %vm566, %v528, 0
          %v586 = vsel %vm566, %v529, 0
          %v589 = vsel %vm566, %v530, 0
          %v592 = vsel %vm566, %v531, 0
          %v595 = vsel %vm566, %v532, 0
          %v598 = vsel %vm566, %v533, 0
          %v601 = vsel %vm566, %v534, 0
          %v604 = vsel %vm566, %v535, 0
          %v607 = vsel %vm566, %v536, 0
          %v610 = vsel %vm566, %v537, 0
          %v613 = vsel %vm566, %v538, 0
          %615 = vmatprep.subr.mxu0 0.0
          %v616 = vand.u32 %v546, 4294901760
          %617 = vmatpush1.msra.mxu0 %v616
          %618 = vmatprep.subr.mxu0 0.0
          %v619 = vand.u32 %v547, 4294901760
          %620 = vmatpush1.msra.mxu0 %v619
          %621 = vmatprep.subr.mxu0 0.0
          %v622 = vand.u32 %v548, 4294901760
          %623 = vmatpush1.msra.mxu0 %v622
          %624 = vmatprep.subr.mxu0 0.0
          %v625 = vand.u32 %v549, 4294901760
          %626 = vmatpush1.msra.mxu0 %v625
          %627 = vmatprep.subr.mxu0 0.0
          %628 = vmatpush1.msra.mxu0 0.0
          %629 = vmatprep.subr.mxu0 0.0
          %630 = vmatpush1.msra.mxu0 0.0
          %631 = vmatprep.subr.mxu0 0.0
          %632 = vmatpush1.msra.mxu0 0.0
          %633 = vmatprep.subr.mxu0 0.0
          %634 = vmatpush1.msra.mxu0 0.0
          %635 = vmatprep.subr.mxu0 0.0
          %636 = vmatpush1.msra.mxu0 0.0
          %637 = vmatprep.subr.mxu0 0.0
          %638 = vmatpush1.msra.mxu0 0.0
          %639 = vmatprep.subr.mxu0 0.0
          %640 = vmatpush1.msra.mxu0 0.0
          %641 = vmatprep.subr.mxu0 0.0
          %642 = vmatpush1.msra.mxu0 0.0
          %643 = vmatprep.subr.mxu0 0.0
          %644 = vmatpush1.msra.mxu0 0.0
          %645 = vmatprep.subr.mxu0 0.0
          %646 = vmatpush1.msra.mxu0 0.0
          %647 = vmatprep.subr.mxu0 0.0
          %648 = vmatpush1.msra.mxu0 0.0
          %649 = vmatprep.subr.mxu0 0.0
          %650 = vmatpush1.msra.mxu0 0.0
          %651 = vmatprep.subr.mxu0 0.0
          %652 = vmatpush1.msra.mxu0 0.0
          %653 = vmatprep.subr.mxu0 0.0
          %654 = vmatpush1.msra.mxu0 0.0
          %655 = vmatprep.subr.mxu0 0.0
          %656 = vmatpush1.msra.mxu0 0.0
          %657 = vmatprep.subr.mxu0 0.0
          %658 = vmatpush1.msra.mxu0 0.0
          %659 = vmatprep.subr.mxu0 0.0
          %660 = vmatpush1.msra.mxu0 0.0
          %661 = vmatprep.subr.mxu0 0.0
          %662 = vmatpush1.msra.mxu0 0.0
          %663 = vmatprep.subr.mxu0 0.0
          %664 = vmatpush1.msra.mxu0 0.0
          %665 = vmatprep.subr.mxu0 0.0
          %666 = vmatpush1.msra.mxu0 0.0
          %667 = vmatprep.subr.mxu0 0.0
          %668 = vmatpush1.msra.mxu0 0.0
          %669 = vmatprep.subr.mxu0 0.0
          %670 = vmatpush1.msra.mxu0 0.0
          %671 = vmatprep.subr.mxu0 0.0
          %672 = vmatpush1.msra.mxu0 0.0
          %673 = vmatprep.subr.mxu0 0.0
          %674 = vmatpush1.msra.mxu0 0.0
          %675 = vmatprep.subr.mxu0 0.0
          %676 = vmatpush1.msra.mxu0 0.0
          %677 = vmatprep.subr.mxu0 0.0
          %678 = vmatpush1.msra.mxu0 0.0
          %679 = vmatprep.subr.mxu0 0.0
          %680 = vmatpush1.msra.mxu0 0.0
          %681 = vmatprep.subr.mxu0 0.0
          %682 = vmatpush1.msra.mxu0 0.0
          %683 = vmatprep.mubr.f32.mxu0 0.0
          %v684 = vand.u32 %v568, 4294901760
          %v685 = vsub.f32 %v568, %v684
          %v686 = vand.u32 %v685, 4294901760
          %v687 = vsub.f32 %v685, %v686
          %v688 = vand.u32 %v687, 4294901760
          %689 = vmatmul.mubr.f32.gmra.mrb[0].mxu0 %v688
          %v690 = vpop.f32.mrb[0].mxu0
          %v691 = vadd.f32 0.0, %v690
          %v692 = vpop.f32.mrb[0].mxu0
          %693 = vmatprep.mubr.f32.mxu0 0.0
          %v694 = vand.u32 %v571, 4294901760
          %v695 = vsub.f32 %v571, %v694
          %v696 = vand.u32 %v695, 4294901760
          %v697 = vsub.f32 %v695, %v696
          %v698 = vand.u32 %v697, 4294901760
          %699 = vmatmul.mubr.f32.gmra.mrb[0].mxu0 %v698
          %v700 = vpop.f32.mrb[0].mxu0
          %v701 = vadd.f32 0.0, %v700
          %v702 = vpop.f32.mrb[0].mxu0
          %703 = vmatprep.mubr.f32.mxu0 0.0
          %v704 = vand.u32 %v574, 4294901760
          %v705 = vsub.f32 %v574, %v704
          %v706 = vand.u32 %v705, 4294901760
          %v707 = vsub.f32 %v705, %v706
          %v708 = vand.u32 %v707, 4294901760
          %709 = vmatmul.mubr.f32.gmra.mrb[0].mxu0 %v708
          %v710 = vpop.f32.mrb[0].mxu0
          %v711 = vadd.f32 0.0, %v710
          %v712 = vpop.f32.mrb[0].mxu0
          %713 = vmatprep.mubr.f32.mxu0 0.0
          %v714 = vand.u32 %v577, 4294901760
          %v715 = vsub.f32 %v577, %v714
          %v716 = vand.u32 %v715, 4294901760
          %v717 = vsub.f32 %v715, %v716
          %v718 = vand.u32 %v717, 4294901760
          %719 = vmatmul.mubr.f32.gmra.mrb[0].mxu0 %v718
          %v720 = vpop.f32.mrb[0].mxu0
          %v721 = vadd.f32 0.0, %v720
          %v722 = vpop.f32.mrb[0].mxu0
          %723 = vmatprep.mubr.f32.mxu0 0.0
          %v724 = vand.u32 %v580, 4294901760
          %v725 = vsub.f32 %v580, %v724
          %v726 = vand.u32 %v725, 4294901760
          %v727 = vsub.f32 %v725, %v726
          %v728 = vand.u32 %v727, 4294901760
          %729 = vmatmul.mubr.f32.gmra.mrb[0].mxu0 %v728
          %v730 = vpop.f32.mrb[0].mxu0
          %v731 = vadd.f32 0.0, %v730
          %v732 = vpop.f32.mrb[0].mxu0
          %733 = vmatprep.mubr.f32.mxu0 0.0
          %v734 = vand.u32 %v583, 4294901760
          %v735 = vsub.f32 %v583, %v734
          %v736 = vand.u32 %v735, 4294901760
          %v737 = vsub.f32 %v735, %v736
          %v738 = vand.u32 %v737, 4294901760
          %739 = vmatmul.mubr.f32.gmra.mrb[0].mxu0 %v738
          %v740 = vpop.f32.mrb[0].mxu0
          %v741 = vadd.f32 0.0, %v740
          %v742 = vpop.f32.mrb[0].mxu0
          %743 = vmatprep.mubr.f32.mxu0 0.0
          %v744 = vand.u32 %v586, 4294901760
          %v745 = vsub.f32 %v586, %v744
          %v746 = vand.u32 %v745, 4294901760
          %v747 = vsub.f32 %v745, %v746
          %v748 = vand.u32 %v747, 4294901760
          %749 = vmatmul.mubr.f32.gmra.mrb[0].mxu0 %v748
          %v750 = vpop.f32.mrb[0].mxu0
          %v751 = vadd.f32 0.0, %v750
          %v752 = vpop.f32.mrb[0].mxu0
          %753 = vmatprep.mubr.f32.mxu0 0.0
          %v754 = vand.u32 %v589, 4294901760
          %v755 = vsub.f32 %v589, %v754
          %v756 = vand.u32 %v755, 4294901760
          %v757 = vsub.f32 %v755, %v756
          %v758 = vand.u32 %v757, 4294901760
          %759 = vmatmul.mubr.f32.gmra.mrb[0].mxu0 %v758
          %v760 = vpop.f32.mrb[0].mxu0
          %v761 = vadd.f32 0.0, %v760
          %v762 = vpop.f32.mrb[0].mxu0
          %763 = vmatprep.mubr.f32.mxu0 0.0
          %v764 = vand.u32 %v592, 4294901760
          %v765 = vsub.f32 %v592, %v764
          %v766 = vand.u32 %v765, 4294901760
          %v767 = vsub.f32 %v765, %v766
          %v768 = vand.u32 %v767, 4294901760
          %769 = vmatmul.mubr.f32.gmra.mrb[0].mxu0 %v768
          %v770 = vpop.f32.mrb[0].mxu0
          %v771 = vadd.f32 0.0, %v770
          %v772 = vpop.f32.mrb[0].mxu0
          %773 = vmatprep.mubr.f32.mxu0 0.0
          %v774 = vand.u32 %v595, 4294901760
          %v775 = vsub.f32 %v595, %v774
          %v776 = vand.u32 %v775, 4294901760
          %v777 = vsub.f32 %v775, %v776
          %v778 = vand.u32 %v777, 4294901760
          %779 = vmatmul.mubr.f32.gmra.mrb[0].mxu0 %v778
          %v780 = vpop.f32.mrb[0].mxu0
          %v781 = vadd.f32 0.0, %v780
          %v782 = vpop.f32.mrb[0].mxu0
          %783 = vmatprep.mubr.f32.mxu0 0.0
          %v784 = vand.u32 %v598, 4294901760
          %v785 = vsub.f32 %v598, %v784
          %v786 = vand.u32 %v785, 4294901760
          %v787 = vsub.f32 %v785, %v786
          %v788 = vand.u32 %v787, 4294901760
          %789 = vmatmul.mubr.f32.gmra.mrb[0].mxu0 %v788
          %v790 = vpop.f32.mrb[0].mxu0
          %v791 = vadd.f32 0.0, %v790
          %v792 = vpop.f32.mrb[0].mxu0
          %793 = vmatprep.mubr.f32.mxu0 0.0
          %v794 = vand.u32 %v601, 4294901760
          %v795 = vsub.f32 %v601, %v794
          %v796 = vand.u32 %v795, 4294901760
          %v797 = vsub.f32 %v795, %v796
          %v798 = vand.u32 %v797, 4294901760
          %799 = vmatmul.mubr.f32.gmra.mrb[0].mxu0 %v798
          %v800 = vpop.f32.mrb[0].mxu0
          %v801 = vadd.f32 0.0, %v800
          %v802 = vpop.f32.mrb[0].mxu0
          %803 = vmatprep.mubr.f32.mxu0 0.0
          %v804 = vand.u32 %v604, 4294901760
          %v805 = vsub.f32 %v604, %v804
          %v806 = vand.u32 %v805, 4294901760
          %v807 = vsub.f32 %v805, %v806
          %v808 = vand.u32 %v807, 4294901760
          %809 = vmatmul.mubr.f32.gmra.mrb[0].mxu0 %v808
          %v810 = vpop.f32.mrb[0].mxu0
          %v811 = vadd.f32 0.0, %v810
          %v812 = vpop.f32.mrb[0].mxu0
          %813 = vmatprep.mubr.f32.mxu0 0.0
          %v814 = vand.u32 %v607, 4294901760
          %v815 = vsub.f32 %v607, %v814
          %v816 = vand.u32 %v815, 4294901760
          %v817 = vsub.f32 %v815, %v816
          %v818 = vand.u32 %v817, 4294901760
          %819 = vmatmul.mubr.f32.gmra.mrb[0].mxu0 %v818
          %v820 = vpop.f32.mrb[0].mxu0
          %v821 = vadd.f32 0.0, %v820
          %v822 = vpop.f32.mrb[0].mxu0
          %823 = vmatprep.mubr.f32.mxu0 0.0
          %v824 = vand.u32 %v610, 4294901760
          %v825 = vsub.f32 %v610, %v824
          %v826 = vand.u32 %v825, 4294901760
          %v827 = vsub.f32 %v825, %v826
          %v828 = vand.u32 %v827, 4294901760
          %829 = vmatmul.mubr.f32.gmra.mrb[0].mxu0 %v828
          %v830 = vpop.f32.mrb[0].mxu0
          %v831 = vadd.f32 0.0, %v830
          %v832 = vpop.f32.mrb[0].mxu0
          %833 = vmatprep.mubr.f32.mxu0 0.0
          %v834 = vand.u32 %v613, 4294901760
          %v835 = vsub.f32 %v613, %v834
          %v836 = vand.u32 %v835, 4294901760
          %v837 = vsub.f32 %v835, %v836
          %v838 = vand.u32 %v837, 4294901760
          %839 = vmatmul.mubr.f32.gmra.mrb[0].mxu0 %v838
          %v840 = vpop.f32.mrb[0].mxu0
          %v841 = vadd.f32 0.0, %v840
          %v842 = vpop.f32.mrb[0].mxu0
          %843 = vdwg.mxu0
          %844 = vmatprep.subr.mxu0 0.0
          %v845 = vand.u32 %v546, 4294901760
          %v846 = vsub.f32 %v546, %v845
          %v847 = vand.u32 %v846, 4294901760
          %v848 = vsub.f32 %v846, %v847
          %v849 = vand.u32 %v848, 4294901760
          %850 = vmatpush1.msra.mxu0 %v849
          %851 = vmatprep.subr.mxu0 0.0
          %v852 = vand.u32 %v547, 4294901760
          %v853 = vsub.f32 %v547, %v852
          %v854 = vand.u32 %v853, 4294901760
          %v855 = vsub.f32 %v853, %v854
          %v856 = vand.u32 %v855, 4294901760
          %857 = vmatpush1.msra.mxu0 %v856
          %858 = vmatprep.subr.mxu0 0.0
          %v859 = vand.u32 %v548, 4294901760
          %v860 = vsub.f32 %v548, %v859
          %v861 = vand.u32 %v860, 4294901760
          %v862 = vsub.f32 %v860, %v861
          %v863 = vand.u32 %v862, 4294901760
          %864 = vmatpush1.msra.mxu0 %v863
          %865 = vmatprep.subr.mxu0 0.0
          %v866 = vand.u32 %v549, 4294901760
          %v867 = vsub.f32 %v549, %v866
          %v868 = vand.u32 %v867, 4294901760
          %v869 = vsub.f32 %v867, %v868
          %v870 = vand.u32 %v869, 4294901760
          %871 = vmatpush1.msra.mxu0 %v870
          %872 = vmatprep.subr.mxu0 0.0
          %873 = vmatpush1.msra.mxu0 0.0
          %874 = vmatprep.subr.mxu0 0.0
          %875 = vmatpush1.msra.mxu0 0.0
          %876 = vmatprep.subr.mxu0 0.0
          %877 = vmatpush1.msra.mxu0 0.0
          %878 = vmatprep.subr.mxu0 0.0
          %879 = vmatpush1.msra.mxu0 0.0
          %880 = vmatprep.subr.mxu0 0.0
          %881 = vmatpush1.msra.mxu0 0.0
          %882 = vmatprep.subr.mxu0 0.0
          %883 = vmatpush1.msra.mxu0 0.0
          %884 = vmatprep.subr.mxu0 0.0
          %885 = vmatpush1.msra.mxu0 0.0
          %886 = vmatprep.subr.mxu0 0.0
          %887 = vmatpush1.msra.mxu0 0.0
          %888 = vmatprep.subr.mxu0 0.0
          %889 = vmatpush1.msra.mxu0 0.0
          %890 = vmatprep.subr.mxu0 0.0
          %891 = vmatpush1.msra.mxu0 0.0
          %892 = vmatprep.subr.mxu0 0.0
          %893 = vmatpush1.msra.mxu0 0.0
          %894 = vmatprep.subr.mxu0 0.0
          %895 = vmatpush1.msra.mxu0 0.0
          %896 = vmatprep.subr.mxu0 0.0
          %897 = vmatpush1.msra.mxu0 0.0
          %898 = vmatprep.subr.mxu0 0.0
          %899 = vmatpush1.msra.mxu0 0.0
          %900 = vmatprep.subr.mxu0 0.0
          %901 = vmatpush1.msra.mxu0 0.0
          %902 = vmatprep.subr.mxu0 0.0
          %903 = vmatpush1.msra.mxu0 0.0
          %904 = vmatprep.subr.mxu0 0.0
          %905 = vmatpush1.msra.mxu0 0.0
          %906 = vmatprep.subr.mxu0 0.0
          %907 = vmatpush1.msra.mxu0 0.0
          %908 = vmatprep.subr.mxu0 0.0
          %909 = vmatpush1.msra.mxu0 0.0
          %910 = vmatprep.subr.mxu0 0.0
          %911 = vmatpush1.msra.mxu0 0.0
          %912 = vmatprep.subr.mxu0 0.0
          %913 = vmatpush1.msra.mxu0 0.0
          %914 = vmatprep.subr.mxu0 0.0
          %915 = vmatpush1.msra.mxu0 0.0
          %916 = vmatprep.subr.mxu0 0.0
          %917 = vmatpush1.msra.mxu0 0.0
          %918 = vmatprep.subr.mxu0 0.0
          %919 = vmatpush1.msra.mxu0 0.0
          %920 = vmatprep.subr.mxu0 0.0
          %921 = vmatpush1.msra.mxu0 0.0
          %922 = vmatprep.subr.mxu0 0.0
          %923 = vmatpush1.msra.mxu0 0.0
          %924 = vmatprep.subr.mxu0 0.0
          %925 = vmatpush1.msra.mxu0 0.0
          %926 = vmatprep.subr.mxu0 0.0
          %927 = vmatpush1.msra.mxu0 0.0
          %928 = vmatprep.mubr.f32.mxu0 0.0
          %v929 = vand.u32 %v568, 4294901760
          %930 = vmatmul.mubr.f32.gmra.mrb[0].mxu0 %v929
          %v931 = vpop.f32.mrb[0].mxu0
          %v932 = vadd.f32 %v691, %v931
          %v933 = vpop.f32.mrb[0].mxu0
          %934 = vmatprep.mubr.f32.mxu0 0.0
          %v935 = vand.u32 %v571, 4294901760
          %936 = vmatmul.mubr.f32.gmra.mrb[0].mxu0 %v935
          %v937 = vpop.f32.mrb[0].mxu0
          %v938 = vadd.f32 %v701, %v937
          %v939 = vpop.f32.mrb[0].mxu0
          %940 = vmatprep.mubr.f32.mxu0 0.0
          %v941 = vand.u32 %v574, 4294901760
          %942 = vmatmul.mubr.f32.gmra.mrb[0].mxu0 %v941
          %v943 = vpop.f32.mrb[0].mxu0
          %v944 = vadd.f32 %v711, %v943
          %v945 = vpop.f32.mrb[0].mxu0
          %946 = vmatprep.mubr.f32.mxu0 0.0
          %v947 = vand.u32 %v577, 4294901760
          %948 = vmatmul.mubr.f32.gmra.mrb[0].mxu0 %v947
          %v949 = vpop.f32.mrb[0].mxu0
          %v950 = vadd.f32 %v721, %v949
          %v951 = vpop.f32.mrb[0].mxu0
          %952 = vmatprep.mubr.f32.mxu0 0.0
          %v953 = vand.u32 %v580, 4294901760
          %954 = vmatmul.mubr.f32.gmra.mrb[0].mxu0 %v953
          %v955 = vpop.f32.mrb[0].mxu0
          %v956 = vadd.f32 %v731, %v955
          %v957 = vpop.f32.mrb[0].mxu0
          %958 = vmatprep.mubr.f32.mxu0 0.0
          %v959 = vand.u32 %v583, 4294901760
          %960 = vmatmul.mubr.f32.gmra.mrb[0].mxu0 %v959
          %v961 = vpop.f32.mrb[0].mxu0
          %v962 = vadd.f32 %v741, %v961
          %v963 = vpop.f32.mrb[0].mxu0
          %964 = vmatprep.mubr.f32.mxu0 0.0
          %v965 = vand.u32 %v586, 4294901760
          %966 = vmatmul.mubr.f32.gmra.mrb[0].mxu0 %v965
          %v967 = vpop.f32.mrb[0].mxu0
          %v968 = vadd.f32 %v751, %v967
          %v969 = vpop.f32.mrb[0].mxu0
          %970 = vmatprep.mubr.f32.mxu0 0.0
          %v971 = vand.u32 %v589, 4294901760
          %972 = vmatmul.mubr.f32.gmra.mrb[0].mxu0 %v971
          %v973 = vpop.f32.mrb[0].mxu0
          %v974 = vadd.f32 %v761, %v973
          %v975 = vpop.f32.mrb[0].mxu0
          %976 = vmatprep.mubr.f32.mxu0 0.0
          %v977 = vand.u32 %v592, 4294901760
          %978 = vmatmul.mubr.f32.gmra.mrb[0].mxu0 %v977
          %v979 = vpop.f32.mrb[0].mxu0
          %v980 = vadd.f32 %v771, %v979
          %v981 = vpop.f32.mrb[0].mxu0
          %982 = vmatprep.mubr.f32.mxu0 0.0
          %v983 = vand.u32 %v595, 4294901760
          %984 = vmatmul.mubr.f32.gmra.mrb[0].mxu0 %v983
          %v985 = vpop.f32.mrb[0].mxu0
          %v986 = vadd.f32 %v781, %v985
          %v987 = vpop.f32.mrb[0].mxu0
          %988 = vmatprep.mubr.f32.mxu0 0.0
          %v989 = vand.u32 %v598, 4294901760
          %990 = vmatmul.mubr.f32.gmra.mrb[0].mxu0 %v989
          %v991 = vpop.f32.mrb[0].mxu0
          %v992 = vadd.f32 %v791, %v991
          %v993 = vpop.f32.mrb[0].mxu0
          %994 = vmatprep.mubr.f32.mxu0 0.0
          %v995 = vand.u32 %v601, 4294901760
          %996 = vmatmul.mubr.f32.gmra.mrb[0].mxu0 %v995
          %v997 = vpop.f32.mrb[0].mxu0
          %v998 = vadd.f32 %v801, %v997
          %v999 = vpop.f32.mrb[0].mxu0
          %1000 = vmatprep.mubr.f32.mxu0 0.0
          %v1001 = vand.u32 %v604, 4294901760
          %1002 = vmatmul.mubr.f32.gmra.mrb[0].mxu0 %v1001
          %v1003 = vpop.f32.mrb[0].mxu0
          %v1004 = vadd.f32 %v811, %v1003
          %v1005 = vpop.f32.mrb[0].mxu0
          %1006 = vmatprep.mubr.f32.mxu0 0.0
          %v1007 = vand.u32 %v607, 4294901760
          %1008 = vmatmul.mubr.f32.gmra.mrb[0].mxu0 %v1007
          %v1009 = vpop.f32.mrb[0].mxu0
          %v1010 = vadd.f32 %v821, %v1009
          %v1011 = vpop.f32.mrb[0].mxu0
          %1012 = vmatprep.mubr.f32.mxu0 0.0
          %v1013 = vand.u32 %v610, 4294901760
          %1014 = vmatmul.mubr.f32.gmra.mrb[0].mxu0 %v1013
          %v1015 = vpop.f32.mrb[0].mxu0
          %v1016 = vadd.f32 %v831, %v1015
          %v1017 = vpop.f32.mrb[0].mxu0
          %1018 = vmatprep.mubr.f32.mxu0 0.0
          %v1019 = vand.u32 %v613, 4294901760
          %1020 = vmatmul.mubr.f32.gmra.mrb[0].mxu0 %v1019
          %v1021 = vpop.f32.mrb[0].mxu0
          %v1022 = vadd.f32 %v841, %v1021
          %v1023 = vpop.f32.mrb[0].mxu0
          %1024 = vdwg.mxu0
          %1025 = vmatprep.subr.mxu0 0.0
          %v1026 = vand.u32 %v546, 4294901760
          %v1027 = vsub.f32 %v546, %v1026
          %1028 = vmatpush1.msra.mxu0 %v1027
          %1029 = vmatprep.subr.mxu0 0.0
          %v1030 = vand.u32 %v547, 4294901760
          %v1031 = vsub.f32 %v547, %v1030
          %1032 = vmatpush1.msra.mxu0 %v1031
          %1033 = vmatprep.subr.mxu0 0.0
          %v1034 = vand.u32 %v548, 4294901760
          %v1035 = vsub.f32 %v548, %v1034
          %1036 = vmatpush1.msra.mxu0 %v1035
          %1037 = vmatprep.subr.mxu0 0.0
          %v1038 = vand.u32 %v549, 4294901760
          %v1039 = vsub.f32 %v549, %v1038
          %1040 = vmatpush1.msra.mxu0 %v1039
          %1041 = vmatprep.subr.mxu0 0.0
          %1042 = vmatpush1.msra.mxu0 0.0
          %1043 = vmatprep.subr.mxu0 0.0
          %1044 = vmatpush1.msra.mxu0 0.0
          %1045 = vmatprep.subr.mxu0 0.0
          %1046 = vmatpush1.msra.mxu0 0.0
          %1047 = vmatprep.subr.mxu0 0.0
          %1048 = vmatpush1.msra.mxu0 0.0
          %1049 = vmatprep.subr.mxu0 0.0
          %1050 = vmatpush1.msra.mxu0 0.0
          %1051 = vmatprep.subr.mxu0 0.0
          %1052 = vmatpush1.msra.mxu0 0.0
          %1053 = vmatprep.subr.mxu0 0.0
          %1054 = vmatpush1.msra.mxu0 0.0
          %1055 = vmatprep.subr.mxu0 0.0
          %1056 = vmatpush1.msra.mxu0 0.0
          %1057 = vmatprep.subr.mxu0 0.0
          %1058 = vmatpush1.msra.mxu0 0.0
          %1059 = vmatprep.subr.mxu0 0.0
          %1060 = vmatpush1.msra.mxu0 0.0
          %1061 = vmatprep.subr.mxu0 0.0
          %1062 = vmatpush1.msra.mxu0 0.0
          %1063 = vmatprep.subr.mxu0 0.0
          %1064 = vmatpush1.msra.mxu0 0.0
          %1065 = vmatprep.subr.mxu0 0.0
          %1066 = vmatpush1.msra.mxu0 0.0
          %1067 = vmatprep.subr.mxu0 0.0
          %1068 = vmatpush1.msra.mxu0 0.0
          %1069 = vmatprep.subr.mxu0 0.0
          %1070 = vmatpush1.msra.mxu0 0.0
          %1071 = vmatprep.subr.mxu0 0.0
          %1072 = vmatpush1.msra.mxu0 0.0
          %1073 = vmatprep.subr.mxu0 0.0
          %1074 = vmatpush1.msra.mxu0 0.0
          %1075 = vmatprep.subr.mxu0 0.0
          %1076 = vmatpush1.msra.mxu0 0.0
          %1077 = vmatprep.subr.mxu0 0.0
          %1078 = vmatpush1.msra.mxu0 0.0
          %1079 = vmatprep.subr.mxu0 0.0
          %1080 = vmatpush1.msra.mxu0 0.0
          %1081 = vmatprep.subr.mxu0 0.0
          %1082 = vmatpush1.msra.mxu0 0.0
          %1083 = vmatprep.subr.mxu0 0.0
          %1084 = vmatpush1.msra.mxu0 0.0
          %1085 = vmatprep.subr.mxu0 0.0
          %1086 = vmatpush1.msra.mxu0 0.0
          %1087 = vmatprep.subr.mxu0 0.0
          %1088 = vmatpush1.msra.mxu0 0.0
          %1089 = vmatprep.subr.mxu0 0.0
          %1090 = vmatpush1.msra.mxu0 0.0
          %1091 = vmatprep.subr.mxu0 0.0
          %1092 = vmatpush1.msra.mxu0 0.0
          %1093 = vmatprep.subr.mxu0 0.0
          %1094 = vmatpush1.msra.mxu0 0.0
          %1095 = vmatprep.subr.mxu0 0.0
          %1096 = vmatpush1.msra.mxu0 0.0
          %1097 = vmatprep.mubr.f32.mxu0 0.0
          %v1098 = vand.u32 %v568, 4294901760
          %v1099 = vsub.f32 %v568, %v1098
          %1100 = vmatmul.mubr.f32.gmra.mrb[0].mxu0 %v1099
          %v1101 = vpop.f32.mrb[0].mxu0
          %v1102 = vadd.f32 %v932, %v1101
          %v1103 = vpop.f32.mrb[0].mxu0
          %1104 = vmatprep.mubr.f32.mxu0 0.0
          %v1105 = vand.u32 %v571, 4294901760
          %v1106 = vsub.f32 %v571, %v1105
          %1107 = vmatmul.mubr.f32.gmra.mrb[0].mxu0 %v1106
          %v1108 = vpop.f32.mrb[0].mxu0
          %v1109 = vadd.f32 %v938, %v1108
          %v1110 = vpop.f32.mrb[0].mxu0
          %1111 = vmatprep.mubr.f32.mxu0 0.0
          %v1112 = vand.u32 %v574, 4294901760
          %v1113 = vsub.f32 %v574, %v1112
          %1114 = vmatmul.mubr.f32.gmra.mrb[0].mxu0 %v1113
          %v1115 = vpop.f32.mrb[0].mxu0
          %v1116 = vadd.f32 %v944, %v1115
          %v1117 = vpop.f32.mrb[0].mxu0
          %1118 = vmatprep.mubr.f32.mxu0 0.0
          %v1119 = vand.u32 %v577, 4294901760
          %v1120 = vsub.f32 %v577, %v1119
          %1121 = vmatmul.mubr.f32.gmra.mrb[0].mxu0 %v1120
          %v1122 = vpop.f32.mrb[0].mxu0
          %v1123 = vadd.f32 %v950, %v1122
          %v1124 = vpop.f32.mrb[0].mxu0
          %1125 = vmatprep.mubr.f32.mxu0 0.0
          %v1126 = vand.u32 %v580, 4294901760
          %v1127 = vsub.f32 %v580, %v1126
          %1128 = vmatmul.mubr.f32.gmra.mrb[0].mxu0 %v1127
          %v1129 = vpop.f32.mrb[0].mxu0
          %v1130 = vadd.f32 %v956, %v1129
          %v1131 = vpop.f32.mrb[0].mxu0
          %1132 = vmatprep.mubr.f32.mxu0 0.0
          %v1133 = vand.u32 %v583, 4294901760
          %v1134 = vsub.f32 %v583, %v1133
          %1135 = vmatmul.mubr.f32.gmra.mrb[0].mxu0 %v1134
          %v1136 = vpop.f32.mrb[0].mxu0
          %v1137 = vadd.f32 %v962, %v1136
          %v1138 = vpop.f32.mrb[0].mxu0
          %1139 = vmatprep.mubr.f32.mxu0 0.0
          %v1140 = vand.u32 %v586, 4294901760
          %v1141 = vsub.f32 %v586, %v1140
          %1142 = vmatmul.mubr.f32.gmra.mrb[0].mxu0 %v1141
          %v1143 = vpop.f32.mrb[0].mxu0
          %v1144 = vadd.f32 %v968, %v1143
          %v1145 = vpop.f32.mrb[0].mxu0
          %1146 = vmatprep.mubr.f32.mxu0 0.0
          %v1147 = vand.u32 %v589, 4294901760
          %v1148 = vsub.f32 %v589, %v1147
          %1149 = vmatmul.mubr.f32.gmra.mrb[0].mxu0 %v1148
          %v1150 = vpop.f32.mrb[0].mxu0
          %v1151 = vadd.f32 %v974, %v1150
          %v1152 = vpop.f32.mrb[0].mxu0
          %1153 = vmatprep.mubr.f32.mxu0 0.0
          %v1154 = vand.u32 %v592, 4294901760
          %v1155 = vsub.f32 %v592, %v1154
          %1156 = vmatmul.mubr.f32.gmra.mrb[0].mxu0 %v1155
          %v1157 = vpop.f32.mrb[0].mxu0
          %v1158 = vadd.f32 %v980, %v1157
          %v1159 = vpop.f32.mrb[0].mxu0
          %1160 = vmatprep.mubr.f32.mxu0 0.0
          %v1161 = vand.u32 %v595, 4294901760
          %v1162 = vsub.f32 %v595, %v1161
          %1163 = vmatmul.mubr.f32.gmra.mrb[0].mxu0 %v1162
          %v1164 = vpop.f32.mrb[0].mxu0
          %v1165 = vadd.f32 %v986, %v1164
          %v1166 = vpop.f32.mrb[0].mxu0
          %1167 = vmatprep.mubr.f32.mxu0 0.0
          %v1168 = vand.u32 %v598, 4294901760
          %v1169 = vsub.f32 %v598, %v1168
          %1170 = vmatmul.mubr.f32.gmra.mrb[0].mxu0 %v1169
          %v1171 = vpop.f32.mrb[0].mxu0
          %v1172 = vadd.f32 %v992, %v1171
          %v1173 = vpop.f32.mrb[0].mxu0
          %1174 = vmatprep.mubr.f32.mxu0 0.0
          %v1175 = vand.u32 %v601, 4294901760
          %v1176 = vsub.f32 %v601, %v1175
          %1177 = vmatmul.mubr.f32.gmra.mrb[0].mxu0 %v1176
          %v1178 = vpop.f32.mrb[0].mxu0
          %v1179 = vadd.f32 %v998, %v1178
          %v1180 = vpop.f32.mrb[0].mxu0
          %1181 = vmatprep.mubr.f32.mxu0 0.0
          %v1182 = vand.u32 %v604, 4294901760
          %v1183 = vsub.f32 %v604, %v1182
          %1184 = vmatmul.mubr.f32.gmra.mrb[0].mxu0 %v1183
          %v1185 = vpop.f32.mrb[0].mxu0
          %v1186 = vadd.f32 %v1004, %v1185
          %v1187 = vpop.f32.mrb[0].mxu0
          %1188 = vmatprep.mubr.f32.mxu0 0.0
          %v1189 = vand.u32 %v607, 4294901760
          %v1190 = vsub.f32 %v607, %v1189
          %1191 = vmatmul.mubr.f32.gmra.mrb[0].mxu0 %v1190
          %v1192 = vpop.f32.mrb[0].mxu0
          %v1193 = vadd.f32 %v1010, %v1192
          %v1194 = vpop.f32.mrb[0].mxu0
          %1195 = vmatprep.mubr.f32.mxu0 0.0
          %v1196 = vand.u32 %v610, 4294901760
          %v1197 = vsub.f32 %v610, %v1196
          %1198 = vmatmul.mubr.f32.gmra.mrb[0].mxu0 %v1197
          %v1199 = vpop.f32.mrb[0].mxu0
          %v1200 = vadd.f32 %v1016, %v1199
          %v1201 = vpop.f32.mrb[0].mxu0
          %1202 = vmatprep.mubr.f32.mxu0 0.0
          %v1203 = vand.u32 %v613, 4294901760
          %v1204 = vsub.f32 %v613, %v1203
          %1205 = vmatmul.mubr.f32.gmra.mrb[0].mxu0 %v1204
          %v1206 = vpop.f32.mrb[0].mxu0
          %v1207 = vadd.f32 %v1022, %v1206
          %v1208 = vpop.f32.mrb[0].mxu0
          %1209 = vdwg.mxu0
          %1210 = vmatprep.subr.mxu0 0.0
          %v1211 = vand.u32 %v546, 4294901760
          %1212 = vmatpush1.msra.mxu0 %v1211
          %1213 = vmatprep.subr.mxu0 0.0
          %v1214 = vand.u32 %v547, 4294901760
          %1215 = vmatpush1.msra.mxu0 %v1214
          %1216 = vmatprep.subr.mxu0 0.0
          %v1217 = vand.u32 %v548, 4294901760
          %1218 = vmatpush1.msra.mxu0 %v1217
          %1219 = vmatprep.subr.mxu0 0.0
          %v1220 = vand.u32 %v549, 4294901760
          %1221 = vmatpush1.msra.mxu0 %v1220
          %1222 = vmatprep.subr.mxu0 0.0
          %1223 = vmatpush1.msra.mxu0 0.0
          %1224 = vmatprep.subr.mxu0 0.0
          %1225 = vmatpush1.msra.mxu0 0.0
          %1226 = vmatprep.subr.mxu0 0.0
          %1227 = vmatpush1.msra.mxu0 0.0
          %1228 = vmatprep.subr.mxu0 0.0
          %1229 = vmatpush1.msra.mxu0 0.0
          %1230 = vmatprep.subr.mxu0 0.0
          %1231 = vmatpush1.msra.mxu0 0.0
          %1232 = vmatprep.subr.mxu0 0.0
          %1233 = vmatpush1.msra.mxu0 0.0
          %1234 = vmatprep.subr.mxu0 0.0
          %1235 = vmatpush1.msra.mxu0 0.0
          %1236 = vmatprep.subr.mxu0 0.0
          %1237 = vmatpush1.msra.mxu0 0.0
          %1238 = vmatprep.subr.mxu0 0.0
          %1239 = vmatpush1.msra.mxu0 0.0
          %1240 = vmatprep.subr.mxu0 0.0
          %1241 = vmatpush1.msra.mxu0 0.0
          %1242 = vmatprep.subr.mxu0 0.0
          %1243 = vmatpush1.msra.mxu0 0.0
          %1244 = vmatprep.subr.mxu0 0.0
          %1245 = vmatpush1.msra.mxu0 0.0
          %1246 = vmatprep.subr.mxu0 0.0
          %1247 = vmatpush1.msra.mxu0 0.0
          %1248 = vmatprep.subr.mxu0 0.0
          %1249 = vmatpush1.msra.mxu0 0.0
          %1250 = vmatprep.subr.mxu0 0.0
          %1251 = vmatpush1.msra.mxu0 0.0
          %1252 = vmatprep.subr.mxu0 0.0
          %1253 = vmatpush1.msra.mxu0 0.0
          %1254 = vmatprep.subr.mxu0 0.0
          %1255 = vmatpush1.msra.mxu0 0.0
          %1256 = vmatprep.subr.mxu0 0.0
          %1257 = vmatpush1.msra.mxu0 0.0
          %1258 = vmatprep.subr.mxu0 0.0
          %1259 = vmatpush1.msra.mxu0 0.0
          %1260 = vmatprep.subr.mxu0 0.0
          %1261 = vmatpush1.msra.mxu0 0.0
          %1262 = vmatprep.subr.mxu0 0.0
          %1263 = vmatpush1.msra.mxu0 0.0
          %1264 = vmatprep.subr.mxu0 0.0
          %1265 = vmatpush1.msra.mxu0 0.0
          %1266 = vmatprep.subr.mxu0 0.0
          %1267 = vmatpush1.msra.mxu0 0.0
          %1268 = vmatprep.subr.mxu0 0.0
          %1269 = vmatpush1.msra.mxu0 0.0
          %1270 = vmatprep.subr.mxu0 0.0
          %1271 = vmatpush1.msra.mxu0 0.0
          %1272 = vmatprep.subr.mxu0 0.0
          %1273 = vmatpush1.msra.mxu0 0.0
          %1274 = vmatprep.subr.mxu0 0.0
          %1275 = vmatpush1.msra.mxu0 0.0
          %1276 = vmatprep.subr.mxu0 0.0
          %1277 = vmatpush1.msra.mxu0 0.0
          %1278 = vmatprep.mubr.f32.mxu0 0.0
          %v1279 = vand.u32 %v568, 4294901760
          %v1280 = vsub.f32 %v568, %v1279
          %v1281 = vand.u32 %v1280, 4294901760
          %1282 = vmatmul.mubr.f32.gmra.mrb[0].mxu0 %v1281
          %v1283 = vpop.f32.mrb[0].mxu0
          %v1284 = vadd.f32 %v1102, %v1283
          %v1285 = vpop.f32.mrb[0].mxu0
          %1286 = vmatprep.mubr.f32.mxu0 0.0
          %v1287 = vand.u32 %v571, 4294901760
          %v1288 = vsub.f32 %v571, %v1287
          %v1289 = vand.u32 %v1288, 4294901760
          %1290 = vmatmul.mubr.f32.gmra.mrb[0].mxu0 %v1289
          %v1291 = vpop.f32.mrb[0].mxu0
          %v1292 = vadd.f32 %v1109, %v1291
          %v1293 = vpop.f32.mrb[0].mxu0
          %1294 = vmatprep.mubr.f32.mxu0 0.0
          %v1295 = vand.u32 %v574, 4294901760
          %v1296 = vsub.f32 %v574, %v1295
          %v1297 = vand.u32 %v1296, 4294901760
          %1298 = vmatmul.mubr.f32.gmra.mrb[0].mxu0 %v1297
          %v1299 = vpop.f32.mrb[0].mxu0
          %v1300 = vadd.f32 %v1116, %v1299
          %v1301 = vpop.f32.mrb[0].mxu0
          %1302 = vmatprep.mubr.f32.mxu0 0.0
          %v1303 = vand.u32 %v577, 4294901760
          %v1304 = vsub.f32 %v577, %v1303
          %v1305 = vand.u32 %v1304, 4294901760
          %1306 = vmatmul.mubr.f32.gmra.mrb[0].mxu0 %v1305
          %v1307 = vpop.f32.mrb[0].mxu0
          %v1308 = vadd.f32 %v1123, %v1307
          %v1309 = vpop.f32.mrb[0].mxu0
          %1310 = vmatprep.mubr.f32.mxu0 0.0
          %v1311 = vand.u32 %v580, 4294901760
          %v1312 = vsub.f32 %v580, %v1311
          %v1313 = vand.u32 %v1312, 4294901760
          %1314 = vmatmul.mubr.f32.gmra.mrb[0].mxu0 %v1313
          %v1315 = vpop.f32.mrb[0].mxu0
          %v1316 = vadd.f32 %v1130, %v1315
          %v1317 = vpop.f32.mrb[0].mxu0
          %1318 = vmatprep.mubr.f32.mxu0 0.0
          %v1319 = vand.u32 %v583, 4294901760
          %v1320 = vsub.f32 %v583, %v1319
          %v1321 = vand.u32 %v1320, 4294901760
          %1322 = vmatmul.mubr.f32.gmra.mrb[0].mxu0 %v1321
          %v1323 = vpop.f32.mrb[0].mxu0
          %v1324 = vadd.f32 %v1137, %v1323
          %v1325 = vpop.f32.mrb[0].mxu0
          %1326 = vmatprep.mubr.f32.mxu0 0.0
          %v1327 = vand.u32 %v586, 4294901760
          %v1328 = vsub.f32 %v586, %v1327
          %v1329 = vand.u32 %v1328, 4294901760
          %1330 = vmatmul.mubr.f32.gmra.mrb[0].mxu0 %v1329
          %v1331 = vpop.f32.mrb[0].mxu0
          %v1332 = vadd.f32 %v1144, %v1331
          %v1333 = vpop.f32.mrb[0].mxu0
          %1334 = vmatprep.mubr.f32.mxu0 0.0
          %v1335 = vand.u32 %v589, 4294901760
          %v1336 = vsub.f32 %v589, %v1335
          %v1337 = vand.u32 %v1336, 4294901760
          %1338 = vmatmul.mubr.f32.gmra.mrb[0].mxu0 %v1337
          %v1339 = vpop.f32.mrb[0].mxu0
          %v1340 = vadd.f32 %v1151, %v1339
          %v1341 = vpop.f32.mrb[0].mxu0
          %1342 = vmatprep.mubr.f32.mxu0 0.0
          %v1343 = vand.u32 %v592, 4294901760
          %v1344 = vsub.f32 %v592, %v1343
          %v1345 = vand.u32 %v1344, 4294901760
          %1346 = vmatmul.mubr.f32.gmra.mrb[0].mxu0 %v1345
          %v1347 = vpop.f32.mrb[0].mxu0
          %v1348 = vadd.f32 %v1158, %v1347
          %v1349 = vpop.f32.mrb[0].mxu0
          %1350 = vmatprep.mubr.f32.mxu0 0.0
          %v1351 = vand.u32 %v595, 4294901760
          %v1352 = vsub.f32 %v595, %v1351
          %v1353 = vand.u32 %v1352, 4294901760
          %1354 = vmatmul.mubr.f32.gmra.mrb[0].mxu0 %v1353
          %v1355 = vpop.f32.mrb[0].mxu0
          %v1356 = vadd.f32 %v1165, %v1355
          %v1357 = vpop.f32.mrb[0].mxu0
          %1358 = vmatprep.mubr.f32.mxu0 0.0
          %v1359 = vand.u32 %v598, 4294901760
          %v1360 = vsub.f32 %v598, %v1359
          %v1361 = vand.u32 %v1360, 4294901760
          %1362 = vmatmul.mubr.f32.gmra.mrb[0].mxu0 %v1361
          %v1363 = vpop.f32.mrb[0].mxu0
          %v1364 = vadd.f32 %v1172, %v1363
          %v1365 = vpop.f32.mrb[0].mxu0
          %1366 = vmatprep.mubr.f32.mxu0 0.0
          %v1367 = vand.u32 %v601, 4294901760
          %v1368 = vsub.f32 %v601, %v1367
          %v1369 = vand.u32 %v1368, 4294901760
          %1370 = vmatmul.mubr.f32.gmra.mrb[0].mxu0 %v1369
          %v1371 = vpop.f32.mrb[0].mxu0
          %v1372 = vadd.f32 %v1179, %v1371
          %v1373 = vpop.f32.mrb[0].mxu0
          %1374 = vmatprep.mubr.f32.mxu0 0.0
          %v1375 = vand.u32 %v604, 4294901760
          %v1376 = vsub.f32 %v604, %v1375
          %v1377 = vand.u32 %v1376, 4294901760
          %1378 = vmatmul.mubr.f32.gmra.mrb[0].mxu0 %v1377
          %v1379 = vpop.f32.mrb[0].mxu0
          %v1380 = vadd.f32 %v1186, %v1379
          %v1381 = vpop.f32.mrb[0].mxu0
          %1382 = vmatprep.mubr.f32.mxu0 0.0
          %v1383 = vand.u32 %v607, 4294901760
          %v1384 = vsub.f32 %v607, %v1383
          %v1385 = vand.u32 %v1384, 4294901760
          %1386 = vmatmul.mubr.f32.gmra.mrb[0].mxu0 %v1385
          %v1387 = vpop.f32.mrb[0].mxu0
          %v1388 = vadd.f32 %v1193, %v1387
          %v1389 = vpop.f32.mrb[0].mxu0
          %1390 = vmatprep.mubr.f32.mxu0 0.0
          %v1391 = vand.u32 %v610, 4294901760
          %v1392 = vsub.f32 %v610, %v1391
          %v1393 = vand.u32 %v1392, 4294901760
          %1394 = vmatmul.mubr.f32.gmra.mrb[0].mxu0 %v1393
          %v1395 = vpop.f32.mrb[0].mxu0
          %v1396 = vadd.f32 %v1200, %v1395
          %v1397 = vpop.f32.mrb[0].mxu0
          %1398 = vmatprep.mubr.f32.mxu0 0.0
          %v1399 = vand.u32 %v613, 4294901760
          %v1400 = vsub.f32 %v613, %v1399
          %v1401 = vand.u32 %v1400, 4294901760
          %1402 = vmatmul.mubr.f32.gmra.mrb[0].mxu0 %v1401
          %v1403 = vpop.f32.mrb[0].mxu0
          %v1404 = vadd.f32 %v1207, %v1403
          %v1405 = vpop.f32.mrb[0].mxu0
          %1406 = vdwg.mxu0
          %1407 = vmatprep.subr.mxu0 0.0
          %v1408 = vand.u32 %v546, 4294901760
          %v1409 = vsub.f32 %v546, %v1408
          %v1410 = vand.u32 %v1409, 4294901760
          %1411 = vmatpush1.msra.mxu0 %v1410
          %1412 = vmatprep.subr.mxu0 0.0
          %v1413 = vand.u32 %v547, 4294901760
          %v1414 = vsub.f32 %v547, %v1413
          %v1415 = vand.u32 %v1414, 4294901760
          %1416 = vmatpush1.msra.mxu0 %v1415
          %1417 = vmatprep.subr.mxu0 0.0
          %v1418 = vand.u32 %v548, 4294901760
          %v1419 = vsub.f32 %v548, %v1418
          %v1420 = vand.u32 %v1419, 4294901760
          %1421 = vmatpush1.msra.mxu0 %v1420
          %1422 = vmatprep.subr.mxu0 0.0
          %v1423 = vand.u32 %v549, 4294901760
          %v1424 = vsub.f32 %v549, %v1423
          %v1425 = vand.u32 %v1424, 4294901760
          %1426 = vmatpush1.msra.mxu0 %v1425
          %1427 = vmatprep.subr.mxu0 0.0
          %1428 = vmatpush1.msra.mxu0 0.0
          %1429 = vmatprep.subr.mxu0 0.0
          %1430 = vmatpush1.msra.mxu0 0.0
          %1431 = vmatprep.subr.mxu0 0.0
          %1432 = vmatpush1.msra.mxu0 0.0
          %1433 = vmatprep.subr.mxu0 0.0
          %1434 = vmatpush1.msra.mxu0 0.0
          %1435 = vmatprep.subr.mxu0 0.0
          %1436 = vmatpush1.msra.mxu0 0.0
          %1437 = vmatprep.subr.mxu0 0.0
          %1438 = vmatpush1.msra.mxu0 0.0
          %1439 = vmatprep.subr.mxu0 0.0
          %1440 = vmatpush1.msra.mxu0 0.0
          %1441 = vmatprep.subr.mxu0 0.0
          %1442 = vmatpush1.msra.mxu0 0.0
          %1443 = vmatprep.subr.mxu0 0.0
          %1444 = vmatpush1.msra.mxu0 0.0
          %1445 = vmatprep.subr.mxu0 0.0
          %1446 = vmatpush1.msra.mxu0 0.0
          %1447 = vmatprep.subr.mxu0 0.0
          %1448 = vmatpush1.msra.mxu0 0.0
          %1449 = vmatprep.subr.mxu0 0.0
          %1450 = vmatpush1.msra.mxu0 0.0
          %1451 = vmatprep.subr.mxu0 0.0
          %1452 = vmatpush1.msra.mxu0 0.0
          %1453 = vmatprep.subr.mxu0 0.0
          %1454 = vmatpush1.msra.mxu0 0.0
          %1455 = vmatprep.subr.mxu0 0.0
          %1456 = vmatpush1.msra.mxu0 0.0
          %1457 = vmatprep.subr.mxu0 0.0
          %1458 = vmatpush1.msra.mxu0 0.0
          %1459 = vmatprep.subr.mxu0 0.0
          %1460 = vmatpush1.msra.mxu0 0.0
          %1461 = vmatprep.subr.mxu0 0.0
          %1462 = vmatpush1.msra.mxu0 0.0
          %1463 = vmatprep.subr.mxu0 0.0
          %1464 = vmatpush1.msra.mxu0 0.0
          %1465 = vmatprep.subr.mxu0 0.0
          %1466 = vmatpush1.msra.mxu0 0.0
          %1467 = vmatprep.subr.mxu0 0.0
          %1468 = vmatpush1.msra.mxu0 0.0
          %1469 = vmatprep.subr.mxu0 0.0
          %1470 = vmatpush1.msra.mxu0 0.0
          %1471 = vmatprep.subr.mxu0 0.0
          %1472 = vmatpush1.msra.mxu0 0.0
          %1473 = vmatprep.subr.mxu0 0.0
          %1474 = vmatpush1.msra.mxu0 0.0
          %1475 = vmatprep.subr.mxu0 0.0
          %1476 = vmatpush1.msra.mxu0 0.0
          %1477 = vmatprep.subr.mxu0 0.0
          %1478 = vmatpush1.msra.mxu0 0.0
          %1479 = vmatprep.subr.mxu0 0.0
          %1480 = vmatpush1.msra.mxu0 0.0
          %1481 = vmatprep.subr.mxu0 0.0
          %1482 = vmatpush1.msra.mxu0 0.0
          %1483 = vmatprep.mubr.f32.mxu0 0.0
          %v1484 = vand.u32 %v568, 4294901760
          %1485 = vmatmul.mubr.f32.gmra.mrb[0].mxu0 %v1484
          %v1486 = vpop.f32.mrb[0].mxu0
          %v1487 = vadd.f32 %v1284, %v1486
          %v1488 = vpop.f32.mrb[0].mxu0
          %1489 = vmatprep.mubr.f32.mxu0 0.0
          %v1490 = vand.u32 %v571, 4294901760
          %1491 = vmatmul.mubr.f32.gmra.mrb[0].mxu0 %v1490
          %v1492 = vpop.f32.mrb[0].mxu0
          %v1493 = vadd.f32 %v1292, %v1492
          %v1494 = vpop.f32.mrb[0].mxu0
          %1495 = vmatprep.mubr.f32.mxu0 0.0
          %v1496 = vand.u32 %v574, 4294901760
          %1497 = vmatmul.mubr.f32.gmra.mrb[0].mxu0 %v1496
          %v1498 = vpop.f32.mrb[0].mxu0
          %v1499 = vadd.f32 %v1300, %v1498
          %v1500 = vpop.f32.mrb[0].mxu0
          %1501 = vmatprep.mubr.f32.mxu0 0.0
          %v1502 = vand.u32 %v577, 4294901760
          %1503 = vmatmul.mubr.f32.gmra.mrb[0].mxu0 %v1502
          %v1504 = vpop.f32.mrb[0].mxu0
          %v1505 = vadd.f32 %v1308, %v1504
          %v1506 = vpop.f32.mrb[0].mxu0
          %1507 = vmatprep.mubr.f32.mxu0 0.0
          %v1508 = vand.u32 %v580, 4294901760
          %1509 = vmatmul.mubr.f32.gmra.mrb[0].mxu0 %v1508
          %v1510 = vpop.f32.mrb[0].mxu0
          %v1511 = vadd.f32 %v1316, %v1510
          %v1512 = vpop.f32.mrb[0].mxu0
          %1513 = vmatprep.mubr.f32.mxu0 0.0
          %v1514 = vand.u32 %v583, 4294901760
          %1515 = vmatmul.mubr.f32.gmra.mrb[0].mxu0 %v1514
          %v1516 = vpop.f32.mrb[0].mxu0
          %v1517 = vadd.f32 %v1324, %v1516
          %v1518 = vpop.f32.mrb[0].mxu0
          %1519 = vmatprep.mubr.f32.mxu0 0.0
          %v1520 = vand.u32 %v586, 4294901760
          %1521 = vmatmul.mubr.f32.gmra.mrb[0].mxu0 %v1520
          %v1522 = vpop.f32.mrb[0].mxu0
          %v1523 = vadd.f32 %v1332, %v1522
          %v1524 = vpop.f32.mrb[0].mxu0
          %1525 = vmatprep.mubr.f32.mxu0 0.0
          %v1526 = vand.u32 %v589, 4294901760
          %1527 = vmatmul.mubr.f32.gmra.mrb[0].mxu0 %v1526
          %v1528 = vpop.f32.mrb[0].mxu0
          %v1529 = vadd.f32 %v1340, %v1528
          %v1530 = vpop.f32.mrb[0].mxu0
          %1531 = vmatprep.mubr.f32.mxu0 0.0
          %v1532 = vand.u32 %v592, 4294901760
          %1533 = vmatmul.mubr.f32.gmra.mrb[0].mxu0 %v1532
          %v1534 = vpop.f32.mrb[0].mxu0
          %v1535 = vadd.f32 %v1348, %v1534
          %v1536 = vpop.f32.mrb[0].mxu0
          %1537 = vmatprep.mubr.f32.mxu0 0.0
          %v1538 = vand.u32 %v595, 4294901760
          %1539 = vmatmul.mubr.f32.gmra.mrb[0].mxu0 %v1538
          %v1540 = vpop.f32.mrb[0].mxu0
          %v1541 = vadd.f32 %v1356, %v1540
          %v1542 = vpop.f32.mrb[0].mxu0
          %1543 = vmatprep.mubr.f32.mxu0 0.0
          %v1544 = vand.u32 %v598, 4294901760
          %1545 = vmatmul.mubr.f32.gmra.mrb[0].mxu0 %v1544
          %v1546 = vpop.f32.mrb[0].mxu0
          %v1547 = vadd.f32 %v1364, %v1546
          %v1548 = vpop.f32.mrb[0].mxu0
          %1549 = vmatprep.mubr.f32.mxu0 0.0
          %v1550 = vand.u32 %v601, 4294901760
          %1551 = vmatmul.mubr.f32.gmra.mrb[0].mxu0 %v1550
          %v1552 = vpop.f32.mrb[0].mxu0
          %v1553 = vadd.f32 %v1372, %v1552
          %v1554 = vpop.f32.mrb[0].mxu0
          %1555 = vmatprep.mubr.f32.mxu0 0.0
          %v1556 = vand.u32 %v604, 4294901760
          %1557 = vmatmul.mubr.f32.gmra.mrb[0].mxu0 %v1556
          %v1558 = vpop.f32.mrb[0].mxu0
          %v1559 = vadd.f32 %v1380, %v1558
          %v1560 = vpop.f32.mrb[0].mxu0
          %1561 = vmatprep.mubr.f32.mxu0 0.0
          %v1562 = vand.u32 %v607, 4294901760
          %1563 = vmatmul.mubr.f32.gmra.mrb[0].mxu0 %v1562
          %v1564 = vpop.f32.mrb[0].mxu0
          %v1565 = vadd.f32 %v1388, %v1564
          %v1566 = vpop.f32.mrb[0].mxu0
          %1567 = vmatprep.mubr.f32.mxu0 0.0
          %v1568 = vand.u32 %v610, 4294901760
          %1569 = vmatmul.mubr.f32.gmra.mrb[0].mxu0 %v1568
          %v1570 = vpop.f32.mrb[0].mxu0
          %v1571 = vadd.f32 %v1396, %v1570
          %v1572 = vpop.f32.mrb[0].mxu0
          %1573 = vmatprep.mubr.f32.mxu0 0.0
          %v1574 = vand.u32 %v613, 4294901760
          %1575 = vmatmul.mubr.f32.gmra.mrb[0].mxu0 %v1574
          %v1576 = vpop.f32.mrb[0].mxu0
          %v1577 = vadd.f32 %v1404, %v1576
          %v1578 = vpop.f32.mrb[0].mxu0
          %1579 = vdwg.mxu0
          %1580 = vmatprep.subr.mxu0 0.0
          %v1581 = vand.u32 %v546, 4294901760
          %1582 = vmatpush1.msra.mxu0 %v1581
          %1583 = vmatprep.subr.mxu0 0.0
          %v1584 = vand.u32 %v547, 4294901760
          %1585 = vmatpush1.msra.mxu0 %v1584
          %1586 = vmatprep.subr.mxu0 0.0
          %v1587 = vand.u32 %v548, 4294901760
          %1588 = vmatpush1.msra.mxu0 %v1587
          %1589 = vmatprep.subr.mxu0 0.0
          %v1590 = vand.u32 %v549, 4294901760
          %1591 = vmatpush1.msra.mxu0 %v1590
          %1592 = vmatprep.subr.mxu0 0.0
          %1593 = vmatpush1.msra.mxu0 0.0
          %1594 = vmatprep.subr.mxu0 0.0
          %1595 = vmatpush1.msra.mxu0 0.0
          %1596 = vmatprep.subr.mxu0 0.0
          %1597 = vmatpush1.msra.mxu0 0.0
          %1598 = vmatprep.subr.mxu0 0.0
          %1599 = vmatpush1.msra.mxu0 0.0
          %1600 = vmatprep.subr.mxu0 0.0
          %1601 = vmatpush1.msra.mxu0 0.0
          %1602 = vmatprep.subr.mxu0 0.0
          %1603 = vmatpush1.msra.mxu0 0.0
          %1604 = vmatprep.subr.mxu0 0.0
          %1605 = vmatpush1.msra.mxu0 0.0
          %1606 = vmatprep.subr.mxu0 0.0
          %1607 = vmatpush1.msra.mxu0 0.0
          %1608 = vmatprep.subr.mxu0 0.0
          %1609 = vmatpush1.msra.mxu0 0.0
          %1610 = vmatprep.subr.mxu0 0.0
          %1611 = vmatpush1.msra.mxu0 0.0
          %1612 = vmatprep.subr.mxu0 0.0
          %1613 = vmatpush1.msra.mxu0 0.0
          %1614 = vmatprep.subr.mxu0 0.0
          %1615 = vmatpush1.msra.mxu0 0.0
          %1616 = vmatprep.subr.mxu0 0.0
          %1617 = vmatpush1.msra.mxu0 0.0
          %1618 = vmatprep.subr.mxu0 0.0
          %1619 = vmatpush1.msra.mxu0 0.0
          %1620 = vmatprep.subr.mxu0 0.0
          %1621 = vmatpush1.msra.mxu0 0.0
          %1622 = vmatprep.subr.mxu0 0.0
          %1623 = vmatpush1.msra.mxu0 0.0
          %1624 = vmatprep.subr.mxu0 0.0
          %1625 = vmatpush1.msra.mxu0 0.0
          %1626 = vmatprep.subr.mxu0 0.0
          %1627 = vmatpush1.msra.mxu0 0.0
          %1628 = vmatprep.subr.mxu0 0.0
          %1629 = vmatpush1.msra.mxu0 0.0
          %1630 = vmatprep.subr.mxu0 0.0
          %1631 = vmatpush1.msra.mxu0 0.0
          %1632 = vmatprep.subr.mxu0 0.0
          %1633 = vmatpush1.msra.mxu0 0.0
          %1634 = vmatprep.subr.mxu0 0.0
          %1635 = vmatpush1.msra.mxu0 0.0
          %1636 = vmatprep.subr.mxu0 0.0
          %1637 = vmatpush1.msra.mxu0 0.0
          %1638 = vmatprep.subr.mxu0 0.0
          %1639 = vmatpush1.msra.mxu0 0.0
          %1640 = vmatprep.subr.mxu0 0.0
          %1641 = vmatpush1.msra.mxu0 0.0
          %1642 = vmatprep.subr.mxu0 0.0
          %1643 = vmatpush1.msra.mxu0 0.0
          %1644 = vmatprep.subr.mxu0 0.0
          %1645 = vmatpush1.msra.mxu0 0.0
          %1646 = vmatprep.subr.mxu0 0.0
          %1647 = vmatpush1.msra.mxu0 0.0
          %1648 = vmatprep.mubr.f32.mxu0 0.0
          %v1649 = vand.u32 %v568, 4294901760
          %1650 = vmatmul.mubr.f32.gmra.mrb[0].mxu0 %v1649
          %v1651 = vpop.f32.mrb[0].mxu0
          %v1652 = vadd.f32 %v1487, %v1651
          %v1653 = vpop.f32.mrb[0].mxu0
          %1654 = vmatprep.mubr.f32.mxu0 0.0
          %v1655 = vand.u32 %v571, 4294901760
          %1656 = vmatmul.mubr.f32.gmra.mrb[0].mxu0 %v1655
          %v1657 = vpop.f32.mrb[0].mxu0
          %v1658 = vadd.f32 %v1493, %v1657
          %v1659 = vpop.f32.mrb[0].mxu0
          %1660 = vmatprep.mubr.f32.mxu0 0.0
          %v1661 = vand.u32 %v574, 4294901760
          %1662 = vmatmul.mubr.f32.gmra.mrb[0].mxu0 %v1661
          %v1663 = vpop.f32.mrb[0].mxu0
          %v1664 = vadd.f32 %v1499, %v1663
          %v1665 = vpop.f32.mrb[0].mxu0
          %1666 = vmatprep.mubr.f32.mxu0 0.0
          %v1667 = vand.u32 %v577, 4294901760
          %1668 = vmatmul.mubr.f32.gmra.mrb[0].mxu0 %v1667
          %v1669 = vpop.f32.mrb[0].mxu0
          %v1670 = vadd.f32 %v1505, %v1669
          %v1671 = vpop.f32.mrb[0].mxu0
          %1672 = vmatprep.mubr.f32.mxu0 0.0
          %v1673 = vand.u32 %v580, 4294901760
          %1674 = vmatmul.mubr.f32.gmra.mrb[0].mxu0 %v1673
          %v1675 = vpop.f32.mrb[0].mxu0
          %v1676 = vadd.f32 %v1511, %v1675
          %v1677 = vpop.f32.mrb[0].mxu0
          %1678 = vmatprep.mubr.f32.mxu0 0.0
          %v1679 = vand.u32 %v583, 4294901760
          %1680 = vmatmul.mubr.f32.gmra.mrb[0].mxu0 %v1679
          %v1681 = vpop.f32.mrb[0].mxu0
          %v1682 = vadd.f32 %v1517, %v1681
          %v1683 = vpop.f32.mrb[0].mxu0
          %1684 = vmatprep.mubr.f32.mxu0 0.0
          %v1685 = vand.u32 %v586, 4294901760
          %1686 = vmatmul.mubr.f32.gmra.mrb[0].mxu0 %v1685
          %v1687 = vpop.f32.mrb[0].mxu0
          %v1688 = vadd.f32 %v1523, %v1687
          %v1689 = vpop.f32.mrb[0].mxu0
          %1690 = vmatprep.mubr.f32.mxu0 0.0
          %v1691 = vand.u32 %v589, 4294901760
          %1692 = vmatmul.mubr.f32.gmra.mrb[0].mxu0 %v1691
          %v1693 = vpop.f32.mrb[0].mxu0
          %v1694 = vadd.f32 %v1529, %v1693
          %v1695 = vpop.f32.mrb[0].mxu0
          %1696 = vmatprep.mubr.f32.mxu0 0.0
          %v1697 = vand.u32 %v592, 4294901760
          %1698 = vmatmul.mubr.f32.gmra.mrb[0].mxu0 %v1697
          %v1699 = vpop.f32.mrb[0].mxu0
          %v1700 = vadd.f32 %v1535, %v1699
          %v1701 = vpop.f32.mrb[0].mxu0
          %1702 = vmatprep.mubr.f32.mxu0 0.0
          %v1703 = vand.u32 %v595, 4294901760
          %1704 = vmatmul.mubr.f32.gmra.mrb[0].mxu0 %v1703
          %v1705 = vpop.f32.mrb[0].mxu0
          %v1706 = vadd.f32 %v1541, %v1705
          %v1707 = vpop.f32.mrb[0].mxu0
          %1708 = vmatprep.mubr.f32.mxu0 0.0
          %v1709 = vand.u32 %v598, 4294901760
          %1710 = vmatmul.mubr.f32.gmra.mrb[0].mxu0 %v1709
          %v1711 = vpop.f32.mrb[0].mxu0
          %v1712 = vadd.f32 %v1547, %v1711
          %v1713 = vpop.f32.mrb[0].mxu0
          %1714 = vmatprep.mubr.f32.mxu0 0.0
          %v1715 = vand.u32 %v601, 4294901760
          %1716 = vmatmul.mubr.f32.gmra.mrb[0].mxu0 %v1715
          %v1717 = vpop.f32.mrb[0].mxu0
          %v1718 = vadd.f32 %v1553, %v1717
          %v1719 = vpop.f32.mrb[0].mxu0
          %1720 = vmatprep.mubr.f32.mxu0 0.0
          %v1721 = vand.u32 %v604, 4294901760
          %1722 = vmatmul.mubr.f32.gmra.mrb[0].mxu0 %v1721
          %v1723 = vpop.f32.mrb[0].mxu0
          %v1724 = vadd.f32 %v1559, %v1723
          %v1725 = vpop.f32.mrb[0].mxu0
          %1726 = vmatprep.mubr.f32.mxu0 0.0
          %v1727 = vand.u32 %v607, 4294901760
          %1728 = vmatmul.mubr.f32.gmra.mrb[0].mxu0 %v1727
          %v1729 = vpop.f32.mrb[0].mxu0
          %v1730 = vadd.f32 %v1565, %v1729
          %v1731 = vpop.f32.mrb[0].mxu0
          %1732 = vmatprep.mubr.f32.mxu0 0.0
          %v1733 = vand.u32 %v610, 4294901760
          %1734 = vmatmul.mubr.f32.gmra.mrb[0].mxu0 %v1733
          %v1735 = vpop.f32.mrb[0].mxu0
          %v1736 = vadd.f32 %v1571, %v1735
          %v1737 = vpop.f32.mrb[0].mxu0
          %1738 = vmatprep.mubr.f32.mxu0 0.0
          %v1739 = vand.u32 %v613, 4294901760
          %1740 = vmatmul.mubr.f32.gmra.mrb[0].mxu0 %v1739
          %v1741 = vpop.f32.mrb[0].mxu0
          %v1742 = vadd.f32 %v1577, %v1741
          %v1743 = vpop.f32.mrb[0].mxu0
          %1744 = vdwg.mxu0
          %v1745 = vadd.f32 %v550, %v1652
          %v1746 = vadd.f32 %v551, %v1658
          %v1747 = vadd.f32 %v552, %v1664
          %v1748 = vadd.f32 %v553, %v1670
          %v1749 = vadd.f32 %v554, %v1676
          %v1750 = vadd.f32 %v555, %v1682
          %v1751 = vadd.f32 %v556, %v1688
          %v1752 = vadd.f32 %v557, %v1694
          %v1753 = vadd.f32 %v558, %v1700
          %v1754 = vadd.f32 %v559, %v1706
          %v1755 = vadd.f32 %v560, %v1712
          %v1756 = vadd.f32 %v561, %v1718
          %v1757 = vadd.f32 %v562, %v1724
          %v1758 = vadd.f32 %v563, %v1730
          %v1759 = vadd.f32 %v564, %v1736
          %v1760 = vadd.f32 %v565, %v1742
          %1761 = vst.msk [vmem:[#allocation2] sm:$0xff] %vm566, %v1745
          %1762 = vst.msk [vmem:[#allocation2 + $0x8] sm:$0xff] %vm566, %v1746
          %1763 = vst.msk [vmem:[#allocation2 + $0x10] sm:$0xff] %vm566, %v1747
          %1764 = vst.msk [vmem:[#allocation2 + $0x18] sm:$0xff] %vm566, %v1748
          %1765 = vst.msk [vmem:[#allocation2 + $0x20] sm:$0xff] %vm566, %v1749
          %1766 = vst.msk [vmem:[#allocation2 + $0x28] sm:$0xff] %vm566, %v1750
          %1767 = vst.msk [vmem:[#allocation2 + $0x30] sm:$0xff] %vm566, %v1751
          %1768 = vst.msk [vmem:[#allocation2 + $0x38] sm:$0xff] %vm566, %v1752
          %1769 = vst.msk [vmem:[#allocation2 + $0x40] sm:$0xff] %vm566, %v1753
          %1770 = vst.msk [vmem:[#allocation2 + $0x48] sm:$0xff] %vm566, %v1754
          %1771 = vst.msk [vmem:[#allocation2 + $0x50] sm:$0xff] %vm566, %v1755
          %1772 = vst.msk [vmem:[#allocation2 + $0x58] sm:$0xff] %vm566, %v1756
          %1773 = vst.msk [vmem:[#allocation2 + $0x60] sm:$0xff] %vm566, %v1757
          %1774 = vst.msk [vmem:[#allocation2 + $0x68] sm:$0xff] %vm566, %v1758
          %1775 = vst.msk [vmem:[#allocation2 + $0x70] sm:$0xff] %vm566, %v1759
          %1776 = vst.msk [vmem:[#allocation2 + $0x78] sm:$0xff] %vm566, %v1760
          %v1777 = vld [vmem:[#allocation3] sm:$0xff]
          %v1778 = vld [vmem:[#allocation3 + $0x8] sm:$0xff]
          %v1779 = vld [vmem:[#allocation3 + $0x10] sm:$0xff]
          %v1780 = vld [vmem:[#allocation3 + $0x18] sm:$0xff]
          %v1781 = vld [vmem:[#allocation3 + $0x20] sm:$0xff]
          %v1782 = vld [vmem:[#allocation3 + $0x28] sm:$0xff]
          %v1783 = vld [vmem:[#allocation3 + $0x30] sm:$0xff]
          %v1784 = vld [vmem:[#allocation3 + $0x38] sm:$0xff]
          %v1785 = vld [vmem:[#allocation3 + $0x40] sm:$0xff]
          %v1786 = vld [vmem:[#allocation3 + $0x48] sm:$0xff]
          %v1787 = vld [vmem:[#allocation3 + $0x50] sm:$0xff]
          %v1788 = vld [vmem:[#allocation3 + $0x58] sm:$0xff]
          %v1789 = vld [vmem:[#allocation3 + $0x60] sm:$0xff]
          %v1790 = vld [vmem:[#allocation3 + $0x68] sm:$0xff]
          %v1791 = vld [vmem:[#allocation3 + $0x70] sm:$0xff]
          %v1792 = vld [vmem:[#allocation3 + $0x78] sm:$0xff]
          %v1793 = vmul.f32 %v546, %v546
          %v1794 = vmul.f32 %v547, %v547
          %v1795 = vmul.f32 %v548, %v548
          %v1796 = vmul.f32 %v549, %v549
          %1797 = vmatprep.subr.mxu0 0.0
          %v1798 = vand.u32 %v1793, 4294901760
          %1799 = vmatpush1.msra.mxu0 %v1798
          %1800 = vmatprep.subr.mxu0 0.0
          %v1801 = vand.u32 %v1794, 4294901760
          %1802 = vmatpush1.msra.mxu0 %v1801
          %1803 = vmatprep.subr.mxu0 0.0
          %v1804 = vand.u32 %v1795, 4294901760
          %1805 = vmatpush1.msra.mxu0 %v1804
          %1806 = vmatprep.subr.mxu0 0.0
          %v1807 = vand.u32 %v1796, 4294901760
          %1808 = vmatpush1.msra.mxu0 %v1807
          %1809 = vmatprep.subr.mxu0 0.0
          %1810 = vmatpush1.msra.mxu0 0.0
          %1811 = vmatprep.subr.mxu0 0.0
          %1812 = vmatpush1.msra.mxu0 0.0
          %1813 = vmatprep.subr.mxu0 0.0
          %1814 = vmatpush1.msra.mxu0 0.0
          %1815 = vmatprep.subr.mxu0 0.0
          %1816 = vmatpush1.msra.mxu0 0.0
          %1817 = vmatprep.subr.mxu0 0.0
          %1818 = vmatpush1.msra.mxu0 0.0
          %1819 = vmatprep.subr.mxu0 0.0
          %1820 = vmatpush1.msra.mxu0 0.0
          %1821 = vmatprep.subr.mxu0 0.0
          %1822 = vmatpush1.msra.mxu0 0.0
          %1823 = vmatprep.subr.mxu0 0.0
          %1824 = vmatpush1.msra.mxu0 0.0
          %1825 = vmatprep.subr.mxu0 0.0
          %1826 = vmatpush1.msra.mxu0 0.0
          %1827 = vmatprep.subr.mxu0 0.0
          %1828 = vmatpush1.msra.mxu0 0.0
          %1829 = vmatprep.subr.mxu0 0.0
          %1830 = vmatpush1.msra.mxu0 0.0
          %1831 = vmatprep.subr.mxu0 0.0
          %1832 = vmatpush1.msra.mxu0 0.0
          %1833 = vmatprep.subr.mxu0 0.0
          %1834 = vmatpush1.msra.mxu0 0.0
          %1835 = vmatprep.subr.mxu0 0.0
          %1836 = vmatpush1.msra.mxu0 0.0
          %1837 = vmatprep.subr.mxu0 0.0
          %1838 = vmatpush1.msra.mxu0 0.0
          %1839 = vmatprep.subr.mxu0 0.0
          %1840 = vmatpush1.msra.mxu0 0.0
          %1841 = vmatprep.subr.mxu0 0.0
          %1842 = vmatpush1.msra.mxu0 0.0
          %1843 = vmatprep.subr.mxu0 0.0
          %1844 = vmatpush1.msra.mxu0 0.0
          %1845 = vmatprep.subr.mxu0 0.0
          %1846 = vmatpush1.msra.mxu0 0.0
          %1847 = vmatprep.subr.mxu0 0.0
          %1848 = vmatpush1.msra.mxu0 0.0
          %1849 = vmatprep.subr.mxu0 0.0
          %1850 = vmatpush1.msra.mxu0 0.0
          %1851 = vmatprep.subr.mxu0 0.0
          %1852 = vmatpush1.msra.mxu0 0.0
          %1853 = vmatprep.subr.mxu0 0.0
          %1854 = vmatpush1.msra.mxu0 0.0
          %1855 = vmatprep.subr.mxu0 0.0
          %1856 = vmatpush1.msra.mxu0 0.0
          %1857 = vmatprep.subr.mxu0 0.0
          %1858 = vmatpush1.msra.mxu0 0.0
          %1859 = vmatprep.subr.mxu0 0.0
          %1860 = vmatpush1.msra.mxu0 0.0
          %1861 = vmatprep.subr.mxu0 0.0
          %1862 = vmatpush1.msra.mxu0 0.0
          %1863 = vmatprep.subr.mxu0 0.0
          %1864 = vmatpush1.msra.mxu0 0.0
          %1865 = vmatprep.mubr.f32.mxu0 0.0
          %v1866 = vand.u32 %v568, 4294901760
          %v1867 = vsub.f32 %v568, %v1866
          %v1868 = vand.u32 %v1867, 4294901760
          %v1869 = vsub.f32 %v1867, %v1868
          %v1870 = vand.u32 %v1869, 4294901760
          %1871 = vmatmul.mubr.f32.gmra.mrb[0].mxu0 %v1870
          %v1872 = vpop.f32.mrb[0].mxu0
          %v1873 = vadd.f32 0.0, %v1872
          %v1874 = vpop.f32.mrb[0].mxu0
          %1875 = vmatprep.mubr.f32.mxu0 0.0
          %v1876 = vand.u32 %v571, 4294901760
          %v1877 = vsub.f32 %v571, %v1876
          %v1878 = vand.u32 %v1877, 4294901760
          %v1879 = vsub.f32 %v1877, %v1878
          %v1880 = vand.u32 %v1879, 4294901760
          %1881 = vmatmul.mubr.f32.gmra.mrb[0].mxu0 %v1880
          %v1882 = vpop.f32.mrb[0].mxu0
          %v1883 = vadd.f32 0.0, %v1882
          %v1884 = vpop.f32.mrb[0].mxu0
          %1885 = vmatprep.mubr.f32.mxu0 0.0
          %v1886 = vand.u32 %v574, 4294901760
          %v1887 = vsub.f32 %v574, %v1886
          %v1888 = vand.u32 %v1887, 4294901760
          %v1889 = vsub.f32 %v1887, %v1888
          %v1890 = vand.u32 %v1889, 4294901760
          %1891 = vmatmul.mubr.f32.gmra.mrb[0].mxu0 %v1890
          %v1892 = vpop.f32.mrb[0].mxu0
          %v1893 = vadd.f32 0.0, %v1892
          %v1894 = vpop.f32.mrb[0].mxu0
          %1895 = vmatprep.mubr.f32.mxu0 0.0
          %v1896 = vand.u32 %v577, 4294901760
          %v1897 = vsub.f32 %v577, %v1896
          %v1898 = vand.u32 %v1897, 4294901760
          %v1899 = vsub.f32 %v1897, %v1898
          %v1900 = vand.u32 %v1899, 4294901760
          %1901 = vmatmul.mubr.f32.gmra.mrb[0].mxu0 %v1900
          %v1902 = vpop.f32.mrb[0].mxu0
          %v1903 = vadd.f32 0.0, %v1902
          %v1904 = vpop.f32.mrb[0].mxu0
          %1905 = vmatprep.mubr.f32.mxu0 0.0
          %v1906 = vand.u32 %v580, 4294901760
          %v1907 = vsub.f32 %v580, %v1906
          %v1908 = vand.u32 %v1907, 4294901760
          %v1909 = vsub.f32 %v1907, %v1908
          %v1910 = vand.u32 %v1909, 4294901760
          %1911 = vmatmul.mubr.f32.gmra.mrb[0].mxu0 %v1910
          %v1912 = vpop.f32.mrb[0].mxu0
          %v1913 = vadd.f32 0.0, %v1912
          %v1914 = vpop.f32.mrb[0].mxu0
          %1915 = vmatprep.mubr.f32.mxu0 0.0
          %v1916 = vand.u32 %v583, 4294901760
          %v1917 = vsub.f32 %v583, %v1916
          %v1918 = vand.u32 %v1917, 4294901760
          %v1919 = vsub.f32 %v1917, %v1918
          %v1920 = vand.u32 %v1919, 4294901760
          %1921 = vmatmul.mubr.f32.gmra.mrb[0].mxu0 %v1920
          %v1922 = vpop.f32.mrb[0].mxu0
          %v1923 = vadd.f32 0.0, %v1922
          %v1924 = vpop.f32.mrb[0].mxu0
          %1925 = vmatprep.mubr.f32.mxu0 0.0
          %v1926 = vand.u32 %v586, 4294901760
          %v1927 = vsub.f32 %v586, %v1926
          %v1928 = vand.u32 %v1927, 4294901760
          %v1929 = vsub.f32 %v1927, %v1928
          %v1930 = vand.u32 %v1929, 4294901760
          %1931 = vmatmul.mubr.f32.gmra.mrb[0].mxu0 %v1930
          %v1932 = vpop.f32.mrb[0].mxu0
          %v1933 = vadd.f32 0.0, %v1932
          %v1934 = vpop.f32.mrb[0].mxu0
          %1935 = vmatprep.mubr.f32.mxu0 0.0
          %v1936 = vand.u32 %v589, 4294901760
          %v1937 = vsub.f32 %v589, %v1936
          %v1938 = vand.u32 %v1937, 4294901760
          %v1939 = vsub.f32 %v1937, %v1938
          %v1940 = vand.u32 %v1939, 4294901760
          %1941 = vmatmul.mubr.f32.gmra.mrb[0].mxu0 %v1940
          %v1942 = vpop.f32.mrb[0].mxu0
          %v1943 = vadd.f32 0.0, %v1942
          %v1944 = vpop.f32.mrb[0].mxu0
          %1945 = vmatprep.mubr.f32.mxu0 0.0
          %v1946 = vand.u32 %v592, 4294901760
          %v1947 = vsub.f32 %v592, %v1946
          %v1948 = vand.u32 %v1947, 4294901760
          %v1949 = vsub.f32 %v1947, %v1948
          %v1950 = vand.u32 %v1949, 4294901760
          %1951 = vmatmul.mubr.f32.gmra.mrb[0].mxu0 %v1950
          %v1952 = vpop.f32.mrb[0].mxu0
          %v1953 = vadd.f32 0.0, %v1952
          %v1954 = vpop.f32.mrb[0].mxu0
          %1955 = vmatprep.mubr.f32.mxu0 0.0
          %v1956 = vand.u32 %v595, 4294901760
          %v1957 = vsub.f32 %v595, %v1956
          %v1958 = vand.u32 %v1957, 4294901760
          %v1959 = vsub.f32 %v1957, %v1958
          %v1960 = vand.u32 %v1959, 4294901760
          %1961 = vmatmul.mubr.f32.gmra.mrb[0].mxu0 %v1960
          %v1962 = vpop.f32.mrb[0].mxu0
          %v1963 = vadd.f32 0.0, %v1962
          %v1964 = vpop.f32.mrb[0].mxu0
          %1965 = vmatprep.mubr.f32.mxu0 0.0
          %v1966 = vand.u32 %v598, 4294901760
          %v1967 = vsub.f32 %v598, %v1966
          %v1968 = vand.u32 %v1967, 4294901760
          %v1969 = vsub.f32 %v1967, %v1968
          %v1970 = vand.u32 %v1969, 4294901760
          %1971 = vmatmul.mubr.f32.gmra.mrb[0].mxu0 %v1970
          %v1972 = vpop.f32.mrb[0].mxu0
          %v1973 = vadd.f32 0.0, %v1972
          %v1974 = vpop.f32.mrb[0].mxu0
          %1975 = vmatprep.mubr.f32.mxu0 0.0
          %v1976 = vand.u32 %v601, 4294901760
          %v1977 = vsub.f32 %v601, %v1976
          %v1978 = vand.u32 %v1977, 4294901760
          %v1979 = vsub.f32 %v1977, %v1978
          %v1980 = vand.u32 %v1979, 4294901760
          %1981 = vmatmul.mubr.f32.gmra.mrb[0].mxu0 %v1980
          %v1982 = vpop.f32.mrb[0].mxu0
          %v1983 = vadd.f32 0.0, %v1982
          %v1984 = vpop.f32.mrb[0].mxu0
          %1985 = vmatprep.mubr.f32.mxu0 0.0
          %v1986 = vand.u32 %v604, 4294901760
          %v1987 = vsub.f32 %v604, %v1986
          %v1988 = vand.u32 %v1987, 4294901760
          %v1989 = vsub.f32 %v1987, %v1988
          %v1990 = vand.u32 %v1989, 4294901760
          %1991 = vmatmul.mubr.f32.gmra.mrb[0].mxu0 %v1990
          %v1992 = vpop.f32.mrb[0].mxu0
          %v1993 = vadd.f32 0.0, %v1992
          %v1994 = vpop.f32.mrb[0].mxu0
          %1995 = vmatprep.mubr.f32.mxu0 0.0
          %v1996 = vand.u32 %v607, 4294901760
          %v1997 = vsub.f32 %v607, %v1996
          %v1998 = vand.u32 %v1997, 4294901760
          %v1999 = vsub.f32 %v1997, %v1998
          %v2000 = vand.u32 %v1999, 4294901760
          %2001 = vmatmul.mubr.f32.gmra.mrb[0].mxu0 %v2000
          %v2002 = vpop.f32.mrb[0].mxu0
          %v2003 = vadd.f32 0.0, %v2002
          %v2004 = vpop.f32.mrb[0].mxu0
          %2005 = vmatprep.mubr.f32.mxu0 0.0
          %v2006 = vand.u32 %v610, 4294901760
          %v2007 = vsub.f32 %v610, %v2006
          %v2008 = vand.u32 %v2007, 4294901760
          %v2009 = vsub.f32 %v2007, %v2008
          %v2010 = vand.u32 %v2009, 4294901760
          %2011 = vmatmul.mubr.f32.gmra.mrb[0].mxu0 %v2010
          %v2012 = vpop.f32.mrb[0].mxu0
          %v2013 = vadd.f32 0.0, %v2012
          %v2014 = vpop.f32.mrb[0].mxu0
          %2015 = vmatprep.mubr.f32.mxu0 0.0
          %v2016 = vand.u32 %v613, 4294901760
          %v2017 = vsub.f32 %v613, %v2016
          %v2018 = vand.u32 %v2017, 4294901760
          %v2019 = vsub.f32 %v2017, %v2018
          %v2020 = vand.u32 %v2019, 4294901760
          %2021 = vmatmul.mubr.f32.gmra.mrb[0].mxu0 %v2020
          %v2022 = vpop.f32.mrb[0].mxu0
          %v2023 = vadd.f32 0.0, %v2022
          %v2024 = vpop.f32.mrb[0].mxu0
          %2025 = vdwg.mxu0
          %2026 = vmatprep.subr.mxu0 0.0
          %v2027 = vand.u32 %v1793, 4294901760
          %v2028 = vsub.f32 %v1793, %v2027
          %v2029 = vand.u32 %v2028, 4294901760
          %v2030 = vsub.f32 %v2028, %v2029
          %v2031 = vand.u32 %v2030, 4294901760
          %2032 = vmatpush1.msra.mxu0 %v2031
          %2033 = vmatprep.subr.mxu0 0.0
          %v2034 = vand.u32 %v1794, 4294901760
          %v2035 = vsub.f32 %v1794, %v2034
          %v2036 = vand.u32 %v2035, 4294901760
          %v2037 = vsub.f32 %v2035, %v2036
          %v2038 = vand.u32 %v2037, 4294901760
          %2039 = vmatpush1.msra.mxu0 %v2038
          %2040 = vmatprep.subr.mxu0 0.0
          %v2041 = vand.u32 %v1795, 4294901760
          %v2042 = vsub.f32 %v1795, %v2041
          %v2043 = vand.u32 %v2042, 4294901760
          %v2044 = vsub.f32 %v2042, %v2043
          %v2045 = vand.u32 %v2044, 4294901760
          %2046 = vmatpush1.msra.mxu0 %v2045
          %2047 = vmatprep.subr.mxu0 0.0
          %v2048 = vand.u32 %v1796, 4294901760
          %v2049 = vsub.f32 %v1796, %v2048
          %v2050 = vand.u32 %v2049, 4294901760
          %v2051 = vsub.f32 %v2049, %v2050
          %v2052 = vand.u32 %v2051, 4294901760
          %2053 = vmatpush1.msra.mxu0 %v2052
          %2054 = vmatprep.subr.mxu0 0.0
          %2055 = vmatpush1.msra.mxu0 0.0
          %2056 = vmatprep.subr.mxu0 0.0
          %2057 = vmatpush1.msra.mxu0 0.0
          %2058 = vmatprep.subr.mxu0 0.0
          %2059 = vmatpush1.msra.mxu0 0.0
          %2060 = vmatprep.subr.mxu0 0.0
          %2061 = vmatpush1.msra.mxu0 0.0
          %2062 = vmatprep.subr.mxu0 0.0
          %2063 = vmatpush1.msra.mxu0 0.0
          %2064 = vmatprep.subr.mxu0 0.0
          %2065 = vmatpush1.msra.mxu0 0.0
          %2066 = vmatprep.subr.mxu0 0.0
          %2067 = vmatpush1.msra.mxu0 0.0
          %2068 = vmatprep.subr.mxu0 0.0
          %2069 = vmatpush1.msra.mxu0 0.0
          %2070 = vmatprep.subr.mxu0 0.0
          %2071 = vmatpush1.msra.mxu0 0.0
          %2072 = vmatprep.subr.mxu0 0.0
          %2073 = vmatpush1.msra.mxu0 0.0
          %2074 = vmatprep.subr.mxu0 0.0
          %2075 = vmatpush1.msra.mxu0 0.0
          %2076 = vmatprep.subr.mxu0 0.0
          %2077 = vmatpush1.msra.mxu0 0.0
          %2078 = vmatprep.subr.mxu0 0.0
          %2079 = vmatpush1.msra.mxu0 0.0
          %2080 = vmatprep.subr.mxu0 0.0
          %2081 = vmatpush1.msra.mxu0 0.0
          %2082 = vmatprep.subr.mxu0 0.0
          %2083 = vmatpush1.msra.mxu0 0.0
          %2084 = vmatprep.subr.mxu0 0.0
          %2085 = vmatpush1.msra.mxu0 0.0
          %2086 = vmatprep.subr.mxu0 0.0
          %2087 = vmatpush1.msra.mxu0 0.0
          %2088 = vmatprep.subr.mxu0 0.0
          %2089 = vmatpush1.msra.mxu0 0.0
          %2090 = vmatprep.subr.mxu0 0.0
          %2091 = vmatpush1.msra.mxu0 0.0
          %2092 = vmatprep.subr.mxu0 0.0
          %2093 = vmatpush1.msra.mxu0 0.0
          %2094 = vmatprep.subr.mxu0 0.0
          %2095 = vmatpush1.msra.mxu0 0.0
          %2096 = vmatprep.subr.mxu0 0.0
          %2097 = vmatpush1.msra.mxu0 0.0
          %2098 = vmatprep.subr.mxu0 0.0
          %2099 = vmatpush1.msra.mxu0 0.0
          %2100 = vmatprep.subr.mxu0 0.0
          %2101 = vmatpush1.msra.mxu0 0.0
          %2102 = vmatprep.subr.mxu0 0.0
          %2103 = vmatpush1.msra.mxu0 0.0
          %2104 = vmatprep.subr.mxu0 0.0
          %2105 = vmatpush1.msra.mxu0 0.0
          %2106 = vmatprep.subr.mxu0 0.0
          %2107 = vmatpush1.msra.mxu0 0.0
          %2108 = vmatprep.subr.mxu0 0.0
          %2109 = vmatpush1.msra.mxu0 0.0
          %2110 = vmatprep.mubr.f32.mxu0 0.0
          %v2111 = vand.u32 %v568, 4294901760
          %2112 = vmatmul.mubr.f32.gmra.mrb[0].mxu0 %v2111
          %v2113 = vpop.f32.mrb[0].mxu0
          %v2114 = vadd.f32 %v1873, %v2113
          %v2115 = vpop.f32.mrb[0].mxu0
          %2116 = vmatprep.mubr.f32.mxu0 0.0
          %v2117 = vand.u32 %v571, 4294901760
          %2118 = vmatmul.mubr.f32.gmra.mrb[0].mxu0 %v2117
          %v2119 = vpop.f32.mrb[0].mxu0
          %v2120 = vadd.f32 %v1883, %v2119
          %v2121 = vpop.f32.mrb[0].mxu0
          %2122 = vmatprep.mubr.f32.mxu0 0.0
          %v2123 = vand.u32 %v574, 4294901760
          %2124 = vmatmul.mubr.f32.gmra.mrb[0].mxu0 %v2123
          %v2125 = vpop.f32.mrb[0].mxu0
          %v2126 = vadd.f32 %v1893, %v2125
          %v2127 = vpop.f32.mrb[0].mxu0
          %2128 = vmatprep.mubr.f32.mxu0 0.0
          %v2129 = vand.u32 %v577, 4294901760
          %2130 = vmatmul.mubr.f32.gmra.mrb[0].mxu0 %v2129
          %v2131 = vpop.f32.mrb[0].mxu0
          %v2132 = vadd.f32 %v1903, %v2131
          %v2133 = vpop.f32.mrb[0].mxu0
          %2134 = vmatprep.mubr.f32.mxu0 0.0
          %v2135 = vand.u32 %v580, 4294901760
          %2136 = vmatmul.mubr.f32.gmra.mrb[0].mxu0 %v2135
          %v2137 = vpop.f32.mrb[0].mxu0
          %v2138 = vadd.f32 %v1913, %v2137
          %v2139 = vpop.f32.mrb[0].mxu0
          %2140 = vmatprep.mubr.f32.mxu0 0.0
          %v2141 = vand.u32 %v583, 4294901760
          %2142 = vmatmul.mubr.f32.gmra.mrb[0].mxu0 %v2141
          %v2143 = vpop.f32.mrb[0].mxu0
          %v2144 = vadd.f32 %v1923, %v2143
          %v2145 = vpop.f32.mrb[0].mxu0
          %2146 = vmatprep.mubr.f32.mxu0 0.0
          %v2147 = vand.u32 %v586, 4294901760
          %2148 = vmatmul.mubr.f32.gmra.mrb[0].mxu0 %v2147
          %v2149 = vpop.f32.mrb[0].mxu0
          %v2150 = vadd.f32 %v1933, %v2149
          %v2151 = vpop.f32.mrb[0].mxu0
          %2152 = vmatprep.mubr.f32.mxu0 0.0
          %v2153 = vand.u32 %v589, 4294901760
          %2154 = vmatmul.mubr.f32.gmra.mrb[0].mxu0 %v2153
          %v2155 = vpop.f32.mrb[0].mxu0
          %v2156 = vadd.f32 %v1943, %v2155
          %v2157 = vpop.f32.mrb[0].mxu0
          %2158 = vmatprep.mubr.f32.mxu0 0.0
          %v2159 = vand.u32 %v592, 4294901760
          %2160 = vmatmul.mubr.f32.gmra.mrb[0].mxu0 %v2159
          %v2161 = vpop.f32.mrb[0].mxu0
          %v2162 = vadd.f32 %v1953, %v2161
          %v2163 = vpop.f32.mrb[0].mxu0
          %2164 = vmatprep.mubr.f32.mxu0 0.0
          %v2165 = vand.u32 %v595, 4294901760
          %2166 = vmatmul.mubr.f32.gmra.mrb[0].mxu0 %v2165
          %v2167 = vpop.f32.mrb[0].mxu0
          %v2168 = vadd.f32 %v1963, %v2167
          %v2169 = vpop.f32.mrb[0].mxu0
          %2170 = vmatprep.mubr.f32.mxu0 0.0
          %v2171 = vand.u32 %v598, 4294901760
          %2172 = vmatmul.mubr.f32.gmra.mrb[0].mxu0 %v2171
          %v2173 = vpop.f32.mrb[0].mxu0
          %v2174 = vadd.f32 %v1973, %v2173
          %v2175 = vpop.f32.mrb[0].mxu0
          %2176 = vmatprep.mubr.f32.mxu0 0.0
          %v2177 = vand.u32 %v601, 4294901760
          %2178 = vmatmul.mubr.f32.gmra.mrb[0].mxu0 %v2177
          %v2179 = vpop.f32.mrb[0].mxu0
          %v2180 = vadd.f32 %v1983, %v2179
          %v2181 = vpop.f32.mrb[0].mxu0
          %2182 = vmatprep.mubr.f32.mxu0 0.0
          %v2183 = vand.u32 %v604, 4294901760
          %2184 = vmatmul.mubr.f32.gmra.mrb[0].mxu0 %v2183
          %v2185 = vpop.f32.mrb[0].mxu0
          %v2186 = vadd.f32 %v1993, %v2185
          %v2187 = vpop.f32.mrb[0].mxu0
          %2188 = vmatprep.mubr.f32.mxu0 0.0
          %v2189 = vand.u32 %v607, 4294901760
          %2190 = vmatmul.mubr.f32.gmra.mrb[0].mxu0 %v2189
          %v2191 = vpop.f32.mrb[0].mxu0
          %v2192 = vadd.f32 %v2003, %v2191
          %v2193 = vpop.f32.mrb[0].mxu0
          %2194 = vmatprep.mubr.f32.mxu0 0.0
          %v2195 = vand.u32 %v610, 4294901760
          %2196 = vmatmul.mubr.f32.gmra.mrb[0].mxu0 %v2195
          %v2197 = vpop.f32.mrb[0].mxu0
          %v2198 = vadd.f32 %v2013, %v2197
          %v2199 = vpop.f32.mrb[0].mxu0
          %2200 = vmatprep.mubr.f32.mxu0 0.0
          %v2201 = vand.u32 %v613, 4294901760
          %2202 = vmatmul.mubr.f32.gmra.mrb[0].mxu0 %v2201
          %v2203 = vpop.f32.mrb[0].mxu0
          %v2204 = vadd.f32 %v2023, %v2203
          %v2205 = vpop.f32.mrb[0].mxu0
          %2206 = vdwg.mxu0
          %2207 = vmatprep.subr.mxu0 0.0
          %v2208 = vand.u32 %v1793, 4294901760
          %v2209 = vsub.f32 %v1793, %v2208
          %2210 = vmatpush1.msra.mxu0 %v2209
          %2211 = vmatprep.subr.mxu0 0.0
          %v2212 = vand.u32 %v1794, 4294901760
          %v2213 = vsub.f32 %v1794, %v2212
          %2214 = vmatpush1.msra.mxu0 %v2213
          %2215 = vmatprep.subr.mxu0 0.0
          %v2216 = vand.u32 %v1795, 4294901760
          %v2217 = vsub.f32 %v1795, %v2216
          %2218 = vmatpush1.msra.mxu0 %v2217
          %2219 = vmatprep.subr.mxu0 0.0
          %v2220 = vand.u32 %v1796, 4294901760
          %v2221 = vsub.f32 %v1796, %v2220
          %2222 = vmatpush1.msra.mxu0 %v2221
          %2223 = vmatprep.subr.mxu0 0.0
          %2224 = vmatpush1.msra.mxu0 0.0
          %2225 = vmatprep.subr.mxu0 0.0
          %2226 = vmatpush1.msra.mxu0 0.0
          %2227 = vmatprep.subr.mxu0 0.0
          %2228 = vmatpush1.msra.mxu0 0.0
          %2229 = vmatprep.subr.mxu0 0.0
          %2230 = vmatpush1.msra.mxu0 0.0
          %2231 = vmatprep.subr.mxu0 0.0
          %2232 = vmatpush1.msra.mxu0 0.0
          %2233 = vmatprep.subr.mxu0 0.0
          %2234 = vmatpush1.msra.mxu0 0.0
          %2235 = vmatprep.subr.mxu0 0.0
          %2236 = vmatpush1.msra.mxu0 0.0
          %2237 = vmatprep.subr.mxu0 0.0
          %2238 = vmatpush1.msra.mxu0 0.0
          %2239 = vmatprep.subr.mxu0 0.0
          %2240 = vmatpush1.msra.mxu0 0.0
          %2241 = vmatprep.subr.mxu0 0.0
          %2242 = vmatpush1.msra.mxu0 0.0
          %2243 = vmatprep.subr.mxu0 0.0
          %2244 = vmatpush1.msra.mxu0 0.0
          %2245 = vmatprep.subr.mxu0 0.0
          %2246 = vmatpush1.msra.mxu0 0.0
          %2247 = vmatprep.subr.mxu0 0.0
          %2248 = vmatpush1.msra.mxu0 0.0
          %2249 = vmatprep.subr.mxu0 0.0
          %2250 = vmatpush1.msra.mxu0 0.0
          %2251 = vmatprep.subr.mxu0 0.0
          %2252 = vmatpush1.msra.mxu0 0.0
          %2253 = vmatprep.subr.mxu0 0.0
          %2254 = vmatpush1.msra.mxu0 0.0
          %2255 = vmatprep.subr.mxu0 0.0
          %2256 = vmatpush1.msra.mxu0 0.0
          %2257 = vmatprep.subr.mxu0 0.0
          %2258 = vmatpush1.msra.mxu0 0.0
          %2259 = vmatprep.subr.mxu0 0.0
          %2260 = vmatpush1.msra.mxu0 0.0
          %2261 = vmatprep.subr.mxu0 0.0
          %2262 = vmatpush1.msra.mxu0 0.0
          %2263 = vmatprep.subr.mxu0 0.0
          %2264 = vmatpush1.msra.mxu0 0.0
          %2265 = vmatprep.subr.mxu0 0.0
          %2266 = vmatpush1.msra.mxu0 0.0
          %2267 = vmatprep.subr.mxu0 0.0
          %2268 = vmatpush1.msra.mxu0 0.0
          %2269 = vmatprep.subr.mxu0 0.0
          %2270 = vmatpush1.msra.mxu0 0.0
          %2271 = vmatprep.subr.mxu0 0.0
          %2272 = vmatpush1.msra.mxu0 0.0
          %2273 = vmatprep.subr.mxu0 0.0
          %2274 = vmatpush1.msra.mxu0 0.0
          %2275 = vmatprep.subr.mxu0 0.0
          %2276 = vmatpush1.msra.mxu0 0.0
          %2277 = vmatprep.subr.mxu0 0.0
          %2278 = vmatpush1.msra.mxu0 0.0
          %2279 = vmatprep.mubr.f32.mxu0 0.0
          %v2280 = vand.u32 %v568, 4294901760
          %v2281 = vsub.f32 %v568, %v2280
          %2282 = vmatmul.mubr.f32.gmra.mrb[0].mxu0 %v2281
          %v2283 = vpop.f32.mrb[0].mxu0
          %v2284 = vadd.f32 %v2114, %v2283
          %v2285 = vpop.f32.mrb[0].mxu0
          %2286 = vmatprep.mubr.f32.mxu0 0.0
          %v2287 = vand.u32 %v571, 4294901760
          %v2288 = vsub.f32 %v571, %v2287
          %2289 = vmatmul.mubr.f32.gmra.mrb[0].mxu0 %v2288
          %v2290 = vpop.f32.mrb[0].mxu0
          %v2291 = vadd.f32 %v2120, %v2290
          %v2292 = vpop.f32.mrb[0].mxu0
          %2293 = vmatprep.mubr.f32.mxu0 0.0
          %v2294 = vand.u32 %v574, 4294901760
          %v2295 = vsub.f32 %v574, %v2294
          %2296 = vmatmul.mubr.f32.gmra.mrb[0].mxu0 %v2295
          %v2297 = vpop.f32.mrb[0].mxu0
          %v2298 = vadd.f32 %v2126, %v2297
          %v2299 = vpop.f32.mrb[0].mxu0
          %2300 = vmatprep.mubr.f32.mxu0 0.0
          %v2301 = vand.u32 %v577, 4294901760
          %v2302 = vsub.f32 %v577, %v2301
          %2303 = vmatmul.mubr.f32.gmra.mrb[0].mxu0 %v2302
          %v2304 = vpop.f32.mrb[0].mxu0
          %v2305 = vadd.f32 %v2132, %v2304
          %v2306 = vpop.f32.mrb[0].mxu0
          %2307 = vmatprep.mubr.f32.mxu0 0.0
          %v2308 = vand.u32 %v580, 4294901760
          %v2309 = vsub.f32 %v580, %v2308
          %2310 = vmatmul.mubr.f32.gmra.mrb[0].mxu0 %v2309
          %v2311 = vpop.f32.mrb[0].mxu0
          %v2312 = vadd.f32 %v2138, %v2311
          %v2313 = vpop.f32.mrb[0].mxu0
          %2314 = vmatprep.mubr.f32.mxu0 0.0
          %v2315 = vand.u32 %v583, 4294901760
          %v2316 = vsub.f32 %v583, %v2315
          %2317 = vmatmul.mubr.f32.gmra.mrb[0].mxu0 %v2316
          %v2318 = vpop.f32.mrb[0].mxu0
          %v2319 = vadd.f32 %v2144, %v2318
          %v2320 = vpop.f32.mrb[0].mxu0
          %2321 = vmatprep.mubr.f32.mxu0 0.0
          %v2322 = vand.u32 %v586, 4294901760
          %v2323 = vsub.f32 %v586, %v2322
          %2324 = vmatmul.mubr.f32.gmra.mrb[0].mxu0 %v2323
          %v2325 = vpop.f32.mrb[0].mxu0
          %v2326 = vadd.f32 %v2150, %v2325
          %v2327 = vpop.f32.mrb[0].mxu0
          %2328 = vmatprep.mubr.f32.mxu0 0.0
          %v2329 = vand.u32 %v589, 4294901760
          %v2330 = vsub.f32 %v589, %v2329
          %2331 = vmatmul.mubr.f32.gmra.mrb[0].mxu0 %v2330
          %v2332 = vpop.f32.mrb[0].mxu0
          %v2333 = vadd.f32 %v2156, %v2332
          %v2334 = vpop.f32.mrb[0].mxu0
          %2335 = vmatprep.mubr.f32.mxu0 0.0
          %v2336 = vand.u32 %v592, 4294901760
          %v2337 = vsub.f32 %v592, %v2336
          %2338 = vmatmul.mubr.f32.gmra.mrb[0].mxu0 %v2337
          %v2339 = vpop.f32.mrb[0].mxu0
          %v2340 = vadd.f32 %v2162, %v2339
          %v2341 = vpop.f32.mrb[0].mxu0
          %2342 = vmatprep.mubr.f32.mxu0 0.0
          %v2343 = vand.u32 %v595, 4294901760
          %v2344 = vsub.f32 %v595, %v2343
          %2345 = vmatmul.mubr.f32.gmra.mrb[0].mxu0 %v2344
          %v2346 = vpop.f32.mrb[0].mxu0
          %v2347 = vadd.f32 %v2168, %v2346
          %v2348 = vpop.f32.mrb[0].mxu0
          %2349 = vmatprep.mubr.f32.mxu0 0.0
          %v2350 = vand.u32 %v598, 4294901760
          %v2351 = vsub.f32 %v598, %v2350
          %2352 = vmatmul.mubr.f32.gmra.mrb[0].mxu0 %v2351
          %v2353 = vpop.f32.mrb[0].mxu0
          %v2354 = vadd.f32 %v2174, %v2353
          %v2355 = vpop.f32.mrb[0].mxu0
          %2356 = vmatprep.mubr.f32.mxu0 0.0
          %v2357 = vand.u32 %v601, 4294901760
          %v2358 = vsub.f32 %v601, %v2357
          %2359 = vmatmul.mubr.f32.gmra.mrb[0].mxu0 %v2358
          %v2360 = vpop.f32.mrb[0].mxu0
          %v2361 = vadd.f32 %v2180, %v2360
          %v2362 = vpop.f32.mrb[0].mxu0
          %2363 = vmatprep.mubr.f32.mxu0 0.0
          %v2364 = vand.u32 %v604, 4294901760
          %v2365 = vsub.f32 %v604, %v2364
          %2366 = vmatmul.mubr.f32.gmra.mrb[0].mxu0 %v2365
          %v2367 = vpop.f32.mrb[0].mxu0
          %v2368 = vadd.f32 %v2186, %v2367
          %v2369 = vpop.f32.mrb[0].mxu0
          %2370 = vmatprep.mubr.f32.mxu0 0.0
          %v2371 = vand.u32 %v607, 4294901760
          %v2372 = vsub.f32 %v607, %v2371
          %2373 = vmatmul.mubr.f32.gmra.mrb[0].mxu0 %v2372
          %v2374 = vpop.f32.mrb[0].mxu0
          %v2375 = vadd.f32 %v2192, %v2374
          %v2376 = vpop.f32.mrb[0].mxu0
          %2377 = vmatprep.mubr.f32.mxu0 0.0
          %v2378 = vand.u32 %v610, 4294901760
          %v2379 = vsub.f32 %v610, %v2378
          %2380 = vmatmul.mubr.f32.gmra.mrb[0].mxu0 %v2379
          %v2381 = vpop.f32.mrb[0].mxu0
          %v2382 = vadd.f32 %v2198, %v2381
          %v2383 = vpop.f32.mrb[0].mxu0
          %2384 = vmatprep.mubr.f32.mxu0 0.0
          %v2385 = vand.u32 %v613, 4294901760
          %v2386 = vsub.f32 %v613, %v2385
          %2387 = vmatmul.mubr.f32.gmra.mrb[0].mxu0 %v2386
          %v2388 = vpop.f32.mrb[0].mxu0
          %v2389 = vadd.f32 %v2204, %v2388
          %v2390 = vpop.f32.mrb[0].mxu0
          %2391 = vdwg.mxu0
          %2392 = vmatprep.subr.mxu0 0.0
          %v2393 = vand.u32 %v1793, 4294901760
          %2394 = vmatpush1.msra.mxu0 %v2393
          %2395 = vmatprep.subr.mxu0 0.0
          %v2396 = vand.u32 %v1794, 4294901760
          %2397 = vmatpush1.msra.mxu0 %v2396
          %2398 = vmatprep.subr.mxu0 0.0
          %v2399 = vand.u32 %v1795, 4294901760
          %2400 = vmatpush1.msra.mxu0 %v2399
          %2401 = vmatprep.subr.mxu0 0.0
          %v2402 = vand.u32 %v1796, 4294901760
          %2403 = vmatpush1.msra.mxu0 %v2402
          %2404 = vmatprep.subr.mxu0 0.0
          %2405 = vmatpush1.msra.mxu0 0.0
          %2406 = vmatprep.subr.mxu0 0.0
          %2407 = vmatpush1.msra.mxu0 0.0
          %2408 = vmatprep.subr.mxu0 0.0
          %2409 = vmatpush1.msra.mxu0 0.0
          %2410 = vmatprep.subr.mxu0 0.0
          %2411 = vmatpush1.msra.mxu0 0.0
          %2412 = vmatprep.subr.mxu0 0.0
          %2413 = vmatpush1.msra.mxu0 0.0
          %2414 = vmatprep.subr.mxu0 0.0
          %2415 = vmatpush1.msra.mxu0 0.0
          %2416 = vmatprep.subr.mxu0 0.0
          %2417 = vmatpush1.msra.mxu0 0.0
          %2418 = vmatprep.subr.mxu0 0.0
          %2419 = vmatpush1.msra.mxu0 0.0
          %2420 = vmatprep.subr.mxu0 0.0
          %2421 = vmatpush1.msra.mxu0 0.0
          %2422 = vmatprep.subr.mxu0 0.0
          %2423 = vmatpush1.msra.mxu0 0.0
          %2424 = vmatprep.subr.mxu0 0.0
          %2425 = vmatpush1.msra.mxu0 0.0
          %2426 = vmatprep.subr.mxu0 0.0
          %2427 = vmatpush1.msra.mxu0 0.0
          %2428 = vmatprep.subr.mxu0 0.0
          %2429 = vmatpush1.msra.mxu0 0.0
          %2430 = vmatprep.subr.mxu0 0.0
          %2431 = vmatpush1.msra.mxu0 0.0
          %2432 = vmatprep.subr.mxu0 0.0
          %2433 = vmatpush1.msra.mxu0 0.0
          %2434 = vmatprep.subr.mxu0 0.0
          %2435 = vmatpush1.msra.mxu0 0.0
          %2436 = vmatprep.subr.mxu0 0.0
          %2437 = vmatpush1.msra.mxu0 0.0
          %2438 = vmatprep.subr.mxu0 0.0
          %2439 = vmatpush1.msra.mxu0 0.0
          %2440 = vmatprep.subr.mxu0 0.0
          %2441 = vmatpush1.msra.mxu0 0.0
          %2442 = vmatprep.subr.mxu0 0.0
          %2443 = vmatpush1.msra.mxu0 0.0
          %2444 = vmatprep.subr.mxu0 0.0
          %2445 = vmatpush1.msra.mxu0 0.0
          %2446 = vmatprep.subr.mxu0 0.0
          %2447 = vmatpush1.msra.mxu0 0.0
          %2448 = vmatprep.subr.mxu0 0.0
          %2449 = vmatpush1.msra.mxu0 0.0
          %2450 = vmatprep.subr.mxu0 0.0
          %2451 = vmatpush1.msra.mxu0 0.0
          %2452 = vmatprep.subr.mxu0 0.0
          %2453 = vmatpush1.msra.mxu0 0.0
          %2454 = vmatprep.subr.mxu0 0.0
          %2455 = vmatpush1.msra.mxu0 0.0
          %2456 = vmatprep.subr.mxu0 0.0
          %2457 = vmatpush1.msra.mxu0 0.0
          %2458 = vmatprep.subr.mxu0 0.0
          %2459 = vmatpush1.msra.mxu0 0.0
          %2460 = vmatprep.mubr.f32.mxu0 0.0
          %v2461 = vand.u32 %v568, 4294901760
          %v2462 = vsub.f32 %v568, %v2461
          %v2463 = vand.u32 %v2462, 4294901760
          %2464 = vmatmul.mubr.f32.gmra.mrb[0].mxu0 %v2463
          %v2465 = vpop.f32.mrb[0].mxu0
          %v2466 = vadd.f32 %v2284, %v2465
          %v2467 = vpop.f32.mrb[0].mxu0
          %2468 = vmatprep.mubr.f32.mxu0 0.0
          %v2469 = vand.u32 %v571, 4294901760
          %v2470 = vsub.f32 %v571, %v2469
          %v2471 = vand.u32 %v2470, 4294901760
          %2472 = vmatmul.mubr.f32.gmra.mrb[0].mxu0 %v2471
          %v2473 = vpop.f32.mrb[0].mxu0
          %v2474 = vadd.f32 %v2291, %v2473
          %v2475 = vpop.f32.mrb[0].mxu0
          %2476 = vmatprep.mubr.f32.mxu0 0.0
          %v2477 = vand.u32 %v574, 4294901760
          %v2478 = vsub.f32 %v574, %v2477
          %v2479 = vand.u32 %v2478, 4294901760
          %2480 = vmatmul.mubr.f32.gmra.mrb[0].mxu0 %v2479
          %v2481 = vpop.f32.mrb[0].mxu0
          %v2482 = vadd.f32 %v2298, %v2481
          %v2483 = vpop.f32.mrb[0].mxu0
          %2484 = vmatprep.mubr.f32.mxu0 0.0
          %v2485 = vand.u32 %v577, 4294901760
          %v2486 = vsub.f32 %v577, %v2485
          %v2487 = vand.u32 %v2486, 4294901760
          %2488 = vmatmul.mubr.f32.gmra.mrb[0].mxu0 %v2487
          %v2489 = vpop.f32.mrb[0].mxu0
          %v2490 = vadd.f32 %v2305, %v2489
          %v2491 = vpop.f32.mrb[0].mxu0
          %2492 = vmatprep.mubr.f32.mxu0 0.0
          %v2493 = vand.u32 %v580, 4294901760
          %v2494 = vsub.f32 %v580, %v2493
          %v2495 = vand.u32 %v2494, 4294901760
          %2496 = vmatmul.mubr.f32.gmra.mrb[0].mxu0 %v2495
          %v2497 = vpop.f32.mrb[0].mxu0
          %v2498 = vadd.f32 %v2312, %v2497
          %v2499 = vpop.f32.mrb[0].mxu0
          %2500 = vmatprep.mubr.f32.mxu0 0.0
          %v2501 = vand.u32 %v583, 4294901760
          %v2502 = vsub.f32 %v583, %v2501
          %v2503 = vand.u32 %v2502, 4294901760
          %2504 = vmatmul.mubr.f32.gmra.mrb[0].mxu0 %v2503
          %v2505 = vpop.f32.mrb[0].mxu0
          %v2506 = vadd.f32 %v2319, %v2505
          %v2507 = vpop.f32.mrb[0].mxu0
          %2508 = vmatprep.mubr.f32.mxu0 0.0
          %v2509 = vand.u32 %v586, 4294901760
          %v2510 = vsub.f32 %v586, %v2509
          %v2511 = vand.u32 %v2510, 4294901760
          %2512 = vmatmul.mubr.f32.gmra.mrb[0].mxu0 %v2511
          %v2513 = vpop.f32.mrb[0].mxu0
          %v2514 = vadd.f32 %v2326, %v2513
          %v2515 = vpop.f32.mrb[0].mxu0
          %2516 = vmatprep.mubr.f32.mxu0 0.0
          %v2517 = vand.u32 %v589, 4294901760
          %v2518 = vsub.f32 %v589, %v2517
          %v2519 = vand.u32 %v2518, 4294901760
          %2520 = vmatmul.mubr.f32.gmra.mrb[0].mxu0 %v2519
          %v2521 = vpop.f32.mrb[0].mxu0
          %v2522 = vadd.f32 %v2333, %v2521
          %v2523 = vpop.f32.mrb[0].mxu0
          %2524 = vmatprep.mubr.f32.mxu0 0.0
          %v2525 = vand.u32 %v592, 4294901760
          %v2526 = vsub.f32 %v592, %v2525
          %v2527 = vand.u32 %v2526, 4294901760
          %2528 = vmatmul.mubr.f32.gmra.mrb[0].mxu0 %v2527
          %v2529 = vpop.f32.mrb[0].mxu0
          %v2530 = vadd.f32 %v2340, %v2529
          %v2531 = vpop.f32.mrb[0].mxu0
          %2532 = vmatprep.mubr.f32.mxu0 0.0
          %v2533 = vand.u32 %v595, 4294901760
          %v2534 = vsub.f32 %v595, %v2533
          %v2535 = vand.u32 %v2534, 4294901760
          %2536 = vmatmul.mubr.f32.gmra.mrb[0].mxu0 %v2535
          %v2537 = vpop.f32.mrb[0].mxu0
          %v2538 = vadd.f32 %v2347, %v2537
          %v2539 = vpop.f32.mrb[0].mxu0
          %2540 = vmatprep.mubr.f32.mxu0 0.0
          %v2541 = vand.u32 %v598, 4294901760
          %v2542 = vsub.f32 %v598, %v2541
          %v2543 = vand.u32 %v2542, 4294901760
          %2544 = vmatmul.mubr.f32.gmra.mrb[0].mxu0 %v2543
          %v2545 = vpop.f32.mrb[0].mxu0
          %v2546 = vadd.f32 %v2354, %v2545
          %v2547 = vpop.f32.mrb[0].mxu0
          %2548 = vmatprep.mubr.f32.mxu0 0.0
          %v2549 = vand.u32 %v601, 4294901760
          %v2550 = vsub.f32 %v601, %v2549
          %v2551 = vand.u32 %v2550, 4294901760
          %2552 = vmatmul.mubr.f32.gmra.mrb[0].mxu0 %v2551
          %v2553 = vpop.f32.mrb[0].mxu0
          %v2554 = vadd.f32 %v2361, %v2553
          %v2555 = vpop.f32.mrb[0].mxu0
          %2556 = vmatprep.mubr.f32.mxu0 0.0
          %v2557 = vand.u32 %v604, 4294901760
          %v2558 = vsub.f32 %v604, %v2557
          %v2559 = vand.u32 %v2558, 4294901760
          %2560 = vmatmul.mubr.f32.gmra.mrb[0].mxu0 %v2559
          %v2561 = vpop.f32.mrb[0].mxu0
          %v2562 = vadd.f32 %v2368, %v2561
          %v2563 = vpop.f32.mrb[0].mxu0
          %2564 = vmatprep.mubr.f32.mxu0 0.0
          %v2565 = vand.u32 %v607, 4294901760
          %v2566 = vsub.f32 %v607, %v2565
          %v2567 = vand.u32 %v2566, 4294901760
          %2568 = vmatmul.mubr.f32.gmra.mrb[0].mxu0 %v2567
          %v2569 = vpop.f32.mrb[0].mxu0
          %v2570 = vadd.f32 %v2375, %v2569
          %v2571 = vpop.f32.mrb[0].mxu0
          %2572 = vmatprep.mubr.f32.mxu0 0.0
          %v2573 = vand.u32 %v610, 4294901760
          %v2574 = vsub.f32 %v610, %v2573
          %v2575 = vand.u32 %v2574, 4294901760
          %2576 = vmatmul.mubr.f32.gmra.mrb[0].mxu0 %v2575
          %v2577 = vpop.f32.mrb[0].mxu0
          %v2578 = vadd.f32 %v2382, %v2577
          %v2579 = vpop.f32.mrb[0].mxu0
          %2580 = vmatprep.mubr.f32.mxu0 0.0
          %v2581 = vand.u32 %v613, 4294901760
          %v2582 = vsub.f32 %v613, %v2581
          %v2583 = vand.u32 %v2582, 4294901760
          %2584 = vmatmul.mubr.f32.gmra.mrb[0].mxu0 %v2583
          %v2585 = vpop.f32.mrb[0].mxu0
          %v2586 = vadd.f32 %v2389, %v2585
          %v2587 = vpop.f32.mrb[0].mxu0
          %2588 = vdwg.mxu0
          %2589 = vmatprep.subr.mxu0 0.0
          %v2590 = vand.u32 %v1793, 4294901760
          %v2591 = vsub.f32 %v1793, %v2590
          %v2592 = vand.u32 %v2591, 4294901760
          %2593 = vmatpush1.msra.mxu0 %v2592
          %2594 = vmatprep.subr.mxu0 0.0
          %v2595 = vand.u32 %v1794, 4294901760
          %v2596 = vsub.f32 %v1794, %v2595
          %v2597 = vand.u32 %v2596, 4294901760
          %2598 = vmatpush1.msra.mxu0 %v2597
          %2599 = vmatprep.subr.mxu0 0.0
          %v2600 = vand.u32 %v1795, 4294901760
          %v2601 = vsub.f32 %v1795, %v2600
          %v2602 = vand.u32 %v2601, 4294901760
          %2603 = vmatpush1.msra.mxu0 %v2602
          %2604 = vmatprep.subr.mxu0 0.0
          %v2605 = vand.u32 %v1796, 4294901760
          %v2606 = vsub.f32 %v1796, %v2605
          %v2607 = vand.u32 %v2606, 4294901760
          %2608 = vmatpush1.msra.mxu0 %v2607
          %2609 = vmatprep.subr.mxu0 0.0
          %2610 = vmatpush1.msra.mxu0 0.0
          %2611 = vmatprep.subr.mxu0 0.0
          %2612 = vmatpush1.msra.mxu0 0.0
          %2613 = vmatprep.subr.mxu0 0.0
          %2614 = vmatpush1.msra.mxu0 0.0
          %2615 = vmatprep.subr.mxu0 0.0
          %2616 = vmatpush1.msra.mxu0 0.0
          %2617 = vmatprep.subr.mxu0 0.0
          %2618 = vmatpush1.msra.mxu0 0.0
          %2619 = vmatprep.subr.mxu0 0.0
          %2620 = vmatpush1.msra.mxu0 0.0
          %2621 = vmatprep.subr.mxu0 0.0
          %2622 = vmatpush1.msra.mxu0 0.0
          %2623 = vmatprep.subr.mxu0 0.0
          %2624 = vmatpush1.msra.mxu0 0.0
          %2625 = vmatprep.subr.mxu0 0.0
          %2626 = vmatpush1.msra.mxu0 0.0
          %2627 = vmatprep.subr.mxu0 0.0
          %2628 = vmatpush1.msra.mxu0 0.0
          %2629 = vmatprep.subr.mxu0 0.0
          %2630 = vmatpush1.msra.mxu0 0.0
          %2631 = vmatprep.subr.mxu0 0.0
          %2632 = vmatpush1.msra.mxu0 0.0
          %2633 = vmatprep.subr.mxu0 0.0
          %2634 = vmatpush1.msra.mxu0 0.0
          %2635 = vmatprep.subr.mxu0 0.0
          %2636 = vmatpush1.msra.mxu0 0.0
          %2637 = vmatprep.subr.mxu0 0.0
          %2638 = vmatpush1.msra.mxu0 0.0
          %2639 = vmatprep.subr.mxu0 0.0
          %2640 = vmatpush1.msra.mxu0 0.0
          %2641 = vmatprep.subr.mxu0 0.0
          %2642 = vmatpush1.msra.mxu0 0.0
          %2643 = vmatprep.subr.mxu0 0.0
          %2644 = vmatpush1.msra.mxu0 0.0
          %2645 = vmatprep.subr.mxu0 0.0
          %2646 = vmatpush1.msra.mxu0 0.0
          %2647 = vmatprep.subr.mxu0 0.0
          %2648 = vmatpush1.msra.mxu0 0.0
          %2649 = vmatprep.subr.mxu0 0.0
          %2650 = vmatpush1.msra.mxu0 0.0
          %2651 = vmatprep.subr.mxu0 0.0
          %2652 = vmatpush1.msra.mxu0 0.0
          %2653 = vmatprep.subr.mxu0 0.0
          %2654 = vmatpush1.msra.mxu0 0.0
          %2655 = vmatprep.subr.mxu0 0.0
          %2656 = vmatpush1.msra.mxu0 0.0
          %2657 = vmatprep.subr.mxu0 0.0
          %2658 = vmatpush1.msra.mxu0 0.0
          %2659 = vmatprep.subr.mxu0 0.0
          %2660 = vmatpush1.msra.mxu0 0.0
          %2661 = vmatprep.subr.mxu0 0.0
          %2662 = vmatpush1.msra.mxu0 0.0
          %2663 = vmatprep.subr.mxu0 0.0
          %2664 = vmatpush1.msra.mxu0 0.0
          %2665 = vmatprep.mubr.f32.mxu0 0.0
          %v2666 = vand.u32 %v568, 4294901760
          %2667 = vmatmul.mubr.f32.gmra.mrb[0].mxu0 %v2666
          %v2668 = vpop.f32.mrb[0].mxu0
          %v2669 = vadd.f32 %v2466, %v2668
          %v2670 = vpop.f32.mrb[0].mxu0
          %2671 = vmatprep.mubr.f32.mxu0 0.0
          %v2672 = vand.u32 %v571, 4294901760
          %2673 = vmatmul.mubr.f32.gmra.mrb[0].mxu0 %v2672
          %v2674 = vpop.f32.mrb[0].mxu0
          %v2675 = vadd.f32 %v2474, %v2674
          %v2676 = vpop.f32.mrb[0].mxu0
          %2677 = vmatprep.mubr.f32.mxu0 0.0
          %v2678 = vand.u32 %v574, 4294901760
          %2679 = vmatmul.mubr.f32.gmra.mrb[0].mxu0 %v2678
          %v2680 = vpop.f32.mrb[0].mxu0
          %v2681 = vadd.f32 %v2482, %v2680
          %v2682 = vpop.f32.mrb[0].mxu0
          %2683 = vmatprep.mubr.f32.mxu0 0.0
          %v2684 = vand.u32 %v577, 4294901760
          %2685 = vmatmul.mubr.f32.gmra.mrb[0].mxu0 %v2684
          %v2686 = vpop.f32.mrb[0].mxu0
          %v2687 = vadd.f32 %v2490, %v2686
          %v2688 = vpop.f32.mrb[0].mxu0
          %2689 = vmatprep.mubr.f32.mxu0 0.0
          %v2690 = vand.u32 %v580, 4294901760
          %2691 = vmatmul.mubr.f32.gmra.mrb[0].mxu0 %v2690
          %v2692 = vpop.f32.mrb[0].mxu0
          %v2693 = vadd.f32 %v2498, %v2692
          %v2694 = vpop.f32.mrb[0].mxu0
          %2695 = vmatprep.mubr.f32.mxu0 0.0
          %v2696 = vand.u32 %v583, 4294901760
          %2697 = vmatmul.mubr.f32.gmra.mrb[0].mxu0 %v2696
          %v2698 = vpop.f32.mrb[0].mxu0
          %v2699 = vadd.f32 %v2506, %v2698
          %v2700 = vpop.f32.mrb[0].mxu0
          %2701 = vmatprep.mubr.f32.mxu0 0.0
          %v2702 = vand.u32 %v586, 4294901760
          %2703 = vmatmul.mubr.f32.gmra.mrb[0].mxu0 %v2702
          %v2704 = vpop.f32.mrb[0].mxu0
          %v2705 = vadd.f32 %v2514, %v2704
          %v2706 = vpop.f32.mrb[0].mxu0
          %2707 = vmatprep.mubr.f32.mxu0 0.0
          %v2708 = vand.u32 %v589, 4294901760
          %2709 = vmatmul.mubr.f32.gmra.mrb[0].mxu0 %v2708
          %v2710 = vpop.f32.mrb[0].mxu0
          %v2711 = vadd.f32 %v2522, %v2710
          %v2712 = vpop.f32.mrb[0].mxu0
          %2713 = vmatprep.mubr.f32.mxu0 0.0
          %v2714 = vand.u32 %v592, 4294901760
          %2715 = vmatmul.mubr.f32.gmra.mrb[0].mxu0 %v2714
          %v2716 = vpop.f32.mrb[0].mxu0
          %v2717 = vadd.f32 %v2530, %v2716
          %v2718 = vpop.f32.mrb[0].mxu0
          %2719 = vmatprep.mubr.f32.mxu0 0.0
          %v2720 = vand.u32 %v595, 4294901760
          %2721 = vmatmul.mubr.f32.gmra.mrb[0].mxu0 %v2720
          %v2722 = vpop.f32.mrb[0].mxu0
          %v2723 = vadd.f32 %v2538, %v2722
          %v2724 = vpop.f32.mrb[0].mxu0
          %2725 = vmatprep.mubr.f32.mxu0 0.0
          %v2726 = vand.u32 %v598, 4294901760
          %2727 = vmatmul.mubr.f32.gmra.mrb[0].mxu0 %v2726
          %v2728 = vpop.f32.mrb[0].mxu0
          %v2729 = vadd.f32 %v2546, %v2728
          %v2730 = vpop.f32.mrb[0].mxu0
          %2731 = vmatprep.mubr.f32.mxu0 0.0
          %v2732 = vand.u32 %v601, 4294901760
          %2733 = vmatmul.mubr.f32.gmra.mrb[0].mxu0 %v2732
          %v2734 = vpop.f32.mrb[0].mxu0
          %v2735 = vadd.f32 %v2554, %v2734
          %v2736 = vpop.f32.mrb[0].mxu0
          %2737 = vmatprep.mubr.f32.mxu0 0.0
          %v2738 = vand.u32 %v604, 4294901760
          %2739 = vmatmul.mubr.f32.gmra.mrb[0].mxu0 %v2738
          %v2740 = vpop.f32.mrb[0].mxu0
          %v2741 = vadd.f32 %v2562, %v2740
          %v2742 = vpop.f32.mrb[0].mxu0
          %2743 = vmatprep.mubr.f32.mxu0 0.0
          %v2744 = vand.u32 %v607, 4294901760
          %2745 = vmatmul.mubr.f32.gmra.mrb[0].mxu0 %v2744
          %v2746 = vpop.f32.mrb[0].mxu0
          %v2747 = vadd.f32 %v2570, %v2746
          %v2748 = vpop.f32.mrb[0].mxu0
          %2749 = vmatprep.mubr.f32.mxu0 0.0
          %v2750 = vand.u32 %v610, 4294901760
          %2751 = vmatmul.mubr.f32.gmra.mrb[0].mxu0 %v2750
          %v2752 = vpop.f32.mrb[0].mxu0
          %v2753 = vadd.f32 %v2578, %v2752
          %v2754 = vpop.f32.mrb[0].mxu0
          %2755 = vmatprep.mubr.f32.mxu0 0.0
          %v2756 = vand.u32 %v613, 4294901760
          %2757 = vmatmul.mubr.f32.gmra.mrb[0].mxu0 %v2756
          %v2758 = vpop.f32.mrb[0].mxu0
          %v2759 = vadd.f32 %v2586, %v2758
          %v2760 = vpop.f32.mrb[0].mxu0
          %2761 = vdwg.mxu0
          %2762 = vmatprep.subr.mxu0 0.0
          %v2763 = vand.u32 %v1793, 4294901760
          %2764 = vmatpush1.msra.mxu0 %v2763
          %2765 = vmatprep.subr.mxu0 0.0
          %v2766 = vand.u32 %v1794, 4294901760
          %2767 = vmatpush1.msra.mxu0 %v2766
          %2768 = vmatprep.subr.mxu0 0.0
          %v2769 = vand.u32 %v1795, 4294901760
          %2770 = vmatpush1.msra.mxu0 %v2769
          %2771 = vmatprep.subr.mxu0 0.0
          %v2772 = vand.u32 %v1796, 4294901760
          %2773 = vmatpush1.msra.mxu0 %v2772
          %2774 = vmatprep.subr.mxu0 0.0
          %2775 = vmatpush1.msra.mxu0 0.0
          %2776 = vmatprep.subr.mxu0 0.0
          %2777 = vmatpush1.msra.mxu0 0.0
          %2778 = vmatprep.subr.mxu0 0.0
          %2779 = vmatpush1.msra.mxu0 0.0
          %2780 = vmatprep.subr.mxu0 0.0
          %2781 = vmatpush1.msra.mxu0 0.0
          %2782 = vmatprep.subr.mxu0 0.0
          %2783 = vmatpush1.msra.mxu0 0.0
          %2784 = vmatprep.subr.mxu0 0.0
          %2785 = vmatpush1.msra.mxu0 0.0
          %2786 = vmatprep.subr.mxu0 0.0
          %2787 = vmatpush1.msra.mxu0 0.0
          %2788 = vmatprep.subr.mxu0 0.0
          %2789 = vmatpush1.msra.mxu0 0.0
          %2790 = vmatprep.subr.mxu0 0.0
          %2791 = vmatpush1.msra.mxu0 0.0
          %2792 = vmatprep.subr.mxu0 0.0
          %2793 = vmatpush1.msra.mxu0 0.0
          %2794 = vmatprep.subr.mxu0 0.0
          %2795 = vmatpush1.msra.mxu0 0.0
          %2796 = vmatprep.subr.mxu0 0.0
          %2797 = vmatpush1.msra.mxu0 0.0
          %2798 = vmatprep.subr.mxu0 0.0
          %2799 = vmatpush1.msra.mxu0 0.0
          %2800 = vmatprep.subr.mxu0 0.0
          %2801 = vmatpush1.msra.mxu0 0.0
          %2802 = vmatprep.subr.mxu0 0.0
          %2803 = vmatpush1.msra.mxu0 0.0
          %2804 = vmatprep.subr.mxu0 0.0
          %2805 = vmatpush1.msra.mxu0 0.0
          %2806 = vmatprep.subr.mxu0 0.0
          %2807 = vmatpush1.msra.mxu0 0.0
          %2808 = vmatprep.subr.mxu0 0.0
          %2809 = vmatpush1.msra.mxu0 0.0
          %2810 = vmatprep.subr.mxu0 0.0
          %2811 = vmatpush1.msra.mxu0 0.0
          %2812 = vmatprep.subr.mxu0 0.0
          %2813 = vmatpush1.msra.mxu0 0.0
          %2814 = vmatprep.subr.mxu0 0.0
          %2815 = vmatpush1.msra.mxu0 0.0
          %2816 = vmatprep.subr.mxu0 0.0
          %2817 = vmatpush1.msra.mxu0 0.0
          %2818 = vmatprep.subr.mxu0 0.0
          %2819 = vmatpush1.msra.mxu0 0.0
          %2820 = vmatprep.subr.mxu0 0.0
          %2821 = vmatpush1.msra.mxu0 0.0
          %2822 = vmatprep.subr.mxu0 0.0
          %2823 = vmatpush1.msra.mxu0 0.0
          %2824 = vmatprep.subr.mxu0 0.0
          %2825 = vmatpush1.msra.mxu0 0.0
          %2826 = vmatprep.subr.mxu0 0.0
          %2827 = vmatpush1.msra.mxu0 0.0
          %2828 = vmatprep.subr.mxu0 0.0
          %2829 = vmatpush1.msra.mxu0 0.0
          %2830 = vmatprep.mubr.f32.mxu0 0.0
          %v2831 = vand.u32 %v568, 4294901760
          %2832 = vmatmul.mubr.f32.gmra.mrb[0].mxu0 %v2831
          %v2833 = vpop.f32.mrb[0].mxu0
          %v2834 = vadd.f32 %v2669, %v2833
          %v2835 = vpop.f32.mrb[0].mxu0
          %2836 = vmatprep.mubr.f32.mxu0 0.0
          %v2837 = vand.u32 %v571, 4294901760
          %2838 = vmatmul.mubr.f32.gmra.mrb[0].mxu0 %v2837
          %v2839 = vpop.f32.mrb[0].mxu0
          %v2840 = vadd.f32 %v2675, %v2839
          %v2841 = vpop.f32.mrb[0].mxu0
          %2842 = vmatprep.mubr.f32.mxu0 0.0
          %v2843 = vand.u32 %v574, 4294901760
          %2844 = vmatmul.mubr.f32.gmra.mrb[0].mxu0 %v2843
          %v2845 = vpop.f32.mrb[0].mxu0
          %v2846 = vadd.f32 %v2681, %v2845
          %v2847 = vpop.f32.mrb[0].mxu0
          %2848 = vmatprep.mubr.f32.mxu0 0.0
          %v2849 = vand.u32 %v577, 4294901760
          %2850 = vmatmul.mubr.f32.gmra.mrb[0].mxu0 %v2849
          %v2851 = vpop.f32.mrb[0].mxu0
          %v2852 = vadd.f32 %v2687, %v2851
          %v2853 = vpop.f32.mrb[0].mxu0
          %2854 = vmatprep.mubr.f32.mxu0 0.0
          %v2855 = vand.u32 %v580, 4294901760
          %2856 = vmatmul.mubr.f32.gmra.mrb[0].mxu0 %v2855
          %v2857 = vpop.f32.mrb[0].mxu0
          %v2858 = vadd.f32 %v2693, %v2857
          %v2859 = vpop.f32.mrb[0].mxu0
          %2860 = vmatprep.mubr.f32.mxu0 0.0
          %v2861 = vand.u32 %v583, 4294901760
          %2862 = vmatmul.mubr.f32.gmra.mrb[0].mxu0 %v2861
          %v2863 = vpop.f32.mrb[0].mxu0
          %v2864 = vadd.f32 %v2699, %v2863
          %v2865 = vpop.f32.mrb[0].mxu0
          %2866 = vmatprep.mubr.f32.mxu0 0.0
          %v2867 = vand.u32 %v586, 4294901760
          %2868 = vmatmul.mubr.f32.gmra.mrb[0].mxu0 %v2867
          %v2869 = vpop.f32.mrb[0].mxu0
          %v2870 = vadd.f32 %v2705, %v2869
          %v2871 = vpop.f32.mrb[0].mxu0
          %2872 = vmatprep.mubr.f32.mxu0 0.0
          %v2873 = vand.u32 %v589, 4294901760
          %2874 = vmatmul.mubr.f32.gmra.mrb[0].mxu0 %v2873
          %v2875 = vpop.f32.mrb[0].mxu0
          %v2876 = vadd.f32 %v2711, %v2875
          %v2877 = vpop.f32.mrb[0].mxu0
          %2878 = vmatprep.mubr.f32.mxu0 0.0
          %v2879 = vand.u32 %v592, 4294901760
          %2880 = vmatmul.mubr.f32.gmra.mrb[0].mxu0 %v2879
          %v2881 = vpop.f32.mrb[0].mxu0
          %v2882 = vadd.f32 %v2717, %v2881
          %v2883 = vpop.f32.mrb[0].mxu0
          %2884 = vmatprep.mubr.f32.mxu0 0.0
          %v2885 = vand.u32 %v595, 4294901760
          %2886 = vmatmul.mubr.f32.gmra.mrb[0].mxu0 %v2885
          %v2887 = vpop.f32.mrb[0].mxu0
          %v2888 = vadd.f32 %v2723, %v2887
          %v2889 = vpop.f32.mrb[0].mxu0
          %2890 = vmatprep.mubr.f32.mxu0 0.0
          %v2891 = vand.u32 %v598, 4294901760
          %2892 = vmatmul.mubr.f32.gmra.mrb[0].mxu0 %v2891
          %v2893 = vpop.f32.mrb[0].mxu0
          %v2894 = vadd.f32 %v2729, %v2893
          %v2895 = vpop.f32.mrb[0].mxu0
          %2896 = vmatprep.mubr.f32.mxu0 0.0
          %v2897 = vand.u32 %v601, 4294901760
          %2898 = vmatmul.mubr.f32.gmra.mrb[0].mxu0 %v2897
          %v2899 = vpop.f32.mrb[0].mxu0
          %v2900 = vadd.f32 %v2735, %v2899
          %v2901 = vpop.f32.mrb[0].mxu0
          %2902 = vmatprep.mubr.f32.mxu0 0.0
          %v2903 = vand.u32 %v604, 4294901760
          %2904 = vmatmul.mubr.f32.gmra.mrb[0].mxu0 %v2903
          %v2905 = vpop.f32.mrb[0].mxu0
          %v2906 = vadd.f32 %v2741, %v2905
          %v2907 = vpop.f32.mrb[0].mxu0
          %2908 = vmatprep.mubr.f32.mxu0 0.0
          %v2909 = vand.u32 %v607, 4294901760
          %2910 = vmatmul.mubr.f32.gmra.mrb[0].mxu0 %v2909
          %v2911 = vpop.f32.mrb[0].mxu0
          %v2912 = vadd.f32 %v2747, %v2911
          %v2913 = vpop.f32.mrb[0].mxu0
          %2914 = vmatprep.mubr.f32.mxu0 0.0
          %v2915 = vand.u32 %v610, 4294901760
          %2916 = vmatmul.mubr.f32.gmra.mrb[0].mxu0 %v2915
          %v2917 = vpop.f32.mrb[0].mxu0
          %v2918 = vadd.f32 %v2753, %v2917
          %v2919 = vpop.f32.mrb[0].mxu0
          %2920 = vmatprep.mubr.f32.mxu0 0.0
          %v2921 = vand.u32 %v613, 4294901760
          %2922 = vmatmul.mubr.f32.gmra.mrb[0].mxu0 %v2921
          %v2923 = vpop.f32.mrb[0].mxu0
          %v2924 = vadd.f32 %v2759, %v2923
          %v2925 = vpop.f32.mrb[0].mxu0
          %2926 = vdwg.mxu0
          %v2927 = vadd.f32 %v1777, %v2834
          %v2928 = vadd.f32 %v1778, %v2840
          %v2929 = vadd.f32 %v1779, %v2846
          %v2930 = vadd.f32 %v1780, %v2852
          %v2931 = vadd.f32 %v1781, %v2858
          %v2932 = vadd.f32 %v1782, %v2864
          %v2933 = vadd.f32 %v1783, %v2870
          %v2934 = vadd.f32 %v1784, %v2876
          %v2935 = vadd.f32 %v1785, %v2882
          %v2936 = vadd.f32 %v1786, %v2888
          %v2937 = vadd.f32 %v1787, %v2894
          %v2938 = vadd.f32 %v1788, %v2900
          %v2939 = vadd.f32 %v1789, %v2906
          %v2940 = vadd.f32 %v1790, %v2912
          %v2941 = vadd.f32 %v1791, %v2918
          %v2942 = vadd.f32 %v1792, %v2924
          %2943 = vst.msk [vmem:[#allocation3] sm:$0xff] %vm566, %v2927
          %2944 = vst.msk [vmem:[#allocation3 + $0x8] sm:$0xff] %vm566, %v2928
          %2945 = vst.msk [vmem:[#allocation3 + $0x10] sm:$0xff] %vm566, %v2929
          %2946 = vst.msk [vmem:[#allocation3 + $0x18] sm:$0xff] %vm566, %v2930
          %2947 = vst.msk [vmem:[#allocation3 + $0x20] sm:$0xff] %vm566, %v2931
          %2948 = vst.msk [vmem:[#allocation3 + $0x28] sm:$0xff] %vm566, %v2932
          %2949 = vst.msk [vmem:[#allocation3 + $0x30] sm:$0xff] %vm566, %v2933
          %2950 = vst.msk [vmem:[#allocation3 + $0x38] sm:$0xff] %vm566, %v2934
          %2951 = vst.msk [vmem:[#allocation3 + $0x40] sm:$0xff] %vm566, %v2935
          %2952 = vst.msk [vmem:[#allocation3 + $0x48] sm:$0xff] %vm566, %v2936
          %2953 = vst.msk [vmem:[#allocation3 + $0x50] sm:$0xff] %vm566, %v2937
          %2954 = vst.msk [vmem:[#allocation3 + $0x58] sm:$0xff] %vm566, %v2938
          %2955 = vst.msk [vmem:[#allocation3 + $0x60] sm:$0xff] %vm566, %v2939
          %2956 = vst.msk [vmem:[#allocation3 + $0x68] sm:$0xff] %vm566, %v2940
          %2957 = vst.msk [vmem:[#allocation3 + $0x70] sm:$0xff] %vm566, %v2941
          %2958 = vst.msk [vmem:[#allocation3 + $0x78] sm:$0xff] %vm566, %v2942
        $region52: #{tpu_custom_call.1} parent=47 // pred_fallthru
          _
        %p2959 = scmp.eq.s32.totalorder %s25, 1
        // Predicated region
        $region57: #{tpu_custom_call.1} parent=47 // pred_check
          %p2960 = pneg %p2959
        $region58: #{tpu_custom_call.1} parent=47 // pred_check_branch
          %2962 = sbr.rel (%p2960) target = $region60
        $region59: #{tpu_custom_call.1} parent=47 // pred_region
          %p2963 = scmp.eq.s32.totalorder %s26, 0
          // Predicated region
          $region61: #{tpu_custom_call.1} parent=59 // pred_check
            %p2964 = pneg %p2963
          $region62: #{tpu_custom_call.1} parent=59 // pred_check_branch
            %2966 = sbr.rel (%p2964) target = $region64
          $region63: #{tpu_custom_call.1} parent=59 // pred_region
            %v2967 = vld [vmem:[%s2] sm:$0xff]
            %v2968 = vld [vmem:[%s2 + $0x8] sm:$0xff]
            %v2969 = vld [vmem:[%s2 + $0x10] sm:$0xff]
            %v2970 = vld [vmem:[%s2 + $0x18] sm:$0xff]
            %v2971 = vld [vmem:[%s2 + $0x20] sm:$0xff]
            %v2972 = vld [vmem:[%s2 + $0x28] sm:$0xff]
            %v2973 = vld [vmem:[%s2 + $0x30] sm:$0xff]
            %v2974 = vld [vmem:[%s2 + $0x38] sm:$0xff]
            %v2975 = vld [vmem:[%s2 + $0x40] sm:$0xff]
            %v2976 = vld [vmem:[%s2 + $0x48] sm:$0xff]
            %v2977 = vld [vmem:[%s2 + $0x50] sm:$0xff]
            %v2978 = vld [vmem:[%s2 + $0x58] sm:$0xff]
            %v2979 = vld [vmem:[%s2 + $0x60] sm:$0xff]
            %v2980 = vld [vmem:[%s2 + $0x68] sm:$0xff]
            %v2981 = vld [vmem:[%s2 + $0x70] sm:$0xff]
            %v2982 = vld [vmem:[%s2 + $0x78] sm:$0xff]
            %v2983 = vld [vmem:[%s1] sm:$0xff]
            %v2984 = vld [vmem:[%s1 + $0x8] sm:$0xff]
            %v2985 = vld [vmem:[%s1 + $0x10] sm:$0xff]
            %v2986 = vld [vmem:[%s1 + $0x18] sm:$0xff]
            %v2987 = vld [vmem:[%s1 + $0x20] sm:$0xff]
            %v2988 = vld [vmem:[%s1 + $0x28] sm:$0xff]
            %v2989 = vld [vmem:[%s1 + $0x30] sm:$0xff]
            %v2990 = vld [vmem:[%s1 + $0x38] sm:$0xff]
            %v2991 = vld [vmem:[%s1 + $0x40] sm:$0xff]
            %v2992 = vld [vmem:[%s1 + $0x48] sm:$0xff]
            %v2993 = vld [vmem:[%s1 + $0x50] sm:$0xff]
            %v2994 = vld [vmem:[%s1 + $0x58] sm:$0xff]
            %v2995 = vld [vmem:[%s1 + $0x60] sm:$0xff]
            %v2996 = vld [vmem:[%s1 + $0x68] sm:$0xff]
            %v2997 = vld [vmem:[%s1 + $0x70] sm:$0xff]
            %v2998 = vld [vmem:[%s1 + $0x78] sm:$0xff]
            %v2999 = vsub.s32 %v2967, %v2983
            %v3000 = vsub.s32 %v2968, %v2984
            %v3001 = vsub.s32 %v2969, %v2985
            %v3002 = vsub.s32 %v2970, %v2986
            %v3003 = vsub.s32 %v2971, %v2987
            %v3004 = vsub.s32 %v2972, %v2988
            %v3005 = vsub.s32 %v2973, %v2989
            %v3006 = vsub.s32 %v2974, %v2990
            %v3007 = vsub.s32 %v2975, %v2991
            %v3008 = vsub.s32 %v2976, %v2992
            %v3009 = vsub.s32 %v2977, %v2993
            %v3010 = vsub.s32 %v2978, %v2994
            %v3011 = vsub.s32 %v2979, %v2995
            %v3012 = vsub.s32 %v2980, %v2996
            %v3013 = vsub.s32 %v2981, %v2997
            %v3014 = vsub.s32 %v2982, %v2998
            %v3015 = vcvt.s32.f32 %v2999
            %v3016 = vcvt.s32.f32 %v3000
            %v3017 = vcvt.s32.f32 %v3001
            %v3018 = vcvt.s32.f32 %v3002
            %v3019 = vcvt.s32.f32 %v3003
            %v3020 = vcvt.s32.f32 %v3004
            %v3021 = vcvt.s32.f32 %v3005
            %v3022 = vcvt.s32.f32 %v3006
            %v3023 = vcvt.s32.f32 %v3007
            %v3024 = vcvt.s32.f32 %v3008
            %v3025 = vcvt.s32.f32 %v3009
            %v3026 = vcvt.s32.f32 %v3010
            %v3027 = vcvt.s32.f32 %v3011
            %v3028 = vcvt.s32.f32 %v3012
            %v3029 = vcvt.s32.f32 %v3013
            %v3030 = vcvt.s32.f32 %v3014
            %v3031 = vld [vmem:[#allocation2] sm:$0xff]
            %v3032 = vld [vmem:[#allocation2 + $0x8] sm:$0xff]
            %v3033 = vld [vmem:[#allocation2 + $0x10] sm:$0xff]
            %v3034 = vld [vmem:[#allocation2 + $0x18] sm:$0xff]
            %v3035 = vld [vmem:[#allocation2 + $0x20] sm:$0xff]
            %v3036 = vld [vmem:[#allocation2 + $0x28] sm:$0xff]
            %v3037 = vld [vmem:[#allocation2 + $0x30] sm:$0xff]
            %v3038 = vld [vmem:[#allocation2 + $0x38] sm:$0xff]
            %v3039 = vld [vmem:[#allocation2 + $0x40] sm:$0xff]
            %v3040 = vld [vmem:[#allocation2 + $0x48] sm:$0xff]
            %v3041 = vld [vmem:[#allocation2 + $0x50] sm:$0xff]
            %v3042 = vld [vmem:[#allocation2 + $0x58] sm:$0xff]
            %v3043 = vld [vmem:[#allocation2 + $0x60] sm:$0xff]
            %v3044 = vld [vmem:[#allocation2 + $0x68] sm:$0xff]
            %v3045 = vld [vmem:[#allocation2 + $0x70] sm:$0xff]
            %v3046 = vld [vmem:[#allocation2 + $0x78] sm:$0xff]
            %v3047 = vld [vmem:[#allocation3] sm:$0xff]
            %v3048 = vld [vmem:[#allocation3 + $0x8] sm:$0xff]
            %v3049 = vld [vmem:[#allocation3 + $0x10] sm:$0xff]
            %v3050 = vld [vmem:[#allocation3 + $0x18] sm:$0xff]
            %v3051 = vld [vmem:[#allocation3 + $0x20] sm:$0xff]
            %v3052 = vld [vmem:[#allocation3 + $0x28] sm:$0xff]
            %v3053 = vld [vmem:[#allocation3 + $0x30] sm:$0xff]
            %v3054 = vld [vmem:[#allocation3 + $0x38] sm:$0xff]
            %v3055 = vld [vmem:[#allocation3 + $0x40] sm:$0xff]
            %v3056 = vld [vmem:[#allocation3 + $0x48] sm:$0xff]
            %v3057 = vld [vmem:[#allocation3 + $0x50] sm:$0xff]
            %v3058 = vld [vmem:[#allocation3 + $0x58] sm:$0xff]
            %v3059 = vld [vmem:[#allocation3 + $0x60] sm:$0xff]
            %v3060 = vld [vmem:[#allocation3 + $0x68] sm:$0xff]
            %v3061 = vld [vmem:[#allocation3 + $0x70] sm:$0xff]
            %v3062 = vld [vmem:[#allocation3 + $0x78] sm:$0xff]
            %v3063 = vmax.f32 %v3015, 1.0
            %v3064 = vmax.f32 %v3016, 1.0
            %v3065 = vmax.f32 %v3017, 1.0
            %v3066 = vmax.f32 %v3018, 1.0
            %v3067 = vmax.f32 %v3019, 1.0
            %v3068 = vmax.f32 %v3020, 1.0
            %v3069 = vmax.f32 %v3021, 1.0
            %v3070 = vmax.f32 %v3022, 1.0
            %v3071 = vmax.f32 %v3023, 1.0
            %v3072 = vmax.f32 %v3024, 1.0
            %v3073 = vmax.f32 %v3025, 1.0
            %v3074 = vmax.f32 %v3026, 1.0
            %v3075 = vmax.f32 %v3027, 1.0
            %v3076 = vmax.f32 %v3028, 1.0
            %v3077 = vmax.f32 %v3029, 1.0
            %v3078 = vmax.f32 %v3030, 1.0
            %v3079 = vld [vmem:[#allocation4] sm:$0x1]
            %3081 = vset.pattern.permute.xlu0 0
            %3082 = vperm.xlu0 %3081, %v3063
            %v3083 = vpop.permute.xlu0 %3082
            %3086 = vset.pattern.permute.xlu0 0
            %3087 = vperm.xlu0 %3086, %v3064
            %v3088 = vpop.permute.xlu0 %3087
            %3091 = vset.pattern.permute.xlu0 0
            %3092 = vperm.xlu0 %3091, %v3065
            %v3093 = vpop.permute.xlu0 %3092
            %3096 = vset.pattern.permute.xlu0 0
            %3097 = vperm.xlu0 %3096, %v3066
            %v3098 = vpop.permute.xlu0 %3097
            %3101 = vset.pattern.permute.xlu0 0
            %3102 = vperm.xlu0 %3101, %v3067
            %v3103 = vpop.permute.xlu0 %3102
            %3106 = vset.pattern.permute.xlu0 0
            %3107 = vperm.xlu0 %3106, %v3068
            %v3108 = vpop.permute.xlu0 %3107
            %3111 = vset.pattern.permute.xlu0 0
            %3112 = vperm.xlu0 %3111, %v3069
            %v3113 = vpop.permute.xlu0 %3112
            %3116 = vset.pattern.permute.xlu0 0
            %3117 = vperm.xlu0 %3116, %v3070
            %v3118 = vpop.permute.xlu0 %3117
            %3121 = vset.pattern.permute.xlu0 0
            %3122 = vperm.xlu0 %3121, %v3071
            %v3123 = vpop.permute.xlu0 %3122
            %3126 = vset.pattern.permute.xlu0 0
            %3127 = vperm.xlu0 %3126, %v3072
            %v3128 = vpop.permute.xlu0 %3127
            %3131 = vset.pattern.permute.xlu0 0
            %3132 = vperm.xlu0 %3131, %v3073
            %v3133 = vpop.permute.xlu0 %3132
            %3136 = vset.pattern.permute.xlu0 0
            %3137 = vperm.xlu0 %3136, %v3074
            %v3138 = vpop.permute.xlu0 %3137
            %3141 = vset.pattern.permute.xlu0 0
            %3142 = vperm.xlu0 %3141, %v3075
            %v3143 = vpop.permute.xlu0 %3142
            %3146 = vset.pattern.permute.xlu0 0
            %3147 = vperm.xlu0 %3146, %v3076
            %v3148 = vpop.permute.xlu0 %3147
            %3151 = vset.pattern.permute.xlu0 0
            %3152 = vperm.xlu0 %3151, %v3077
            %v3153 = vpop.permute.xlu0 %3152
            %3156 = vset.pattern.permute.xlu0 0
            %3157 = vperm.xlu0 %3156, %v3078
            %v3158 = vpop.permute.xlu0 %3157
            %v3160 = vrcp.pop %v3083
            %v3161 = vmul.f32 %v3031, %v3160
            %v3162 = vrcp.pop %v3088
            %v3163 = vmul.f32 %v3032, %v3162
            %v3164 = vrcp.pop %v3093
            %v3165 = vmul.f32 %v3033, %v3164
            %v3166 = vrcp.pop %v3098
            %v3167 = vmul.f32 %v3034, %v3166
            %v3168 = vrcp.pop %v3103
            %v3169 = vmul.f32 %v3035, %v3168
            %v3170 = vrcp.pop %v3108
            %v3171 = vmul.f32 %v3036, %v3170
            %v3172 = vrcp.pop %v3113
            %v3173 = vmul.f32 %v3037, %v3172
            %v3174 = vrcp.pop %v3118
            %v3175 = vmul.f32 %v3038, %v3174
            %v3176 = vrcp.pop %v3123
            %v3177 = vmul.f32 %v3039, %v3176
            %v3178 = vrcp.pop %v3128
            %v3179 = vmul.f32 %v3040, %v3178
            %v3180 = vrcp.pop %v3133
            %v3181 = vmul.f32 %v3041, %v3180
            %v3182 = vrcp.pop %v3138
            %v3183 = vmul.f32 %v3042, %v3182
            %v3184 = vrcp.pop %v3143
            %v3185 = vmul.f32 %v3043, %v3184
            %v3186 = vrcp.pop %v3148
            %v3187 = vmul.f32 %v3044, %v3186
            %v3188 = vrcp.pop %v3153
            %v3189 = vmul.f32 %v3045, %v3188
            %v3190 = vrcp.pop %v3158
            %v3191 = vmul.f32 %v3046, %v3190
            %v3193 = vlaneseq
            %v3194 = vshrl.u32 %v3193, 7
            %v3195 = vsub.s32 0, %v3194
            %v3196 = vrot.slane %v3079, %v3195
            %v3198 = vadd.f32 %v3196, %v3161
            %v3199 = vadd.f32 %v3196, %v3163
            %v3200 = vadd.f32 %v3196, %v3165
            %v3201 = vadd.f32 %v3196, %v3167
            %v3202 = vadd.f32 %v3196, %v3169
            %v3203 = vadd.f32 %v3196, %v3171
            %v3204 = vadd.f32 %v3196, %v3173
            %v3205 = vadd.f32 %v3196, %v3175
            %v3206 = vadd.f32 %v3196, %v3177
            %v3207 = vadd.f32 %v3196, %v3179
            %v3208 = vadd.f32 %v3196, %v3181
            %v3209 = vadd.f32 %v3196, %v3183
            %v3210 = vadd.f32 %v3196, %v3185
            %v3211 = vadd.f32 %v3196, %v3187
            %v3212 = vadd.f32 %v3196, %v3189
            %v3213 = vadd.f32 %v3196, %v3191
            %v3214 = vmul.f32 %v3031, %v3031
            %v3215 = vmul.f32 %v3032, %v3032
            %v3216 = vmul.f32 %v3033, %v3033
            %v3217 = vmul.f32 %v3034, %v3034
            %v3218 = vmul.f32 %v3035, %v3035
            %v3219 = vmul.f32 %v3036, %v3036
            %v3220 = vmul.f32 %v3037, %v3037
            %v3221 = vmul.f32 %v3038, %v3038
            %v3222 = vmul.f32 %v3039, %v3039
            %v3223 = vmul.f32 %v3040, %v3040
            %v3224 = vmul.f32 %v3041, %v3041
            %v3225 = vmul.f32 %v3042, %v3042
            %v3226 = vmul.f32 %v3043, %v3043
            %v3227 = vmul.f32 %v3044, %v3044
            %v3228 = vmul.f32 %v3045, %v3045
            %v3229 = vmul.f32 %v3046, %v3046
            %v3230 = vmul.f32 %v3214, %v3160
            %v3231 = vmul.f32 %v3215, %v3162
            %v3232 = vmul.f32 %v3216, %v3164
            %v3233 = vmul.f32 %v3217, %v3166
            %v3234 = vmul.f32 %v3218, %v3168
            %v3235 = vmul.f32 %v3219, %v3170
            %v3236 = vmul.f32 %v3220, %v3172
            %v3237 = vmul.f32 %v3221, %v3174
            %v3238 = vmul.f32 %v3222, %v3176
            %v3239 = vmul.f32 %v3223, %v3178
            %v3240 = vmul.f32 %v3224, %v3180
            %v3241 = vmul.f32 %v3225, %v3182
            %v3242 = vmul.f32 %v3226, %v3184
            %v3243 = vmul.f32 %v3227, %v3186
            %v3244 = vmul.f32 %v3228, %v3188
            %v3245 = vmul.f32 %v3229, %v3190
            %v3246 = vsub.f32 %v3047, %v3230
            %v3247 = vsub.f32 %v3048, %v3231
            %v3248 = vsub.f32 %v3049, %v3232
            %v3249 = vsub.f32 %v3050, %v3233
            %v3250 = vsub.f32 %v3051, %v3234
            %v3251 = vsub.f32 %v3052, %v3235
            %v3252 = vsub.f32 %v3053, %v3236
            %v3253 = vsub.f32 %v3054, %v3237
            %v3254 = vsub.f32 %v3055, %v3238
            %v3255 = vsub.f32 %v3056, %v3239
            %v3256 = vsub.f32 %v3057, %v3240
            %v3257 = vsub.f32 %v3058, %v3241
            %v3258 = vsub.f32 %v3059, %v3242
            %v3259 = vsub.f32 %v3060, %v3243
            %v3260 = vsub.f32 %v3061, %v3244
            %v3261 = vsub.f32 %v3062, %v3245
            %v3262 = vsub.f32 %v3015, 1.0
            %v3263 = vsub.f32 %v3016, 1.0
            %v3264 = vsub.f32 %v3017, 1.0
            %v3265 = vsub.f32 %v3018, 1.0
            %v3266 = vsub.f32 %v3019, 1.0
            %v3267 = vsub.f32 %v3020, 1.0
            %v3268 = vsub.f32 %v3021, 1.0
            %v3269 = vsub.f32 %v3022, 1.0
            %v3270 = vsub.f32 %v3023, 1.0
            %v3271 = vsub.f32 %v3024, 1.0
            %v3272 = vsub.f32 %v3025, 1.0
            %v3273 = vsub.f32 %v3026, 1.0
            %v3274 = vsub.f32 %v3027, 1.0
            %v3275 = vsub.f32 %v3028, 1.0
            %v3276 = vsub.f32 %v3029, 1.0
            %v3277 = vsub.f32 %v3030, 1.0
            %v3278 = vmax.f32 %v3262, 1.0
            %v3279 = vmax.f32 %v3263, 1.0
            %v3280 = vmax.f32 %v3264, 1.0
            %v3281 = vmax.f32 %v3265, 1.0
            %v3282 = vmax.f32 %v3266, 1.0
            %v3283 = vmax.f32 %v3267, 1.0
            %v3284 = vmax.f32 %v3268, 1.0
            %v3285 = vmax.f32 %v3269, 1.0
            %v3286 = vmax.f32 %v3270, 1.0
            %v3287 = vmax.f32 %v3271, 1.0
            %v3288 = vmax.f32 %v3272, 1.0
            %v3289 = vmax.f32 %v3273, 1.0
            %v3290 = vmax.f32 %v3274, 1.0
            %v3291 = vmax.f32 %v3275, 1.0
            %v3292 = vmax.f32 %v3276, 1.0
            %v3293 = vmax.f32 %v3277, 1.0
            %3295 = vset.pattern.permute.xlu0 0
            %3296 = vperm.xlu0 %3295, %v3278
            %v3297 = vpop.permute.xlu0 %3296
            %3300 = vset.pattern.permute.xlu0 0
            %3301 = vperm.xlu0 %3300, %v3279
            %v3302 = vpop.permute.xlu0 %3301
            %3305 = vset.pattern.permute.xlu0 0
            %3306 = vperm.xlu0 %3305, %v3280
            %v3307 = vpop.permute.xlu0 %3306
            %3310 = vset.pattern.permute.xlu0 0
            %3311 = vperm.xlu0 %3310, %v3281
            %v3312 = vpop.permute.xlu0 %3311
            %3315 = vset.pattern.permute.xlu0 0
            %3316 = vperm.xlu0 %3315, %v3282
            %v3317 = vpop.permute.xlu0 %3316
            %3320 = vset.pattern.permute.xlu0 0
            %3321 = vperm.xlu0 %3320, %v3283
            %v3322 = vpop.permute.xlu0 %3321
            %3325 = vset.pattern.permute.xlu0 0
            %3326 = vperm.xlu0 %3325, %v3284
            %v3327 = vpop.permute.xlu0 %3326
            %3330 = vset.pattern.permute.xlu0 0
            %3331 = vperm.xlu0 %3330, %v3285
            %v3332 = vpop.permute.xlu0 %3331
            %3335 = vset.pattern.permute.xlu0 0
            %3336 = vperm.xlu0 %3335, %v3286
            %v3337 = vpop.permute.xlu0 %3336
            %3340 = vset.pattern.permute.xlu0 0
            %3341 = vperm.xlu0 %3340, %v3287
            %v3342 = vpop.permute.xlu0 %3341
            %3345 = vset.pattern.permute.xlu0 0
            %3346 = vperm.xlu0 %3345, %v3288
            %v3347 = vpop.permute.xlu0 %3346
            %3350 = vset.pattern.permute.xlu0 0
            %3351 = vperm.xlu0 %3350, %v3289
            %v3352 = vpop.permute.xlu0 %3351
            %3355 = vset.pattern.permute.xlu0 0
            %3356 = vperm.xlu0 %3355, %v3290
            %v3357 = vpop.permute.xlu0 %3356
            %3360 = vset.pattern.permute.xlu0 0
            %3361 = vperm.xlu0 %3360, %v3291
            %v3362 = vpop.permute.xlu0 %3361
            %3365 = vset.pattern.permute.xlu0 0
            %3366 = vperm.xlu0 %3365, %v3292
            %v3367 = vpop.permute.xlu0 %3366
            %3370 = vset.pattern.permute.xlu0 0
            %3371 = vperm.xlu0 %3370, %v3293
            %v3372 = vpop.permute.xlu0 %3371
            %v3374 = vrcp.pop %v3297
            %v3375 = vmul.f32 %v3246, %v3374
            %v3376 = vrcp.pop %v3302
            %v3377 = vmul.f32 %v3247, %v3376
            %v3378 = vrcp.pop %v3307
            %v3379 = vmul.f32 %v3248, %v3378
            %v3380 = vrcp.pop %v3312
            %v3381 = vmul.f32 %v3249, %v3380
            %v3382 = vrcp.pop %v3317
            %v3383 = vmul.f32 %v3250, %v3382
            %v3384 = vrcp.pop %v3322
            %v3385 = vmul.f32 %v3251, %v3384
            %v3386 = vrcp.pop %v3327
            %v3387 = vmul.f32 %v3252, %v3386
            %v3388 = vrcp.pop %v3332
            %v3389 = vmul.f32 %v3253, %v3388
            %v3390 = vrcp.pop %v3337
            %v3391 = vmul.f32 %v3254, %v3390
            %v3392 = vrcp.pop %v3342
            %v3393 = vmul.f32 %v3255, %v3392
            %v3394 = vrcp.pop %v3347
            %v3395 = vmul.f32 %v3256, %v3394
            %v3396 = vrcp.pop %v3352
            %v3397 = vmul.f32 %v3257, %v3396
            %v3398 = vrcp.pop %v3357
            %v3399 = vmul.f32 %v3258, %v3398
            %v3400 = vrcp.pop %v3362
            %v3401 = vmul.f32 %v3259, %v3400
            %v3402 = vrcp.pop %v3367
            %v3403 = vmul.f32 %v3260, %v3402
            %v3404 = vrcp.pop %v3372
            %v3405 = vmul.f32 %v3261, %v3404
            %v3406 = vmax.f32 %v3375, 0.0
            %v3407 = vmax.f32 %v3377, 0.0
            %v3408 = vmax.f32 %v3379, 0.0
            %v3409 = vmax.f32 %v3381, 0.0
            %v3410 = vmax.f32 %v3383, 0.0
            %v3411 = vmax.f32 %v3385, 0.0
            %v3412 = vmax.f32 %v3387, 0.0
            %v3413 = vmax.f32 %v3389, 0.0
            %v3414 = vmax.f32 %v3391, 0.0
            %v3415 = vmax.f32 %v3393, 0.0
            %v3416 = vmax.f32 %v3395, 0.0
            %v3417 = vmax.f32 %v3397, 0.0
            %v3418 = vmax.f32 %v3399, 0.0
            %v3419 = vmax.f32 %v3401, 0.0
            %v3420 = vmax.f32 %v3403, 0.0
            %v3421 = vmax.f32 %v3405, 0.0
            %v3422 = vrsqrt.pop %v3406
            %v3423 = vmul.f32 %v3406, %v3422
            %vm3424 = vcmp.eq.f32.partialorder %v3406, inf
            %v3425 = vsel %vm3424, %v3406, %v3423
            %vm3426 = vcmp.eq.f32.partialorder %v3406, 0.0
            %v3427 = vand.u32 %v3406, 2147483648
            %v3428 = vsel %vm3426, %v3427, %v3425
            %v3429 = vrsqrt.pop %v3407
            %v3430 = vmul.f32 %v3407, %v3429
            %vm3431 = vcmp.eq.f32.partialorder %v3407, inf
            %v3432 = vsel %vm3431, %v3407, %v3430
            %vm3433 = vcmp.eq.f32.partialorder %v3407, 0.0
            %v3434 = vand.u32 %v3407, 2147483648
            %v3435 = vsel %vm3433, %v3434, %v3432
            %v3436 = vrsqrt.pop %v3408
            %v3437 = vmul.f32 %v3408, %v3436
            %vm3438 = vcmp.eq.f32.partialorder %v3408, inf
            %v3439 = vsel %vm3438, %v3408, %v3437
            %vm3440 = vcmp.eq.f32.partialorder %v3408, 0.0
            %v3441 = vand.u32 %v3408, 2147483648
            %v3442 = vsel %vm3440, %v3441, %v3439
            %v3443 = vrsqrt.pop %v3409
            %v3444 = vmul.f32 %v3409, %v3443
            %vm3445 = vcmp.eq.f32.partialorder %v3409, inf
            %v3446 = vsel %vm3445, %v3409, %v3444
            %vm3447 = vcmp.eq.f32.partialorder %v3409, 0.0
            %v3448 = vand.u32 %v3409, 2147483648
            %v3449 = vsel %vm3447, %v3448, %v3446
            %v3450 = vrsqrt.pop %v3410
            %v3451 = vmul.f32 %v3410, %v3450
            %vm3452 = vcmp.eq.f32.partialorder %v3410, inf
            %v3453 = vsel %vm3452, %v3410, %v3451
            %vm3454 = vcmp.eq.f32.partialorder %v3410, 0.0
            %v3455 = vand.u32 %v3410, 2147483648
            %v3456 = vsel %vm3454, %v3455, %v3453
            %v3457 = vrsqrt.pop %v3411
            %v3458 = vmul.f32 %v3411, %v3457
            %vm3459 = vcmp.eq.f32.partialorder %v3411, inf
            %v3460 = vsel %vm3459, %v3411, %v3458
            %vm3461 = vcmp.eq.f32.partialorder %v3411, 0.0
            %v3462 = vand.u32 %v3411, 2147483648
            %v3463 = vsel %vm3461, %v3462, %v3460
            %v3464 = vrsqrt.pop %v3412
            %v3465 = vmul.f32 %v3412, %v3464
            %vm3466 = vcmp.eq.f32.partialorder %v3412, inf
            %v3467 = vsel %vm3466, %v3412, %v3465
            %vm3468 = vcmp.eq.f32.partialorder %v3412, 0.0
            %v3469 = vand.u32 %v3412, 2147483648
            %v3470 = vsel %vm3468, %v3469, %v3467
            %v3471 = vrsqrt.pop %v3413
            %v3472 = vmul.f32 %v3413, %v3471
            %vm3473 = vcmp.eq.f32.partialorder %v3413, inf
            %v3474 = vsel %vm3473, %v3413, %v3472
            %vm3475 = vcmp.eq.f32.partialorder %v3413, 0.0
            %v3476 = vand.u32 %v3413, 2147483648
            %v3477 = vsel %vm3475, %v3476, %v3474
            %v3478 = vrsqrt.pop %v3414
            %v3479 = vmul.f32 %v3414, %v3478
            %vm3480 = vcmp.eq.f32.partialorder %v3414, inf
            %v3481 = vsel %vm3480, %v3414, %v3479
            %vm3482 = vcmp.eq.f32.partialorder %v3414, 0.0
            %v3483 = vand.u32 %v3414, 2147483648
            %v3484 = vsel %vm3482, %v3483, %v3481
            %v3485 = vrsqrt.pop %v3415
            %v3486 = vmul.f32 %v3415, %v3485
            %vm3487 = vcmp.eq.f32.partialorder %v3415, inf
            %v3488 = vsel %vm3487, %v3415, %v3486
            %vm3489 = vcmp.eq.f32.partialorder %v3415, 0.0
            %v3490 = vand.u32 %v3415, 2147483648
            %v3491 = vsel %vm3489, %v3490, %v3488
            %v3492 = vrsqrt.pop %v3416
            %v3493 = vmul.f32 %v3416, %v3492
            %vm3494 = vcmp.eq.f32.partialorder %v3416, inf
            %v3495 = vsel %vm3494, %v3416, %v3493
            %vm3496 = vcmp.eq.f32.partialorder %v3416, 0.0
            %v3497 = vand.u32 %v3416, 2147483648
            %v3498 = vsel %vm3496, %v3497, %v3495
            %v3499 = vrsqrt.pop %v3417
            %v3500 = vmul.f32 %v3417, %v3499
            %vm3501 = vcmp.eq.f32.partialorder %v3417, inf
            %v3502 = vsel %vm3501, %v3417, %v3500
            %vm3503 = vcmp.eq.f32.partialorder %v3417, 0.0
            %v3504 = vand.u32 %v3417, 2147483648
            %v3505 = vsel %vm3503, %v3504, %v3502
            %v3506 = vrsqrt.pop %v3418
            %v3507 = vmul.f32 %v3418, %v3506
            %vm3508 = vcmp.eq.f32.partialorder %v3418, inf
            %v3509 = vsel %vm3508, %v3418, %v3507
            %vm3510 = vcmp.eq.f32.partialorder %v3418, 0.0
            %v3511 = vand.u32 %v3418, 2147483648
            %v3512 = vsel %vm3510, %v3511, %v3509
            %v3513 = vrsqrt.pop %v3419
            %v3514 = vmul.f32 %v3419, %v3513
            %vm3515 = vcmp.eq.f32.partialorder %v3419, inf
            %v3516 = vsel %vm3515, %v3419, %v3514
            %vm3517 = vcmp.eq.f32.partialorder %v3419, 0.0
            %v3518 = vand.u32 %v3419, 2147483648
            %v3519 = vsel %vm3517, %v3518, %v3516
            %v3520 = vrsqrt.pop %v3420
            %v3521 = vmul.f32 %v3420, %v3520
            %vm3522 = vcmp.eq.f32.partialorder %v3420, inf
            %v3523 = vsel %vm3522, %v3420, %v3521
            %vm3524 = vcmp.eq.f32.partialorder %v3420, 0.0
            %v3525 = vand.u32 %v3420, 2147483648
            %v3526 = vsel %vm3524, %v3525, %v3523
            %v3527 = vrsqrt.pop %v3421
            %v3528 = vmul.f32 %v3421, %v3527
            %vm3529 = vcmp.eq.f32.partialorder %v3421, inf
            %v3530 = vsel %vm3529, %v3421, %v3528
            %vm3531 = vcmp.eq.f32.partialorder %v3421, 0.0
            %v3532 = vand.u32 %v3421, 2147483648
            %v3533 = vsel %vm3531, %v3532, %v3530
            %v3534 = vadd.f32 %v3428, 1e-05
            %v3535 = vadd.f32 %v3435, 1e-05
            %v3536 = vadd.f32 %v3442, 1e-05
            %v3537 = vadd.f32 %v3449, 1e-05
            %v3538 = vadd.f32 %v3456, 1e-05
            %v3539 = vadd.f32 %v3463, 1e-05
            %v3540 = vadd.f32 %v3470, 1e-05
            %v3541 = vadd.f32 %v3477, 1e-05
            %v3542 = vadd.f32 %v3484, 1e-05
            %v3543 = vadd.f32 %v3491, 1e-05
            %v3544 = vadd.f32 %v3498, 1e-05
            %v3545 = vadd.f32 %v3505, 1e-05
            %v3546 = vadd.f32 %v3512, 1e-05
            %v3547 = vadd.f32 %v3519, 1e-05
            %v3548 = vadd.f32 %v3526, 1e-05
            %v3549 = vadd.f32 %v3533, 1e-05
            %v3550 = vrcp.pop %v3534
            %v3551 = vrcp.pop %v3535
            %v3552 = vrcp.pop %v3536
            %v3553 = vrcp.pop %v3537
            %v3554 = vrcp.pop %v3538
            %v3555 = vrcp.pop %v3539
            %v3556 = vrcp.pop %v3540
            %v3557 = vrcp.pop %v3541
            %v3558 = vrcp.pop %v3542
            %v3559 = vrcp.pop %v3543
            %v3560 = vrcp.pop %v3544
            %v3561 = vrcp.pop %v3545
            %v3562 = vrcp.pop %v3546
            %v3563 = vrcp.pop %v3547
            %v3564 = vrcp.pop %v3548
            %v3565 = vrcp.pop %v3549
            %v3566 = vld [vmem:[%s5] sm:$0x1]
            %v3568 = vlaneseq
            %v3569 = vshrl.u32 %v3568, 7
            %v3570 = vsub.s32 0, %v3569
            %v3571 = vrot.slane %v3566, %v3570
            %v3573 = vmul.f32 %v3571, %v3550
            %v3574 = vmul.f32 %v3571, %v3551
            %v3575 = vmul.f32 %v3571, %v3552
            %v3576 = vmul.f32 %v3571, %v3553
            %v3577 = vmul.f32 %v3571, %v3554
            %v3578 = vmul.f32 %v3571, %v3555
            %v3579 = vmul.f32 %v3571, %v3556
            %v3580 = vmul.f32 %v3571, %v3557
            %v3581 = vmul.f32 %v3571, %v3558
            %v3582 = vmul.f32 %v3571, %v3559
            %v3583 = vmul.f32 %v3571, %v3560
            %v3584 = vmul.f32 %v3571, %v3561
            %v3585 = vmul.f32 %v3571, %v3562
            %v3586 = vmul.f32 %v3571, %v3563
            %v3587 = vmul.f32 %v3571, %v3564
            %v3588 = vmul.f32 %v3571, %v3565
            %v3589 = vld [vmem:[%s6] sm:$0x1]
            %v3590 = vmul.f32 %v3198, %v3573
            %v3591 = vmul.f32 %v3199, %v3574
            %v3592 = vmul.f32 %v3200, %v3575
            %v3593 = vmul.f32 %v3201, %v3576
            %v3594 = vmul.f32 %v3202, %v3577
            %v3595 = vmul.f32 %v3203, %v3578
            %v3596 = vmul.f32 %v3204, %v3579
            %v3597 = vmul.f32 %v3205, %v3580
            %v3598 = vmul.f32 %v3206, %v3581
            %v3599 = vmul.f32 %v3207, %v3582
            %v3600 = vmul.f32 %v3208, %v3583
            %v3601 = vmul.f32 %v3209, %v3584
            %v3602 = vmul.f32 %v3210, %v3585
            %v3603 = vmul.f32 %v3211, %v3586
            %v3604 = vmul.f32 %v3212, %v3587
            %v3605 = vmul.f32 %v3213, %v3588
            %v3607 = vlaneseq
            %v3608 = vshrl.u32 %v3607, 7
            %v3609 = vsub.s32 0, %v3608
            %v3610 = vrot.slane %v3589, %v3609
            %v3612 = vsub.f32 %v3610, %v3590
            %v3613 = vsub.f32 %v3610, %v3591
            %v3614 = vsub.f32 %v3610, %v3592
            %v3615 = vsub.f32 %v3610, %v3593
            %v3616 = vsub.f32 %v3610, %v3594
            %v3617 = vsub.f32 %v3610, %v3595
            %v3618 = vsub.f32 %v3610, %v3596
            %v3619 = vsub.f32 %v3610, %v3597
            %v3620 = vsub.f32 %v3610, %v3598
            %v3621 = vsub.f32 %v3610, %v3599
            %v3622 = vsub.f32 %v3610, %v3600
            %v3623 = vsub.f32 %v3610, %v3601
            %v3624 = vsub.f32 %v3610, %v3602
            %v3625 = vsub.f32 %v3610, %v3603
            %v3626 = vsub.f32 %v3610, %v3604
            %v3627 = vsub.f32 %v3610, %v3605
            %vm3628 = vcmask 261120
            %3629 = vst.msk [vmem:[#allocation2] sm:$0xff] %vm3628, %v3573
            %3630 = vst.msk [vmem:[#allocation2 + $0x8] sm:$0xff] %vm3628, %v3574
            %3631 = vst.msk [vmem:[#allocation2 + $0x10] sm:$0xff] %vm3628, %v3575
            %3632 = vst.msk [vmem:[#allocation2 + $0x18] sm:$0xff] %vm3628, %v3576
            %3633 = vst.msk [vmem:[#allocation2 + $0x20] sm:$0xff] %vm3628, %v3577
            %3634 = vst.msk [vmem:[#allocation2 + $0x28] sm:$0xff] %vm3628, %v3578
            %3635 = vst.msk [vmem:[#allocation2 + $0x30] sm:$0xff] %vm3628, %v3579
            %3636 = vst.msk [vmem:[#allocation2 + $0x38] sm:$0xff] %vm3628, %v3580
            %3637 = vst.msk [vmem:[#allocation2 + $0x40] sm:$0xff] %vm3628, %v3581
            %3638 = vst.msk [vmem:[#allocation2 + $0x48] sm:$0xff] %vm3628, %v3582
            %3639 = vst.msk [vmem:[#allocation2 + $0x50] sm:$0xff] %vm3628, %v3583
            %3640 = vst.msk [vmem:[#allocation2 + $0x58] sm:$0xff] %vm3628, %v3584
            %3641 = vst.msk [vmem:[#allocation2 + $0x60] sm:$0xff] %vm3628, %v3585
            %3642 = vst.msk [vmem:[#allocation2 + $0x68] sm:$0xff] %vm3628, %v3586
            %3643 = vst.msk [vmem:[#allocation2 + $0x70] sm:$0xff] %vm3628, %v3587
            %3644 = vst.msk [vmem:[#allocation2 + $0x78] sm:$0xff] %vm3628, %v3588
            %3645 = vst.msk [vmem:[#allocation3] sm:$0xff] %vm3628, %v3612
            %3646 = vst.msk [vmem:[#allocation3 + $0x8] sm:$0xff] %vm3628, %v3613
            %3647 = vst.msk [vmem:[#allocation3 + $0x10] sm:$0xff] %vm3628, %v3614
            %3648 = vst.msk [vmem:[#allocation3 + $0x18] sm:$0xff] %vm3628, %v3615
            %3649 = vst.msk [vmem:[#allocation3 + $0x20] sm:$0xff] %vm3628, %v3616
            %3650 = vst.msk [vmem:[#allocation3 + $0x28] sm:$0xff] %vm3628, %v3617
            %3651 = vst.msk [vmem:[#allocation3 + $0x30] sm:$0xff] %vm3628, %v3618
            %3652 = vst.msk [vmem:[#allocation3 + $0x38] sm:$0xff] %vm3628, %v3619
            %3653 = vst.msk [vmem:[#allocation3 + $0x40] sm:$0xff] %vm3628, %v3620
            %3654 = vst.msk [vmem:[#allocation3 + $0x48] sm:$0xff] %vm3628, %v3621
            %3655 = vst.msk [vmem:[#allocation3 + $0x50] sm:$0xff] %vm3628, %v3622
            %3656 = vst.msk [vmem:[#allocation3 + $0x58] sm:$0xff] %vm3628, %v3623
            %3657 = vst.msk [vmem:[#allocation3 + $0x60] sm:$0xff] %vm3628, %v3624
            %3658 = vst.msk [vmem:[#allocation3 + $0x68] sm:$0xff] %vm3628, %v3625
            %3659 = vst.msk [vmem:[#allocation3 + $0x70] sm:$0xff] %vm3628, %v3626
            %3660 = vst.msk [vmem:[#allocation3 + $0x78] sm:$0xff] %vm3628, %v3627
          $region64: #{tpu_custom_call.1} parent=59 // pred_fallthru
            _
          %v3661 = vlaneseq
          %v3662 = vshrl.u32 %v3661, 7
          %v3663 = vadd.s32 %v3662, 8
          %v3664 = vadd.s32 %v3662, 16
          %v3665 = vadd.s32 %v3662, 24
          %v3666 = vstv %s295
          %v3667 = vadd.s32 %v3662, %v3666
          %v3668 = vadd.s32 %v3663, %v3666
          %v3669 = vadd.s32 %v3664, %v3666
          %v3670 = vadd.s32 %v3665, %v3666
          %v3671 = vld [vmem:[%s3] sm:$0x1]
          %v3672 = vlaneseq
          %v3673 = vshrl.u32 %v3672, 7
          %v3674 = vsub.s32 0, %v3673
          %v3675 = vrot.slane %v3671, %v3674
          %vm3676 = vcmp.ge.s32.totalorder %v3667, %v3675
          %vm3677 = vcmp.ge.s32.totalorder %v3668, %v3675
          %vm3678 = vcmp.ge.s32.totalorder %v3669, %v3675
          %vm3679 = vcmp.ge.s32.totalorder %v3670, %v3675
          %v3680 = vld [vmem:[%s4] sm:$0x1]
          %v3681 = vlaneseq
          %v3682 = vshrl.u32 %v3681, 7
          %v3683 = vsub.s32 0, %v3682
          %v3684 = vrot.slane %v3680, %v3683
          %vm3685 = vcmp.lt.s32.totalorder %v3667, %v3684
          %vm3686 = vcmp.lt.s32.totalorder %v3668, %v3684
          %vm3687 = vcmp.lt.s32.totalorder %v3669, %v3684
          %vm3688 = vcmp.lt.s32.totalorder %v3670, %v3684
          %vm3689 = vmand %vm3676, %vm3685
          %vm3690 = vmand %vm3677, %vm3686
          %vm3691 = vmand %vm3678, %vm3687
          %vm3692 = vmand %vm3679, %vm3688
          %v3693 = vsel %vm3689, 1.0, 0.0
          %v3694 = vsel %vm3690, 1.0, 0.0
          %v3695 = vsel %vm3691, 1.0, 0.0
          %v3696 = vsel %vm3692, 1.0, 0.0
          %v3697 = vld [vmem:[#allocation2] sm:$0xff]
          %v3698 = vld [vmem:[#allocation2 + $0x8] sm:$0xff]
          %v3699 = vld [vmem:[#allocation2 + $0x10] sm:$0xff]
          %v3700 = vld [vmem:[#allocation2 + $0x18] sm:$0xff]
          %v3701 = vld [vmem:[#allocation2 + $0x20] sm:$0xff]
          %v3702 = vld [vmem:[#allocation2 + $0x28] sm:$0xff]
          %v3703 = vld [vmem:[#allocation2 + $0x30] sm:$0xff]
          %v3704 = vld [vmem:[#allocation2 + $0x38] sm:$0xff]
          %v3705 = vld [vmem:[#allocation2 + $0x40] sm:$0xff]
          %v3706 = vld [vmem:[#allocation2 + $0x48] sm:$0xff]
          %v3707 = vld [vmem:[#allocation2 + $0x50] sm:$0xff]
          %v3708 = vld [vmem:[#allocation2 + $0x58] sm:$0xff]
          %v3709 = vld [vmem:[#allocation2 + $0x60] sm:$0xff]
          %v3710 = vld [vmem:[#allocation2 + $0x68] sm:$0xff]
          %v3711 = vld [vmem:[#allocation2 + $0x70] sm:$0xff]
          %v3712 = vld [vmem:[#allocation2 + $0x78] sm:$0xff]
          %3713 = vmatprep.subr.mxu0 0.0
          %v3714 = vand.u32 %v3697, 4294901760
          %3715 = vmatpush1.msra.mxu0 %v3714
          %3716 = vmatprep.subr.mxu0 0.0
          %v3717 = vand.u32 %v3698, 4294901760
          %3718 = vmatpush1.msra.mxu0 %v3717
          %3719 = vmatprep.subr.mxu0 0.0
          %v3720 = vand.u32 %v3699, 4294901760
          %3721 = vmatpush1.msra.mxu0 %v3720
          %3722 = vmatprep.subr.mxu0 0.0
          %v3723 = vand.u32 %v3700, 4294901760
          %3724 = vmatpush1.msra.mxu0 %v3723
          %3725 = vmatprep.subr.mxu0 0.0
          %v3726 = vand.u32 %v3701, 4294901760
          %3727 = vmatpush1.msra.mxu0 %v3726
          %3728 = vmatprep.subr.mxu0 0.0
          %v3729 = vand.u32 %v3702, 4294901760
          %3730 = vmatpush1.msra.mxu0 %v3729
          %3731 = vmatprep.subr.mxu0 0.0
          %v3732 = vand.u32 %v3703, 4294901760
          %3733 = vmatpush1.msra.mxu0 %v3732
          %3734 = vmatprep.subr.mxu0 0.0
          %v3735 = vand.u32 %v3704, 4294901760
          %3736 = vmatpush1.msra.mxu0 %v3735
          %3737 = vmatprep.subr.mxu0 0.0
          %v3738 = vand.u32 %v3705, 4294901760
          %3739 = vmatpush1.msra.mxu0 %v3738
          %3740 = vmatprep.subr.mxu0 0.0
          %v3741 = vand.u32 %v3706, 4294901760
          %3742 = vmatpush1.msra.mxu0 %v3741
          %3743 = vmatprep.subr.mxu0 0.0
          %v3744 = vand.u32 %v3707, 4294901760
          %3745 = vmatpush1.msra.mxu0 %v3744
          %3746 = vmatprep.subr.mxu0 0.0
          %v3747 = vand.u32 %v3708, 4294901760
          %3748 = vmatpush1.msra.mxu0 %v3747
          %3749 = vmatprep.subr.mxu0 0.0
          %v3750 = vand.u32 %v3709, 4294901760
          %3751 = vmatpush1.msra.mxu0 %v3750
          %3752 = vmatprep.subr.mxu0 0.0
          %v3753 = vand.u32 %v3710, 4294901760
          %3754 = vmatpush1.msra.mxu0 %v3753
          %3755 = vmatprep.subr.mxu0 0.0
          %v3756 = vand.u32 %v3711, 4294901760
          %3757 = vmatpush1.msra.mxu0 %v3756
          %3758 = vmatprep.subr.mxu0 0.0
          %v3759 = vand.u32 %v3712, 4294901760
          %3760 = vmatpush1.msra.mxu0 %v3759
          %3761 = vmatprep.subr.mxu0 0.0
          %3762 = vmatpush1.msra.mxu0 0.0
          %3763 = vmatprep.subr.mxu0 0.0
          %3764 = vmatpush1.msra.mxu0 0.0
          %3765 = vmatprep.subr.mxu0 0.0
          %3766 = vmatpush1.msra.mxu0 0.0
          %3767 = vmatprep.subr.mxu0 0.0
          %3768 = vmatpush1.msra.mxu0 0.0
          %3769 = vmatprep.subr.mxu0 0.0
          %3770 = vmatpush1.msra.mxu0 0.0
          %3771 = vmatprep.subr.mxu0 0.0
          %3772 = vmatpush1.msra.mxu0 0.0
          %3773 = vmatprep.subr.mxu0 0.0
          %3774 = vmatpush1.msra.mxu0 0.0
          %3775 = vmatprep.subr.mxu0 0.0
          %3776 = vmatpush1.msra.mxu0 0.0
          %3777 = vmatprep.subr.mxu0 0.0
          %3778 = vmatpush1.msra.mxu0 0.0
          %3779 = vmatprep.subr.mxu0 0.0
          %3780 = vmatpush1.msra.mxu0 0.0
          %3781 = vmatprep.subr.mxu0 0.0
          %3782 = vmatpush1.msra.mxu0 0.0
          %3783 = vmatprep.subr.mxu0 0.0
          %3784 = vmatpush1.msra.mxu0 0.0
          %3785 = vmatprep.subr.mxu0 0.0
          %3786 = vmatpush1.msra.mxu0 0.0
          %3787 = vmatprep.subr.mxu0 0.0
          %3788 = vmatpush1.msra.mxu0 0.0
          %3789 = vmatprep.subr.mxu0 0.0
          %3790 = vmatpush1.msra.mxu0 0.0
          %3791 = vmatprep.subr.mxu0 0.0
          %3792 = vmatpush1.msra.mxu0 0.0
          %3793 = vmatprep.mubr.f32.mxu0 0.0
          %v3794 = vsub.f32 %v3693, %v3693
          %v3795 = vand.u32 %v3794, 4294901760
          %v3796 = vsub.f32 %v3794, %v3795
          %v3797 = vand.u32 %v3796, 4294901760
          %3798 = vmatmul.mubr.f32.gmra.mrb[0].mxu0 %v3797
          %v3799 = vpop.f32.mrb[0].mxu0
          %v3800 = vadd.f32 0.0, %v3799
          %v3801 = vpop.f32.mrb[0].mxu0
          %3802 = vmatprep.mubr.f32.mxu0 0.0
          %v3803 = vsub.f32 %v3694, %v3694
          %v3804 = vand.u32 %v3803, 4294901760
          %v3805 = vsub.f32 %v3803, %v3804
          %v3806 = vand.u32 %v3805, 4294901760
          %3807 = vmatmul.mubr.f32.gmra.mrb[0].mxu0 %v3806
          %v3808 = vpop.f32.mrb[0].mxu0
          %v3809 = vadd.f32 0.0, %v3808
          %v3810 = vpop.f32.mrb[0].mxu0
          %3811 = vmatprep.mubr.f32.mxu0 0.0
          %v3812 = vsub.f32 %v3695, %v3695
          %v3813 = vand.u32 %v3812, 4294901760
          %v3814 = vsub.f32 %v3812, %v3813
          %v3815 = vand.u32 %v3814, 4294901760
          %3816 = vmatmul.mubr.f32.gmra.mrb[0].mxu0 %v3815
          %v3817 = vpop.f32.mrb[0].mxu0
          %v3818 = vadd.f32 0.0, %v3817
          %v3819 = vpop.f32.mrb[0].mxu0
          %3820 = vmatprep.mubr.f32.mxu0 0.0
          %v3821 = vsub.f32 %v3696, %v3696
          %v3822 = vand.u32 %v3821, 4294901760
          %v3823 = vsub.f32 %v3821, %v3822
          %v3824 = vand.u32 %v3823, 4294901760
          %3825 = vmatmul.mubr.f32.gmra.mrb[0].mxu0 %v3824
          %v3826 = vpop.f32.mrb[0].mxu0
          %v3827 = vadd.f32 0.0, %v3826
          %v3828 = vpop.f32.mrb[0].mxu0
          %3829 = vdwg.mxu0
          %3830 = vmatprep.subr.mxu0 0.0
          %v3831 = vand.u32 %v3697, 4294901760
          %v3832 = vsub.f32 %v3697, %v3831
          %v3833 = vand.u32 %v3832, 4294901760
          %v3834 = vsub.f32 %v3832, %v3833
          %v3835 = vand.u32 %v3834, 4294901760
          %3836 = vmatpush1.msra.mxu0 %v3835
          %3837 = vmatprep.subr.mxu0 0.0
          %v3838 = vand.u32 %v3698, 4294901760
          %v3839 = vsub.f32 %v3698, %v3838
          %v3840 = vand.u32 %v3839, 4294901760
          %v3841 = vsub.f32 %v3839, %v3840
          %v3842 = vand.u32 %v3841, 4294901760
          %3843 = vmatpush1.msra.mxu0 %v3842
          %3844 = vmatprep.subr.mxu0 0.0
          %v3845 = vand.u32 %v3699, 4294901760
          %v3846 = vsub.f32 %v3699, %v3845
          %v3847 = vand.u32 %v3846, 4294901760
          %v3848 = vsub.f32 %v3846, %v3847
          %v3849 = vand.u32 %v3848, 4294901760
          %3850 = vmatpush1.msra.mxu0 %v3849
          %3851 = vmatprep.subr.mxu0 0.0
          %v3852 = vand.u32 %v3700, 4294901760
          %v3853 = vsub.f32 %v3700, %v3852
          %v3854 = vand.u32 %v3853, 4294901760
          %v3855 = vsub.f32 %v3853, %v3854
          %v3856 = vand.u32 %v3855, 4294901760
          %3857 = vmatpush1.msra.mxu0 %v3856
          %3858 = vmatprep.subr.mxu0 0.0
          %v3859 = vand.u32 %v3701, 4294901760
          %v3860 = vsub.f32 %v3701, %v3859
          %v3861 = vand.u32 %v3860, 4294901760
          %v3862 = vsub.f32 %v3860, %v3861
          %v3863 = vand.u32 %v3862, 4294901760
          %3864 = vmatpush1.msra.mxu0 %v3863
          %3865 = vmatprep.subr.mxu0 0.0
          %v3866 = vand.u32 %v3702, 4294901760
          %v3867 = vsub.f32 %v3702, %v3866
          %v3868 = vand.u32 %v3867, 4294901760
          %v3869 = vsub.f32 %v3867, %v3868
          %v3870 = vand.u32 %v3869, 4294901760
          %3871 = vmatpush1.msra.mxu0 %v3870
          %3872 = vmatprep.subr.mxu0 0.0
          %v3873 = vand.u32 %v3703, 4294901760
          %v3874 = vsub.f32 %v3703, %v3873
          %v3875 = vand.u32 %v3874, 4294901760
          %v3876 = vsub.f32 %v3874, %v3875
          %v3877 = vand.u32 %v3876, 4294901760
          %3878 = vmatpush1.msra.mxu0 %v3877
          %3879 = vmatprep.subr.mxu0 0.0
          %v3880 = vand.u32 %v3704, 4294901760
          %v3881 = vsub.f32 %v3704, %v3880
          %v3882 = vand.u32 %v3881, 4294901760
          %v3883 = vsub.f32 %v3881, %v3882
          %v3884 = vand.u32 %v3883, 4294901760
          %3885 = vmatpush1.msra.mxu0 %v3884
          %3886 = vmatprep.subr.mxu0 0.0
          %v3887 = vand.u32 %v3705, 4294901760
          %v3888 = vsub.f32 %v3705, %v3887
          %v3889 = vand.u32 %v3888, 4294901760
          %v3890 = vsub.f32 %v3888, %v3889
          %v3891 = vand.u32 %v3890, 4294901760
          %3892 = vmatpush1.msra.mxu0 %v3891
          %3893 = vmatprep.subr.mxu0 0.0
          %v3894 = vand.u32 %v3706, 4294901760
          %v3895 = vsub.f32 %v3706, %v3894
          %v3896 = vand.u32 %v3895, 4294901760
          %v3897 = vsub.f32 %v3895, %v3896
          %v3898 = vand.u32 %v3897, 4294901760
          %3899 = vmatpush1.msra.mxu0 %v3898
          %3900 = vmatprep.subr.mxu0 0.0
          %v3901 = vand.u32 %v3707, 4294901760
          %v3902 = vsub.f32 %v3707, %v3901
          %v3903 = vand.u32 %v3902, 4294901760
          %v3904 = vsub.f32 %v3902, %v3903
          %v3905 = vand.u32 %v3904, 4294901760
          %3906 = vmatpush1.msra.mxu0 %v3905
          %3907 = vmatprep.subr.mxu0 0.0
          %v3908 = vand.u32 %v3708, 4294901760
          %v3909 = vsub.f32 %v3708, %v3908
          %v3910 = vand.u32 %v3909, 4294901760
          %v3911 = vsub.f32 %v3909, %v3910
          %v3912 = vand.u32 %v3911, 4294901760
          %3913 = vmatpush1.msra.mxu0 %v3912
          %3914 = vmatprep.subr.mxu0 0.0
          %v3915 = vand.u32 %v3709, 4294901760
          %v3916 = vsub.f32 %v3709, %v3915
          %v3917 = vand.u32 %v3916, 4294901760
          %v3918 = vsub.f32 %v3916, %v3917
          %v3919 = vand.u32 %v3918, 4294901760
          %3920 = vmatpush1.msra.mxu0 %v3919
          %3921 = vmatprep.subr.mxu0 0.0
          %v3922 = vand.u32 %v3710, 4294901760
          %v3923 = vsub.f32 %v3710, %v3922
          %v3924 = vand.u32 %v3923, 4294901760
          %v3925 = vsub.f32 %v3923, %v3924
          %v3926 = vand.u32 %v3925, 4294901760
          %3927 = vmatpush1.msra.mxu0 %v3926
          %3928 = vmatprep.subr.mxu0 0.0
          %v3929 = vand.u32 %v3711, 4294901760
          %v3930 = vsub.f32 %v3711, %v3929
          %v3931 = vand.u32 %v3930, 4294901760
          %v3932 = vsub.f32 %v3930, %v3931
          %v3933 = vand.u32 %v3932, 4294901760
          %3934 = vmatpush1.msra.mxu0 %v3933
          %3935 = vmatprep.subr.mxu0 0.0
          %v3936 = vand.u32 %v3712, 4294901760
          %v3937 = vsub.f32 %v3712, %v3936
          %v3938 = vand.u32 %v3937, 4294901760
          %v3939 = vsub.f32 %v3937, %v3938
          %v3940 = vand.u32 %v3939, 4294901760
          %3941 = vmatpush1.msra.mxu0 %v3940
          %3942 = vmatprep.subr.mxu0 0.0
          %3943 = vmatpush1.msra.mxu0 0.0
          %3944 = vmatprep.subr.mxu0 0.0
          %3945 = vmatpush1.msra.mxu0 0.0
          %3946 = vmatprep.subr.mxu0 0.0
          %3947 = vmatpush1.msra.mxu0 0.0
          %3948 = vmatprep.subr.mxu0 0.0
          %3949 = vmatpush1.msra.mxu0 0.0
          %3950 = vmatprep.subr.mxu0 0.0
          %3951 = vmatpush1.msra.mxu0 0.0
          %3952 = vmatprep.subr.mxu0 0.0
          %3953 = vmatpush1.msra.mxu0 0.0
          %3954 = vmatprep.subr.mxu0 0.0
          %3955 = vmatpush1.msra.mxu0 0.0
          %3956 = vmatprep.subr.mxu0 0.0
          %3957 = vmatpush1.msra.mxu0 0.0
          %3958 = vmatprep.subr.mxu0 0.0
          %3959 = vmatpush1.msra.mxu0 0.0
          %3960 = vmatprep.subr.mxu0 0.0
          %3961 = vmatpush1.msra.mxu0 0.0
          %3962 = vmatprep.subr.mxu0 0.0
          %3963 = vmatpush1.msra.mxu0 0.0
          %3964 = vmatprep.subr.mxu0 0.0
          %3965 = vmatpush1.msra.mxu0 0.0
          %3966 = vmatprep.subr.mxu0 0.0
          %3967 = vmatpush1.msra.mxu0 0.0
          %3968 = vmatprep.subr.mxu0 0.0
          %3969 = vmatpush1.msra.mxu0 0.0
          %3970 = vmatprep.subr.mxu0 0.0
          %3971 = vmatpush1.msra.mxu0 0.0
          %3972 = vmatprep.subr.mxu0 0.0
          %3973 = vmatpush1.msra.mxu0 0.0
          %3974 = vmatprep.mubr.f32.mxu0 0.0
          %3975 = vmatmul.mubr.f32.gmra.mrb[0].mxu0 %v3693
          %v3976 = vpop.f32.mrb[0].mxu0
          %v3977 = vadd.f32 %v3800, %v3976
          %v3978 = vpop.f32.mrb[0].mxu0
          %3979 = vmatprep.mubr.f32.mxu0 0.0
          %3980 = vmatmul.mubr.f32.gmra.mrb[0].mxu0 %v3694
          %v3981 = vpop.f32.mrb[0].mxu0
          %v3982 = vadd.f32 %v3809, %v3981
          %v3983 = vpop.f32.mrb[0].mxu0
          %3984 = vmatprep.mubr.f32.mxu0 0.0
          %3985 = vmatmul.mubr.f32.gmra.mrb[0].mxu0 %v3695
          %v3986 = vpop.f32.mrb[0].mxu0
          %v3987 = vadd.f32 %v3818, %v3986
          %v3988 = vpop.f32.mrb[0].mxu0
          %3989 = vmatprep.mubr.f32.mxu0 0.0
          %3990 = vmatmul.mubr.f32.gmra.mrb[0].mxu0 %v3696
          %v3991 = vpop.f32.mrb[0].mxu0
          %v3992 = vadd.f32 %v3827, %v3991
          %v3993 = vpop.f32.mrb[0].mxu0
          %3994 = vdwg.mxu0
          %3995 = vmatprep.subr.mxu0 0.0
          %v3996 = vand.u32 %v3697, 4294901760
          %v3997 = vsub.f32 %v3697, %v3996
          %3998 = vmatpush1.msra.mxu0 %v3997
          %3999 = vmatprep.subr.mxu0 0.0
          %v4000 = vand.u32 %v3698, 4294901760
          %v4001 = vsub.f32 %v3698, %v4000
          %4002 = vmatpush1.msra.mxu0 %v4001
          %4003 = vmatprep.subr.mxu0 0.0
          %v4004 = vand.u32 %v3699, 4294901760
          %v4005 = vsub.f32 %v3699, %v4004
          %4006 = vmatpush1.msra.mxu0 %v4005
          %4007 = vmatprep.subr.mxu0 0.0
          %v4008 = vand.u32 %v3700, 4294901760
          %v4009 = vsub.f32 %v3700, %v4008
          %4010 = vmatpush1.msra.mxu0 %v4009
          %4011 = vmatprep.subr.mxu0 0.0
          %v4012 = vand.u32 %v3701, 4294901760
          %v4013 = vsub.f32 %v3701, %v4012
          %4014 = vmatpush1.msra.mxu0 %v4013
          %4015 = vmatprep.subr.mxu0 0.0
          %v4016 = vand.u32 %v3702, 4294901760
          %v4017 = vsub.f32 %v3702, %v4016
          %4018 = vmatpush1.msra.mxu0 %v4017
          %4019 = vmatprep.subr.mxu0 0.0
          %v4020 = vand.u32 %v3703, 4294901760
          %v4021 = vsub.f32 %v3703, %v4020
          %4022 = vmatpush1.msra.mxu0 %v4021
          %4023 = vmatprep.subr.mxu0 0.0
          %v4024 = vand.u32 %v3704, 4294901760
          %v4025 = vsub.f32 %v3704, %v4024
          %4026 = vmatpush1.msra.mxu0 %v4025
          %4027 = vmatprep.subr.mxu0 0.0
          %v4028 = vand.u32 %v3705, 4294901760
          %v4029 = vsub.f32 %v3705, %v4028
          %4030 = vmatpush1.msra.mxu0 %v4029
          %4031 = vmatprep.subr.mxu0 0.0
          %v4032 = vand.u32 %v3706, 4294901760
          %v4033 = vsub.f32 %v3706, %v4032
          %4034 = vmatpush1.msra.mxu0 %v4033
          %4035 = vmatprep.subr.mxu0 0.0
          %v4036 = vand.u32 %v3707, 4294901760
          %v4037 = vsub.f32 %v3707, %v4036
          %4038 = vmatpush1.msra.mxu0 %v4037
          %4039 = vmatprep.subr.mxu0 0.0
          %v4040 = vand.u32 %v3708, 4294901760
          %v4041 = vsub.f32 %v3708, %v4040
          %4042 = vmatpush1.msra.mxu0 %v4041
          %4043 = vmatprep.subr.mxu0 0.0
          %v4044 = vand.u32 %v3709, 4294901760
          %v4045 = vsub.f32 %v3709, %v4044
          %4046 = vmatpush1.msra.mxu0 %v4045
          %4047 = vmatprep.subr.mxu0 0.0
          %v4048 = vand.u32 %v3710, 4294901760
          %v4049 = vsub.f32 %v3710, %v4048
          %4050 = vmatpush1.msra.mxu0 %v4049
          %4051 = vmatprep.subr.mxu0 0.0
          %v4052 = vand.u32 %v3711, 4294901760
          %v4053 = vsub.f32 %v3711, %v4052
          %4054 = vmatpush1.msra.mxu0 %v4053
          %4055 = vmatprep.subr.mxu0 0.0
          %v4056 = vand.u32 %v3712, 4294901760
          %v4057 = vsub.f32 %v3712, %v4056
          %4058 = vmatpush1.msra.mxu0 %v4057
          %4059 = vmatprep.subr.mxu0 0.0
          %4060 = vmatpush1.msra.mxu0 0.0
          %4061 = vmatprep.subr.mxu0 0.0
          %4062 = vmatpush1.msra.mxu0 0.0
          %4063 = vmatprep.subr.mxu0 0.0
          %4064 = vmatpush1.msra.mxu0 0.0
          %4065 = vmatprep.subr.mxu0 0.0
          %4066 = vmatpush1.msra.mxu0 0.0
          %4067 = vmatprep.subr.mxu0 0.0
          %4068 = vmatpush1.msra.mxu0 0.0
          %4069 = vmatprep.subr.mxu0 0.0
          %4070 = vmatpush1.msra.mxu0 0.0
          %4071 = vmatprep.subr.mxu0 0.0
          %4072 = vmatpush1.msra.mxu0 0.0
          %4073 = vmatprep.subr.mxu0 0.0
          %4074 = vmatpush1.msra.mxu0 0.0
          %4075 = vmatprep.subr.mxu0 0.0
          %4076 = vmatpush1.msra.mxu0 0.0
          %4077 = vmatprep.subr.mxu0 0.0
          %4078 = vmatpush1.msra.mxu0 0.0
          %4079 = vmatprep.subr.mxu0 0.0
          %4080 = vmatpush1.msra.mxu0 0.0
          %4081 = vmatprep.subr.mxu0 0.0
          %4082 = vmatpush1.msra.mxu0 0.0
          %4083 = vmatprep.subr.mxu0 0.0
          %4084 = vmatpush1.msra.mxu0 0.0
          %4085 = vmatprep.subr.mxu0 0.0
          %4086 = vmatpush1.msra.mxu0 0.0
          %4087 = vmatprep.subr.mxu0 0.0
          %4088 = vmatpush1.msra.mxu0 0.0
          %4089 = vmatprep.subr.mxu0 0.0
          %4090 = vmatpush1.msra.mxu0 0.0
          %4091 = vmatprep.mubr.f32.mxu0 0.0
          %v4092 = vsub.f32 %v3693, %v3693
          %4093 = vmatmul.mubr.f32.gmra.mrb[0].mxu0 %v4092
          %v4094 = vpop.f32.mrb[0].mxu0
          %v4095 = vadd.f32 %v3977, %v4094
          %v4096 = vpop.f32.mrb[0].mxu0
          %4097 = vmatprep.mubr.f32.mxu0 0.0
          %v4098 = vsub.f32 %v3694, %v3694
          %4099 = vmatmul.mubr.f32.gmra.mrb[0].mxu0 %v4098
          %v4100 = vpop.f32.mrb[0].mxu0
          %v4101 = vadd.f32 %v3982, %v4100
          %v4102 = vpop.f32.mrb[0].mxu0
          %4103 = vmatprep.mubr.f32.mxu0 0.0
          %v4104 = vsub.f32 %v3695, %v3695
          %4105 = vmatmul.mubr.f32.gmra.mrb[0].mxu0 %v4104
          %v4106 = vpop.f32.mrb[0].mxu0
          %v4107 = vadd.f32 %v3987, %v4106
          %v4108 = vpop.f32.mrb[0].mxu0
          %4109 = vmatprep.mubr.f32.mxu0 0.0
          %v4110 = vsub.f32 %v3696, %v3696
          %4111 = vmatmul.mubr.f32.gmra.mrb[0].mxu0 %v4110
          %v4112 = vpop.f32.mrb[0].mxu0
          %v4113 = vadd.f32 %v3992, %v4112
          %v4114 = vpop.f32.mrb[0].mxu0
          %4115 = vdwg.mxu0
          %4116 = vmatprep.subr.mxu0 0.0
          %v4117 = vand.u32 %v3697, 4294901760
          %4118 = vmatpush1.msra.mxu0 %v4117
          %4119 = vmatprep.subr.mxu0 0.0
          %v4120 = vand.u32 %v3698, 4294901760
          %4121 = vmatpush1.msra.mxu0 %v4120
          %4122 = vmatprep.subr.mxu0 0.0
          %v4123 = vand.u32 %v3699, 4294901760
          %4124 = vmatpush1.msra.mxu0 %v4123
          %4125 = vmatprep.subr.mxu0 0.0
          %v4126 = vand.u32 %v3700, 4294901760
          %4127 = vmatpush1.msra.mxu0 %v4126
          %4128 = vmatprep.subr.mxu0 0.0
          %v4129 = vand.u32 %v3701, 4294901760
          %4130 = vmatpush1.msra.mxu0 %v4129
          %4131 = vmatprep.subr.mxu0 0.0
          %v4132 = vand.u32 %v3702, 4294901760
          %4133 = vmatpush1.msra.mxu0 %v4132
          %4134 = vmatprep.subr.mxu0 0.0
          %v4135 = vand.u32 %v3703, 4294901760
          %4136 = vmatpush1.msra.mxu0 %v4135
          %4137 = vmatprep.subr.mxu0 0.0
          %v4138 = vand.u32 %v3704, 4294901760
          %4139 = vmatpush1.msra.mxu0 %v4138
          %4140 = vmatprep.subr.mxu0 0.0
          %v4141 = vand.u32 %v3705, 4294901760
          %4142 = vmatpush1.msra.mxu0 %v4141
          %4143 = vmatprep.subr.mxu0 0.0
          %v4144 = vand.u32 %v3706, 4294901760
          %4145 = vmatpush1.msra.mxu0 %v4144
          %4146 = vmatprep.subr.mxu0 0.0
          %v4147 = vand.u32 %v3707, 4294901760
          %4148 = vmatpush1.msra.mxu0 %v4147
          %4149 = vmatprep.subr.mxu0 0.0
          %v4150 = vand.u32 %v3708, 4294901760
          %4151 = vmatpush1.msra.mxu0 %v4150
          %4152 = vmatprep.subr.mxu0 0.0
          %v4153 = vand.u32 %v3709, 4294901760
          %4154 = vmatpush1.msra.mxu0 %v4153
          %4155 = vmatprep.subr.mxu0 0.0
          %v4156 = vand.u32 %v3710, 4294901760
          %4157 = vmatpush1.msra.mxu0 %v4156
          %4158 = vmatprep.subr.mxu0 0.0
          %v4159 = vand.u32 %v3711, 4294901760
          %4160 = vmatpush1.msra.mxu0 %v4159
          %4161 = vmatprep.subr.mxu0 0.0
          %v4162 = vand.u32 %v3712, 4294901760
          %4163 = vmatpush1.msra.mxu0 %v4162
          %4164 = vmatprep.subr.mxu0 0.0
          %4165 = vmatpush1.msra.mxu0 0.0
          %4166 = vmatprep.subr.mxu0 0.0
          %4167 = vmatpush1.msra.mxu0 0.0
          %4168 = vmatprep.subr.mxu0 0.0
          %4169 = vmatpush1.msra.mxu0 0.0
          %4170 = vmatprep.subr.mxu0 0.0
          %4171 = vmatpush1.msra.mxu0 0.0
          %4172 = vmatprep.subr.mxu0 0.0
          %4173 = vmatpush1.msra.mxu0 0.0
          %4174 = vmatprep.subr.mxu0 0.0
          %4175 = vmatpush1.msra.mxu0 0.0
          %4176 = vmatprep.subr.mxu0 0.0
          %4177 = vmatpush1.msra.mxu0 0.0
          %4178 = vmatprep.subr.mxu0 0.0
          %4179 = vmatpush1.msra.mxu0 0.0
          %4180 = vmatprep.subr.mxu0 0.0
          %4181 = vmatpush1.msra.mxu0 0.0
          %4182 = vmatprep.subr.mxu0 0.0
          %4183 = vmatpush1.msra.mxu0 0.0
          %4184 = vmatprep.subr.mxu0 0.0
          %4185 = vmatpush1.msra.mxu0 0.0
          %4186 = vmatprep.subr.mxu0 0.0
          %4187 = vmatpush1.msra.mxu0 0.0
          %4188 = vmatprep.subr.mxu0 0.0
          %4189 = vmatpush1.msra.mxu0 0.0
          %4190 = vmatprep.subr.mxu0 0.0
          %4191 = vmatpush1.msra.mxu0 0.0
          %4192 = vmatprep.subr.mxu0 0.0
          %4193 = vmatpush1.msra.mxu0 0.0
          %4194 = vmatprep.subr.mxu0 0.0
          %4195 = vmatpush1.msra.mxu0 0.0
          %4196 = vmatprep.mubr.f32.mxu0 0.0
          %v4197 = vsub.f32 %v3693, %v3693
          %v4198 = vand.u32 %v4197, 4294901760
          %4199 = vmatmul.mubr.f32.gmra.mrb[0].mxu0 %v4198
          %v4200 = vpop.f32.mrb[0].mxu0
          %v4201 = vadd.f32 %v4095, %v4200
          %v4202 = vpop.f32.mrb[0].mxu0
          %4203 = vmatprep.mubr.f32.mxu0 0.0
          %v4204 = vsub.f32 %v3694, %v3694
          %v4205 = vand.u32 %v4204, 4294901760
          %4206 = vmatmul.mubr.f32.gmra.mrb[0].mxu0 %v4205
          %v4207 = vpop.f32.mrb[0].mxu0
          %v4208 = vadd.f32 %v4101, %v4207
          %v4209 = vpop.f32.mrb[0].mxu0
          %4210 = vmatprep.mubr.f32.mxu0 0.0
          %v4211 = vsub.f32 %v3695, %v3695
          %v4212 = vand.u32 %v4211, 4294901760
          %4213 = vmatmul.mubr.f32.gmra.mrb[0].mxu0 %v4212
          %v4214 = vpop.f32.mrb[0].mxu0
          %v4215 = vadd.f32 %v4107, %v4214
          %v4216 = vpop.f32.mrb[0].mxu0
          %4217 = vmatprep.mubr.f32.mxu0 0.0
          %v4218 = vsub.f32 %v3696, %v3696
          %v4219 = vand.u32 %v4218, 4294901760
          %4220 = vmatmul.mubr.f32.gmra.mrb[0].mxu0 %v4219
          %v4221 = vpop.f32.mrb[0].mxu0
          %v4222 = vadd.f32 %v4113, %v4221
          %v4223 = vpop.f32.mrb[0].mxu0
          %4224 = vdwg.mxu0
          %4225 = vmatprep.subr.mxu0 0.0
          %v4226 = vand.u32 %v3697, 4294901760
          %v4227 = vsub.f32 %v3697, %v4226
          %v4228 = vand.u32 %v4227, 4294901760
          %4229 = vmatpush1.msra.mxu0 %v4228
          %4230 = vmatprep.subr.mxu0 0.0
          %v4231 = vand.u32 %v3698, 4294901760
          %v4232 = vsub.f32 %v3698, %v4231
          %v4233 = vand.u32 %v4232, 4294901760
          %4234 = vmatpush1.msra.mxu0 %v4233
          %4235 = vmatprep.subr.mxu0 0.0
          %v4236 = vand.u32 %v3699, 4294901760
          %v4237 = vsub.f32 %v3699, %v4236
          %v4238 = vand.u32 %v4237, 4294901760
          %4239 = vmatpush1.msra.mxu0 %v4238
          %4240 = vmatprep.subr.mxu0 0.0
          %v4241 = vand.u32 %v3700, 4294901760
          %v4242 = vsub.f32 %v3700, %v4241
          %v4243 = vand.u32 %v4242, 4294901760
          %4244 = vmatpush1.msra.mxu0 %v4243
          %4245 = vmatprep.subr.mxu0 0.0
          %v4246 = vand.u32 %v3701, 4294901760
          %v4247 = vsub.f32 %v3701, %v4246
          %v4248 = vand.u32 %v4247, 4294901760
          %4249 = vmatpush1.msra.mxu0 %v4248
          %4250 = vmatprep.subr.mxu0 0.0
          %v4251 = vand.u32 %v3702, 4294901760
          %v4252 = vsub.f32 %v3702, %v4251
          %v4253 = vand.u32 %v4252, 4294901760
          %4254 = vmatpush1.msra.mxu0 %v4253
          %4255 = vmatprep.subr.mxu0 0.0
          %v4256 = vand.u32 %v3703, 4294901760
          %v4257 = vsub.f32 %v3703, %v4256
          %v4258 = vand.u32 %v4257, 4294901760
          %4259 = vmatpush1.msra.mxu0 %v4258
          %4260 = vmatprep.subr.mxu0 0.0
          %v4261 = vand.u32 %v3704, 4294901760
          %v4262 = vsub.f32 %v3704, %v4261
          %v4263 = vand.u32 %v4262, 4294901760
          %4264 = vmatpush1.msra.mxu0 %v4263
          %4265 = vmatprep.subr.mxu0 0.0
          %v4266 = vand.u32 %v3705, 4294901760
          %v4267 = vsub.f32 %v3705, %v4266
          %v4268 = vand.u32 %v4267, 4294901760
          %4269 = vmatpush1.msra.mxu0 %v4268
          %4270 = vmatprep.subr.mxu0 0.0
          %v4271 = vand.u32 %v3706, 4294901760
          %v4272 = vsub.f32 %v3706, %v4271
          %v4273 = vand.u32 %v4272, 4294901760
          %4274 = vmatpush1.msra.mxu0 %v4273
          %4275 = vmatprep.subr.mxu0 0.0
          %v4276 = vand.u32 %v3707, 4294901760
          %v4277 = vsub.f32 %v3707, %v4276
          %v4278 = vand.u32 %v4277, 4294901760
          %4279 = vmatpush1.msra.mxu0 %v4278
          %4280 = vmatprep.subr.mxu0 0.0
          %v4281 = vand.u32 %v3708, 4294901760
          %v4282 = vsub.f32 %v3708, %v4281
          %v4283 = vand.u32 %v4282, 4294901760
          %4284 = vmatpush1.msra.mxu0 %v4283
          %4285 = vmatprep.subr.mxu0 0.0
          %v4286 = vand.u32 %v3709, 4294901760
          %v4287 = vsub.f32 %v3709, %v4286
          %v4288 = vand.u32 %v4287, 4294901760
          %4289 = vmatpush1.msra.mxu0 %v4288
          %4290 = vmatprep.subr.mxu0 0.0
          %v4291 = vand.u32 %v3710, 4294901760
          %v4292 = vsub.f32 %v3710, %v4291
          %v4293 = vand.u32 %v4292, 4294901760
          %4294 = vmatpush1.msra.mxu0 %v4293
          %4295 = vmatprep.subr.mxu0 0.0
          %v4296 = vand.u32 %v3711, 4294901760
          %v4297 = vsub.f32 %v3711, %v4296
          %v4298 = vand.u32 %v4297, 4294901760
          %4299 = vmatpush1.msra.mxu0 %v4298
          %4300 = vmatprep.subr.mxu0 0.0
          %v4301 = vand.u32 %v3712, 4294901760
          %v4302 = vsub.f32 %v3712, %v4301
          %v4303 = vand.u32 %v4302, 4294901760
          %4304 = vmatpush1.msra.mxu0 %v4303
          %4305 = vmatprep.subr.mxu0 0.0
          %4306 = vmatpush1.msra.mxu0 0.0
          %4307 = vmatprep.subr.mxu0 0.0
          %4308 = vmatpush1.msra.mxu0 0.0
          %4309 = vmatprep.subr.mxu0 0.0
          %4310 = vmatpush1.msra.mxu0 0.0
          %4311 = vmatprep.subr.mxu0 0.0
          %4312 = vmatpush1.msra.mxu0 0.0
          %4313 = vmatprep.subr.mxu0 0.0
          %4314 = vmatpush1.msra.mxu0 0.0
          %4315 = vmatprep.subr.mxu0 0.0
          %4316 = vmatpush1.msra.mxu0 0.0
          %4317 = vmatprep.subr.mxu0 0.0
          %4318 = vmatpush1.msra.mxu0 0.0
          %4319 = vmatprep.subr.mxu0 0.0
          %4320 = vmatpush1.msra.mxu0 0.0
          %4321 = vmatprep.subr.mxu0 0.0
          %4322 = vmatpush1.msra.mxu0 0.0
          %4323 = vmatprep.subr.mxu0 0.0
          %4324 = vmatpush1.msra.mxu0 0.0
          %4325 = vmatprep.subr.mxu0 0.0
          %4326 = vmatpush1.msra.mxu0 0.0
          %4327 = vmatprep.subr.mxu0 0.0
          %4328 = vmatpush1.msra.mxu0 0.0
          %4329 = vmatprep.subr.mxu0 0.0
          %4330 = vmatpush1.msra.mxu0 0.0
          %4331 = vmatprep.subr.mxu0 0.0
          %4332 = vmatpush1.msra.mxu0 0.0
          %4333 = vmatprep.subr.mxu0 0.0
          %4334 = vmatpush1.msra.mxu0 0.0
          %4335 = vmatprep.subr.mxu0 0.0
          %4336 = vmatpush1.msra.mxu0 0.0
          %4337 = vmatprep.mubr.f32.mxu0 0.0
          %4338 = vmatmul.mubr.f32.gmra.mrb[0].mxu0 %v3693
          %v4339 = vpop.f32.mrb[0].mxu0
          %v4340 = vadd.f32 %v4201, %v4339
          %v4341 = vpop.f32.mrb[0].mxu0
          %4342 = vmatprep.mubr.f32.mxu0 0.0
          %4343 = vmatmul.mubr.f32.gmra.mrb[0].mxu0 %v3694
          %v4344 = vpop.f32.mrb[0].mxu0
          %v4345 = vadd.f32 %v4208, %v4344
          %v4346 = vpop.f32.mrb[0].mxu0
          %4347 = vmatprep.mubr.f32.mxu0 0.0
          %4348 = vmatmul.mubr.f32.gmra.mrb[0].mxu0 %v3695
          %v4349 = vpop.f32.mrb[0].mxu0
          %v4350 = vadd.f32 %v4215, %v4349
          %v4351 = vpop.f32.mrb[0].mxu0
          %4352 = vmatprep.mubr.f32.mxu0 0.0
          %4353 = vmatmul.mubr.f32.gmra.mrb[0].mxu0 %v3696
          %v4354 = vpop.f32.mrb[0].mxu0
          %v4355 = vadd.f32 %v4222, %v4354
          %v4356 = vpop.f32.mrb[0].mxu0
          %4357 = vdwg.mxu0
          %4358 = vmatprep.subr.mxu0 0.0
          %v4359 = vand.u32 %v3697, 4294901760
          %4360 = vmatpush1.msra.mxu0 %v4359
          %4361 = vmatprep.subr.mxu0 0.0
          %v4362 = vand.u32 %v3698, 4294901760
          %4363 = vmatpush1.msra.mxu0 %v4362
          %4364 = vmatprep.subr.mxu0 0.0
          %v4365 = vand.u32 %v3699, 4294901760
          %4366 = vmatpush1.msra.mxu0 %v4365
          %4367 = vmatprep.subr.mxu0 0.0
          %v4368 = vand.u32 %v3700, 4294901760
          %4369 = vmatpush1.msra.mxu0 %v4368
          %4370 = vmatprep.subr.mxu0 0.0
          %v4371 = vand.u32 %v3701, 4294901760
          %4372 = vmatpush1.msra.mxu0 %v4371
          %4373 = vmatprep.subr.mxu0 0.0
          %v4374 = vand.u32 %v3702, 4294901760
          %4375 = vmatpush1.msra.mxu0 %v4374
          %4376 = vmatprep.subr.mxu0 0.0
          %v4377 = vand.u32 %v3703, 4294901760
          %4378 = vmatpush1.msra.mxu0 %v4377
          %4379 = vmatprep.subr.mxu0 0.0
          %v4380 = vand.u32 %v3704, 4294901760
          %4381 = vmatpush1.msra.mxu0 %v4380
          %4382 = vmatprep.subr.mxu0 0.0
          %v4383 = vand.u32 %v3705, 4294901760
          %4384 = vmatpush1.msra.mxu0 %v4383
          %4385 = vmatprep.subr.mxu0 0.0
          %v4386 = vand.u32 %v3706, 4294901760
          %4387 = vmatpush1.msra.mxu0 %v4386
          %4388 = vmatprep.subr.mxu0 0.0
          %v4389 = vand.u32 %v3707, 4294901760
          %4390 = vmatpush1.msra.mxu0 %v4389
          %4391 = vmatprep.subr.mxu0 0.0
          %v4392 = vand.u32 %v3708, 4294901760
          %4393 = vmatpush1.msra.mxu0 %v4392
          %4394 = vmatprep.subr.mxu0 0.0
          %v4395 = vand.u32 %v3709, 4294901760
          %4396 = vmatpush1.msra.mxu0 %v4395
          %4397 = vmatprep.subr.mxu0 0.0
          %v4398 = vand.u32 %v3710, 4294901760
          %4399 = vmatpush1.msra.mxu0 %v4398
          %4400 = vmatprep.subr.mxu0 0.0
          %v4401 = vand.u32 %v3711, 4294901760
          %4402 = vmatpush1.msra.mxu0 %v4401
          %4403 = vmatprep.subr.mxu0 0.0
          %v4404 = vand.u32 %v3712, 4294901760
          %4405 = vmatpush1.msra.mxu0 %v4404
          %4406 = vmatprep.subr.mxu0 0.0
          %4407 = vmatpush1.msra.mxu0 0.0
          %4408 = vmatprep.subr.mxu0 0.0
          %4409 = vmatpush1.msra.mxu0 0.0
          %4410 = vmatprep.subr.mxu0 0.0
          %4411 = vmatpush1.msra.mxu0 0.0
          %4412 = vmatprep.subr.mxu0 0.0
          %4413 = vmatpush1.msra.mxu0 0.0
          %4414 = vmatprep.subr.mxu0 0.0
          %4415 = vmatpush1.msra.mxu0 0.0
          %4416 = vmatprep.subr.mxu0 0.0
          %4417 = vmatpush1.msra.mxu0 0.0
          %4418 = vmatprep.subr.mxu0 0.0
          %4419 = vmatpush1.msra.mxu0 0.0
          %4420 = vmatprep.subr.mxu0 0.0
          %4421 = vmatpush1.msra.mxu0 0.0
          %4422 = vmatprep.subr.mxu0 0.0
          %4423 = vmatpush1.msra.mxu0 0.0
          %4424 = vmatprep.subr.mxu0 0.0
          %4425 = vmatpush1.msra.mxu0 0.0
          %4426 = vmatprep.subr.mxu0 0.0
          %4427 = vmatpush1.msra.mxu0 0.0
          %4428 = vmatprep.subr.mxu0 0.0
          %4429 = vmatpush1.msra.mxu0 0.0
          %4430 = vmatprep.subr.mxu0 0.0
          %4431 = vmatpush1.msra.mxu0 0.0
          %4432 = vmatprep.subr.mxu0 0.0
          %4433 = vmatpush1.msra.mxu0 0.0
          %4434 = vmatprep.subr.mxu0 0.0
          %4435 = vmatpush1.msra.mxu0 0.0
          %4436 = vmatprep.subr.mxu0 0.0
          %4437 = vmatpush1.msra.mxu0 0.0
          %4438 = vmatprep.mubr.f32.mxu0 0.0
          %4439 = vmatmul.mubr.f32.gmra.mrb[0].mxu0 %v3693
          %v4440 = vpop.f32.mrb[0].mxu0
          %v4441 = vadd.f32 %v4340, %v4440
          %v4442 = vpop.f32.mrb[0].mxu0
          %4443 = vmatprep.mubr.f32.mxu0 0.0
          %4444 = vmatmul.mubr.f32.gmra.mrb[0].mxu0 %v3694
          %v4445 = vpop.f32.mrb[0].mxu0
          %v4446 = vadd.f32 %v4345, %v4445
          %v4447 = vpop.f32.mrb[0].mxu0
          %4448 = vmatprep.mubr.f32.mxu0 0.0
          %4449 = vmatmul.mubr.f32.gmra.mrb[0].mxu0 %v3695
          %v4450 = vpop.f32.mrb[0].mxu0
          %v4451 = vadd.f32 %v4350, %v4450
          %v4452 = vpop.f32.mrb[0].mxu0
          %4453 = vmatprep.mubr.f32.mxu0 0.0
          %4454 = vmatmul.mubr.f32.gmra.mrb[0].mxu0 %v3696
          %v4455 = vpop.f32.mrb[0].mxu0
          %v4456 = vadd.f32 %v4355, %v4455
          %v4457 = vpop.f32.mrb[0].mxu0
          %4458 = vdwg.mxu0
          %v4459 = vld [vmem:[#allocation3] sm:$0xff]
          %v4460 = vld [vmem:[#allocation3 + $0x8] sm:$0xff]
          %v4461 = vld [vmem:[#allocation3 + $0x10] sm:$0xff]
          %v4462 = vld [vmem:[#allocation3 + $0x18] sm:$0xff]
          %v4463 = vld [vmem:[#allocation3 + $0x20] sm:$0xff]
          %v4464 = vld [vmem:[#allocation3 + $0x28] sm:$0xff]
          %v4465 = vld [vmem:[#allocation3 + $0x30] sm:$0xff]
          %v4466 = vld [vmem:[#allocation3 + $0x38] sm:$0xff]
          %v4467 = vld [vmem:[#allocation3 + $0x40] sm:$0xff]
          %v4468 = vld [vmem:[#allocation3 + $0x48] sm:$0xff]
          %v4469 = vld [vmem:[#allocation3 + $0x50] sm:$0xff]
          %v4470 = vld [vmem:[#allocation3 + $0x58] sm:$0xff]
          %v4471 = vld [vmem:[#allocation3 + $0x60] sm:$0xff]
          %v4472 = vld [vmem:[#allocation3 + $0x68] sm:$0xff]
          %v4473 = vld [vmem:[#allocation3 + $0x70] sm:$0xff]
          %v4474 = vld [vmem:[#allocation3 + $0x78] sm:$0xff]
          %4475 = vmatprep.subr.mxu0 0.0
          %v4476 = vand.u32 %v4459, 4294901760
          %4477 = vmatpush1.msra.mxu0 %v4476
          %4478 = vmatprep.subr.mxu0 0.0
          %v4479 = vand.u32 %v4460, 4294901760
          %4480 = vmatpush1.msra.mxu0 %v4479
          %4481 = vmatprep.subr.mxu0 0.0
          %v4482 = vand.u32 %v4461, 4294901760
          %4483 = vmatpush1.msra.mxu0 %v4482
          %4484 = vmatprep.subr.mxu0 0.0
          %v4485 = vand.u32 %v4462, 4294901760
          %4486 = vmatpush1.msra.mxu0 %v4485
          %4487 = vmatprep.subr.mxu0 0.0
          %v4488 = vand.u32 %v4463, 4294901760
          %4489 = vmatpush1.msra.mxu0 %v4488
          %4490 = vmatprep.subr.mxu0 0.0
          %v4491 = vand.u32 %v4464, 4294901760
          %4492 = vmatpush1.msra.mxu0 %v4491
          %4493 = vmatprep.subr.mxu0 0.0
          %v4494 = vand.u32 %v4465, 4294901760
          %4495 = vmatpush1.msra.mxu0 %v4494
          %4496 = vmatprep.subr.mxu0 0.0
          %v4497 = vand.u32 %v4466, 4294901760
          %4498 = vmatpush1.msra.mxu0 %v4497
          %4499 = vmatprep.subr.mxu0 0.0
          %v4500 = vand.u32 %v4467, 4294901760
          %4501 = vmatpush1.msra.mxu0 %v4500
          %4502 = vmatprep.subr.mxu0 0.0
          %v4503 = vand.u32 %v4468, 4294901760
          %4504 = vmatpush1.msra.mxu0 %v4503
          %4505 = vmatprep.subr.mxu0 0.0
          %v4506 = vand.u32 %v4469, 4294901760
          %4507 = vmatpush1.msra.mxu0 %v4506
          %4508 = vmatprep.subr.mxu0 0.0
          %v4509 = vand.u32 %v4470, 4294901760
          %4510 = vmatpush1.msra.mxu0 %v4509
          %4511 = vmatprep.subr.mxu0 0.0
          %v4512 = vand.u32 %v4471, 4294901760
          %4513 = vmatpush1.msra.mxu0 %v4512
          %4514 = vmatprep.subr.mxu0 0.0
          %v4515 = vand.u32 %v4472, 4294901760
          %4516 = vmatpush1.msra.mxu0 %v4515
          %4517 = vmatprep.subr.mxu0 0.0
          %v4518 = vand.u32 %v4473, 4294901760
          %4519 = vmatpush1.msra.mxu0 %v4518
          %4520 = vmatprep.subr.mxu0 0.0
          %v4521 = vand.u32 %v4474, 4294901760
          %4522 = vmatpush1.msra.mxu0 %v4521
          %4523 = vmatprep.subr.mxu0 0.0
          %4524 = vmatpush1.msra.mxu0 0.0
          %4525 = vmatprep.subr.mxu0 0.0
          %4526 = vmatpush1.msra.mxu0 0.0
          %4527 = vmatprep.subr.mxu0 0.0
          %4528 = vmatpush1.msra.mxu0 0.0
          %4529 = vmatprep.subr.mxu0 0.0
          %4530 = vmatpush1.msra.mxu0 0.0
          %4531 = vmatprep.subr.mxu0 0.0
          %4532 = vmatpush1.msra.mxu0 0.0
          %4533 = vmatprep.subr.mxu0 0.0
          %4534 = vmatpush1.msra.mxu0 0.0
          %4535 = vmatprep.subr.mxu0 0.0
          %4536 = vmatpush1.msra.mxu0 0.0
          %4537 = vmatprep.subr.mxu0 0.0
          %4538 = vmatpush1.msra.mxu0 0.0
          %4539 = vmatprep.subr.mxu0 0.0
          %4540 = vmatpush1.msra.mxu0 0.0
          %4541 = vmatprep.subr.mxu0 0.0
          %4542 = vmatpush1.msra.mxu0 0.0
          %4543 = vmatprep.subr.mxu0 0.0
          %4544 = vmatpush1.msra.mxu0 0.0
          %4545 = vmatprep.subr.mxu0 0.0
          %4546 = vmatpush1.msra.mxu0 0.0
          %4547 = vmatprep.subr.mxu0 0.0
          %4548 = vmatpush1.msra.mxu0 0.0
          %4549 = vmatprep.subr.mxu0 0.0
          %4550 = vmatpush1.msra.mxu0 0.0
          %4551 = vmatprep.subr.mxu0 0.0
          %4552 = vmatpush1.msra.mxu0 0.0
          %4553 = vmatprep.subr.mxu0 0.0
          %4554 = vmatpush1.msra.mxu0 0.0
          %4555 = vmatprep.mubr.f32.mxu0 0.0
          %v4556 = vsub.f32 %v3693, %v3693
          %v4557 = vand.u32 %v4556, 4294901760
          %v4558 = vsub.f32 %v4556, %v4557
          %v4559 = vand.u32 %v4558, 4294901760
          %4560 = vmatmul.mubr.f32.gmra.mrb[0].mxu0 %v4559
          %v4561 = vpop.f32.mrb[0].mxu0
          %v4562 = vadd.f32 0.0, %v4561
          %v4563 = vpop.f32.mrb[0].mxu0
          %4564 = vmatprep.mubr.f32.mxu0 0.0
          %v4565 = vsub.f32 %v3694, %v3694
          %v4566 = vand.u32 %v4565, 4294901760
          %v4567 = vsub.f32 %v4565, %v4566
          %v4568 = vand.u32 %v4567, 4294901760
          %4569 = vmatmul.mubr.f32.gmra.mrb[0].mxu0 %v4568
          %v4570 = vpop.f32.mrb[0].mxu0
          %v4571 = vadd.f32 0.0, %v4570
          %v4572 = vpop.f32.mrb[0].mxu0
          %4573 = vmatprep.mubr.f32.mxu0 0.0
          %v4574 = vsub.f32 %v3695, %v3695
          %v4575 = vand.u32 %v4574, 4294901760
          %v4576 = vsub.f32 %v4574, %v4575
          %v4577 = vand.u32 %v4576, 4294901760
          %4578 = vmatmul.mubr.f32.gmra.mrb[0].mxu0 %v4577
          %v4579 = vpop.f32.mrb[0].mxu0
          %v4580 = vadd.f32 0.0, %v4579
          %v4581 = vpop.f32.mrb[0].mxu0
          %4582 = vmatprep.mubr.f32.mxu0 0.0
          %v4583 = vsub.f32 %v3696, %v3696
          %v4584 = vand.u32 %v4583, 4294901760
          %v4585 = vsub.f32 %v4583, %v4584
          %v4586 = vand.u32 %v4585, 4294901760
          %4587 = vmatmul.mubr.f32.gmra.mrb[0].mxu0 %v4586
          %v4588 = vpop.f32.mrb[0].mxu0
          %v4589 = vadd.f32 0.0, %v4588
          %v4590 = vpop.f32.mrb[0].mxu0
          %4591 = vdwg.mxu0
          %4592 = vmatprep.subr.mxu0 0.0
          %v4593 = vand.u32 %v4459, 4294901760
          %v4594 = vsub.f32 %v4459, %v4593
          %v4595 = vand.u32 %v4594, 4294901760
          %v4596 = vsub.f32 %v4594, %v4595
          %v4597 = vand.u32 %v4596, 4294901760
          %4598 = vmatpush1.msra.mxu0 %v4597
          %4599 = vmatprep.subr.mxu0 0.0
          %v4600 = vand.u32 %v4460, 4294901760
          %v4601 = vsub.f32 %v4460, %v4600
          %v4602 = vand.u32 %v4601, 4294901760
          %v4603 = vsub.f32 %v4601, %v4602
          %v4604 = vand.u32 %v4603, 4294901760
          %4605 = vmatpush1.msra.mxu0 %v4604
          %4606 = vmatprep.subr.mxu0 0.0
          %v4607 = vand.u32 %v4461, 4294901760
          %v4608 = vsub.f32 %v4461, %v4607
          %v4609 = vand.u32 %v4608, 4294901760
          %v4610 = vsub.f32 %v4608, %v4609
          %v4611 = vand.u32 %v4610, 4294901760
          %4612 = vmatpush1.msra.mxu0 %v4611
          %4613 = vmatprep.subr.mxu0 0.0
          %v4614 = vand.u32 %v4462, 4294901760
          %v4615 = vsub.f32 %v4462, %v4614
          %v4616 = vand.u32 %v4615, 4294901760
          %v4617 = vsub.f32 %v4615, %v4616
          %v4618 = vand.u32 %v4617, 4294901760
          %4619 = vmatpush1.msra.mxu0 %v4618
          %4620 = vmatprep.subr.mxu0 0.0
          %v4621 = vand.u32 %v4463, 4294901760
          %v4622 = vsub.f32 %v4463, %v4621
          %v4623 = vand.u32 %v4622, 4294901760
          %v4624 = vsub.f32 %v4622, %v4623
          %v4625 = vand.u32 %v4624, 4294901760
          %4626 = vmatpush1.msra.mxu0 %v4625
          %4627 = vmatprep.subr.mxu0 0.0
          %v4628 = vand.u32 %v4464, 4294901760
          %v4629 = vsub.f32 %v4464, %v4628
          %v4630 = vand.u32 %v4629, 4294901760
          %v4631 = vsub.f32 %v4629, %v4630
          %v4632 = vand.u32 %v4631, 4294901760
          %4633 = vmatpush1.msra.mxu0 %v4632
          %4634 = vmatprep.subr.mxu0 0.0
          %v4635 = vand.u32 %v4465, 4294901760
          %v4636 = vsub.f32 %v4465, %v4635
          %v4637 = vand.u32 %v4636, 4294901760
          %v4638 = vsub.f32 %v4636, %v4637
          %v4639 = vand.u32 %v4638, 4294901760
          %4640 = vmatpush1.msra.mxu0 %v4639
          %4641 = vmatprep.subr.mxu0 0.0
          %v4642 = vand.u32 %v4466, 4294901760
          %v4643 = vsub.f32 %v4466, %v4642
          %v4644 = vand.u32 %v4643, 4294901760
          %v4645 = vsub.f32 %v4643, %v4644
          %v4646 = vand.u32 %v4645, 4294901760
          %4647 = vmatpush1.msra.mxu0 %v4646
          %4648 = vmatprep.subr.mxu0 0.0
          %v4649 = vand.u32 %v4467, 4294901760
          %v4650 = vsub.f32 %v4467, %v4649
          %v4651 = vand.u32 %v4650, 4294901760
          %v4652 = vsub.f32 %v4650, %v4651
          %v4653 = vand.u32 %v4652, 4294901760
          %4654 = vmatpush1.msra.mxu0 %v4653
          %4655 = vmatprep.subr.mxu0 0.0
          %v4656 = vand.u32 %v4468, 4294901760
          %v4657 = vsub.f32 %v4468, %v4656
          %v4658 = vand.u32 %v4657, 4294901760
          %v4659 = vsub.f32 %v4657, %v4658
          %v4660 = vand.u32 %v4659, 4294901760
          %4661 = vmatpush1.msra.mxu0 %v4660
          %4662 = vmatprep.subr.mxu0 0.0
          %v4663 = vand.u32 %v4469, 4294901760
          %v4664 = vsub.f32 %v4469, %v4663
          %v4665 = vand.u32 %v4664, 4294901760
          %v4666 = vsub.f32 %v4664, %v4665
          %v4667 = vand.u32 %v4666, 4294901760
          %4668 = vmatpush1.msra.mxu0 %v4667
          %4669 = vmatprep.subr.mxu0 0.0
          %v4670 = vand.u32 %v4470, 4294901760
          %v4671 = vsub.f32 %v4470, %v4670
          %v4672 = vand.u32 %v4671, 4294901760
          %v4673 = vsub.f32 %v4671, %v4672
          %v4674 = vand.u32 %v4673, 4294901760
          %4675 = vmatpush1.msra.mxu0 %v4674
          %4676 = vmatprep.subr.mxu0 0.0
          %v4677 = vand.u32 %v4471, 4294901760
          %v4678 = vsub.f32 %v4471, %v4677
          %v4679 = vand.u32 %v4678, 4294901760
          %v4680 = vsub.f32 %v4678, %v4679
          %v4681 = vand.u32 %v4680, 4294901760
          %4682 = vmatpush1.msra.mxu0 %v4681
          %4683 = vmatprep.subr.mxu0 0.0
          %v4684 = vand.u32 %v4472, 4294901760
          %v4685 = vsub.f32 %v4472, %v4684
          %v4686 = vand.u32 %v4685, 4294901760
          %v4687 = vsub.f32 %v4685, %v4686
          %v4688 = vand.u32 %v4687, 4294901760
          %4689 = vmatpush1.msra.mxu0 %v4688
          %4690 = vmatprep.subr.mxu0 0.0
          %v4691 = vand.u32 %v4473, 4294901760
          %v4692 = vsub.f32 %v4473, %v4691
          %v4693 = vand.u32 %v4692, 4294901760
          %v4694 = vsub.f32 %v4692, %v4693
          %v4695 = vand.u32 %v4694, 4294901760
          %4696 = vmatpush1.msra.mxu0 %v4695
          %4697 = vmatprep.subr.mxu0 0.0
          %v4698 = vand.u32 %v4474, 4294901760
          %v4699 = vsub.f32 %v4474, %v4698
          %v4700 = vand.u32 %v4699, 4294901760
          %v4701 = vsub.f32 %v4699, %v4700
          %v4702 = vand.u32 %v4701, 4294901760
          %4703 = vmatpush1.msra.mxu0 %v4702
          %4704 = vmatprep.subr.mxu0 0.0
          %4705 = vmatpush1.msra.mxu0 0.0
          %4706 = vmatprep.subr.mxu0 0.0
          %4707 = vmatpush1.msra.mxu0 0.0
          %4708 = vmatprep.subr.mxu0 0.0
          %4709 = vmatpush1.msra.mxu0 0.0
          %4710 = vmatprep.subr.mxu0 0.0
          %4711 = vmatpush1.msra.mxu0 0.0
          %4712 = vmatprep.subr.mxu0 0.0
          %4713 = vmatpush1.msra.mxu0 0.0
          %4714 = vmatprep.subr.mxu0 0.0
          %4715 = vmatpush1.msra.mxu0 0.0
          %4716 = vmatprep.subr.mxu0 0.0
          %4717 = vmatpush1.msra.mxu0 0.0
          %4718 = vmatprep.subr.mxu0 0.0
          %4719 = vmatpush1.msra.mxu0 0.0
          %4720 = vmatprep.subr.mxu0 0.0
          %4721 = vmatpush1.msra.mxu0 0.0
          %4722 = vmatprep.subr.mxu0 0.0
          %4723 = vmatpush1.msra.mxu0 0.0
          %4724 = vmatprep.subr.mxu0 0.0
          %4725 = vmatpush1.msra.mxu0 0.0
          %4726 = vmatprep.subr.mxu0 0.0
          %4727 = vmatpush1.msra.mxu0 0.0
          %4728 = vmatprep.subr.mxu0 0.0
          %4729 = vmatpush1.msra.mxu0 0.0
          %4730 = vmatprep.subr.mxu0 0.0
          %4731 = vmatpush1.msra.mxu0 0.0
          %4732 = vmatprep.subr.mxu0 0.0
          %4733 = vmatpush1.msra.mxu0 0.0
          %4734 = vmatprep.subr.mxu0 0.0
          %4735 = vmatpush1.msra.mxu0 0.0
          %4736 = vmatprep.mubr.f32.mxu0 0.0
          %4737 = vmatmul.mubr.f32.gmra.mrb[0].mxu0 %v3693
          %v4738 = vpop.f32.mrb[0].mxu0
          %v4739 = vadd.f32 %v4562, %v4738
          %v4740 = vpop.f32.mrb[0].mxu0
          %4741 = vmatprep.mubr.f32.mxu0 0.0
          %4742 = vmatmul.mubr.f32.gmra.mrb[0].mxu0 %v3694
          %v4743 = vpop.f32.mrb[0].mxu0
          %v4744 = vadd.f32 %v4571, %v4743
          %v4745 = vpop.f32.mrb[0].mxu0
          %4746 = vmatprep.mubr.f32.mxu0 0.0
          %4747 = vmatmul.mubr.f32.gmra.mrb[0].mxu0 %v3695
          %v4748 = vpop.f32.mrb[0].mxu0
          %v4749 = vadd.f32 %v4580, %v4748
          %v4750 = vpop.f32.mrb[0].mxu0
          %4751 = vmatprep.mubr.f32.mxu0 0.0
          %4752 = vmatmul.mubr.f32.gmra.mrb[0].mxu0 %v3696
          %v4753 = vpop.f32.mrb[0].mxu0
          %v4754 = vadd.f32 %v4589, %v4753
          %v4755 = vpop.f32.mrb[0].mxu0
          %4756 = vdwg.mxu0
          %4757 = vmatprep.subr.mxu0 0.0
          %v4758 = vand.u32 %v4459, 4294901760
          %v4759 = vsub.f32 %v4459, %v4758
          %4760 = vmatpush1.msra.mxu0 %v4759
          %4761 = vmatprep.subr.mxu0 0.0
          %v4762 = vand.u32 %v4460, 4294901760
          %v4763 = vsub.f32 %v4460, %v4762
          %4764 = vmatpush1.msra.mxu0 %v4763
          %4765 = vmatprep.subr.mxu0 0.0
          %v4766 = vand.u32 %v4461, 4294901760
          %v4767 = vsub.f32 %v4461, %v4766
          %4768 = vmatpush1.msra.mxu0 %v4767
          %4769 = vmatprep.subr.mxu0 0.0
          %v4770 = vand.u32 %v4462, 4294901760
          %v4771 = vsub.f32 %v4462, %v4770
          %4772 = vmatpush1.msra.mxu0 %v4771
          %4773 = vmatprep.subr.mxu0 0.0
          %v4774 = vand.u32 %v4463, 4294901760
          %v4775 = vsub.f32 %v4463, %v4774
          %4776 = vmatpush1.msra.mxu0 %v4775
          %4777 = vmatprep.subr.mxu0 0.0
          %v4778 = vand.u32 %v4464, 4294901760
          %v4779 = vsub.f32 %v4464, %v4778
          %4780 = vmatpush1.msra.mxu0 %v4779
          %4781 = vmatprep.subr.mxu0 0.0
          %v4782 = vand.u32 %v4465, 4294901760
          %v4783 = vsub.f32 %v4465, %v4782
          %4784 = vmatpush1.msra.mxu0 %v4783
          %4785 = vmatprep.subr.mxu0 0.0
          %v4786 = vand.u32 %v4466, 4294901760
          %v4787 = vsub.f32 %v4466, %v4786
          %4788 = vmatpush1.msra.mxu0 %v4787
          %4789 = vmatprep.subr.mxu0 0.0
          %v4790 = vand.u32 %v4467, 4294901760
          %v4791 = vsub.f32 %v4467, %v4790
          %4792 = vmatpush1.msra.mxu0 %v4791
          %4793 = vmatprep.subr.mxu0 0.0
          %v4794 = vand.u32 %v4468, 4294901760
          %v4795 = vsub.f32 %v4468, %v4794
          %4796 = vmatpush1.msra.mxu0 %v4795
          %4797 = vmatprep.subr.mxu0 0.0
          %v4798 = vand.u32 %v4469, 4294901760
          %v4799 = vsub.f32 %v4469, %v4798
          %4800 = vmatpush1.msra.mxu0 %v4799
          %4801 = vmatprep.subr.mxu0 0.0
          %v4802 = vand.u32 %v4470, 4294901760
          %v4803 = vsub.f32 %v4470, %v4802
          %4804 = vmatpush1.msra.mxu0 %v4803
          %4805 = vmatprep.subr.mxu0 0.0
          %v4806 = vand.u32 %v4471, 4294901760
          %v4807 = vsub.f32 %v4471, %v4806
          %4808 = vmatpush1.msra.mxu0 %v4807
          %4809 = vmatprep.subr.mxu0 0.0
          %v4810 = vand.u32 %v4472, 4294901760
          %v4811 = vsub.f32 %v4472, %v4810
          %4812 = vmatpush1.msra.mxu0 %v4811
          %4813 = vmatprep.subr.mxu0 0.0
          %v4814 = vand.u32 %v4473, 4294901760
          %v4815 = vsub.f32 %v4473, %v4814
          %4816 = vmatpush1.msra.mxu0 %v4815
          %4817 = vmatprep.subr.mxu0 0.0
          %v4818 = vand.u32 %v4474, 4294901760
          %v4819 = vsub.f32 %v4474, %v4818
          %4820 = vmatpush1.msra.mxu0 %v4819
          %4821 = vmatprep.subr.mxu0 0.0
          %4822 = vmatpush1.msra.mxu0 0.0
          %4823 = vmatprep.subr.mxu0 0.0
          %4824 = vmatpush1.msra.mxu0 0.0
          %4825 = vmatprep.subr.mxu0 0.0
          %4826 = vmatpush1.msra.mxu0 0.0
          %4827 = vmatprep.subr.mxu0 0.0
          %4828 = vmatpush1.msra.mxu0 0.0
          %4829 = vmatprep.subr.mxu0 0.0
          %4830 = vmatpush1.msra.mxu0 0.0
          %4831 = vmatprep.subr.mxu0 0.0
          %4832 = vmatpush1.msra.mxu0 0.0
          %4833 = vmatprep.subr.mxu0 0.0
          %4834 = vmatpush1.msra.mxu0 0.0
          %4835 = vmatprep.subr.mxu0 0.0
          %4836 = vmatpush1.msra.mxu0 0.0
          %4837 = vmatprep.subr.mxu0 0.0
          %4838 = vmatpush1.msra.mxu0 0.0
          %4839 = vmatprep.subr.mxu0 0.0
          %4840 = vmatpush1.msra.mxu0 0.0
          %4841 = vmatprep.subr.mxu0 0.0
          %4842 = vmatpush1.msra.mxu0 0.0
          %4843 = vmatprep.subr.mxu0 0.0
          %4844 = vmatpush1.msra.mxu0 0.0
          %4845 = vmatprep.subr.mxu0 0.0
          %4846 = vmatpush1.msra.mxu0 0.0
          %4847 = vmatprep.subr.mxu0 0.0
          %4848 = vmatpush1.msra.mxu0 0.0
          %4849 = vmatprep.subr.mxu0 0.0
          %4850 = vmatpush1.msra.mxu0 0.0
          %4851 = vmatprep.subr.mxu0 0.0
          %4852 = vmatpush1.msra.mxu0 0.0
          %4853 = vmatprep.mubr.f32.mxu0 0.0
          %v4854 = vsub.f32 %v3693, %v3693
          %4855 = vmatmul.mubr.f32.gmra.mrb[0].mxu0 %v4854
          %v4856 = vpop.f32.mrb[0].mxu0
          %v4857 = vadd.f32 %v4739, %v4856
          %v4858 = vpop.f32.mrb[0].mxu0
          %4859 = vmatprep.mubr.f32.mxu0 0.0
          %v4860 = vsub.f32 %v3694, %v3694
          %4861 = vmatmul.mubr.f32.gmra.mrb[0].mxu0 %v4860
          %v4862 = vpop.f32.mrb[0].mxu0
          %v4863 = vadd.f32 %v4744, %v4862
          %v4864 = vpop.f32.mrb[0].mxu0
          %4865 = vmatprep.mubr.f32.mxu0 0.0
          %v4866 = vsub.f32 %v3695, %v3695
          %4867 = vmatmul.mubr.f32.gmra.mrb[0].mxu0 %v4866
          %v4868 = vpop.f32.mrb[0].mxu0
          %v4869 = vadd.f32 %v4749, %v4868
          %v4870 = vpop.f32.mrb[0].mxu0
          %4871 = vmatprep.mubr.f32.mxu0 0.0
          %v4872 = vsub.f32 %v3696, %v3696
          %4873 = vmatmul.mubr.f32.gmra.mrb[0].mxu0 %v4872
          %v4874 = vpop.f32.mrb[0].mxu0
          %v4875 = vadd.f32 %v4754, %v4874
          %v4876 = vpop.f32.mrb[0].mxu0
          %4877 = vdwg.mxu0
          %4878 = vmatprep.subr.mxu0 0.0
          %v4879 = vand.u32 %v4459, 4294901760
          %4880 = vmatpush1.msra.mxu0 %v4879
          %4881 = vmatprep.subr.mxu0 0.0
          %v4882 = vand.u32 %v4460, 4294901760
          %4883 = vmatpush1.msra.mxu0 %v4882
          %4884 = vmatprep.subr.mxu0 0.0
          %v4885 = vand.u32 %v4461, 4294901760
          %4886 = vmatpush1.msra.mxu0 %v4885
          %4887 = vmatprep.subr.mxu0 0.0
          %v4888 = vand.u32 %v4462, 4294901760
          %4889 = vmatpush1.msra.mxu0 %v4888
          %4890 = vmatprep.subr.mxu0 0.0
          %v4891 = vand.u32 %v4463, 4294901760
          %4892 = vmatpush1.msra.mxu0 %v4891
          %4893 = vmatprep.subr.mxu0 0.0
          %v4894 = vand.u32 %v4464, 4294901760
          %4895 = vmatpush1.msra.mxu0 %v4894
          %4896 = vmatprep.subr.mxu0 0.0
          %v4897 = vand.u32 %v4465, 4294901760
          %4898 = vmatpush1.msra.mxu0 %v4897
          %4899 = vmatprep.subr.mxu0 0.0
          %v4900 = vand.u32 %v4466, 4294901760
          %4901 = vmatpush1.msra.mxu0 %v4900
          %4902 = vmatprep.subr.mxu0 0.0
          %v4903 = vand.u32 %v4467, 4294901760
          %4904 = vmatpush1.msra.mxu0 %v4903
          %4905 = vmatprep.subr.mxu0 0.0
          %v4906 = vand.u32 %v4468, 4294901760
          %4907 = vmatpush1.msra.mxu0 %v4906
          %4908 = vmatprep.subr.mxu0 0.0
          %v4909 = vand.u32 %v4469, 4294901760
          %4910 = vmatpush1.msra.mxu0 %v4909
          %4911 = vmatprep.subr.mxu0 0.0
          %v4912 = vand.u32 %v4470, 4294901760
          %4913 = vmatpush1.msra.mxu0 %v4912
          %4914 = vmatprep.subr.mxu0 0.0
          %v4915 = vand.u32 %v4471, 4294901760
          %4916 = vmatpush1.msra.mxu0 %v4915
          %4917 = vmatprep.subr.mxu0 0.0
          %v4918 = vand.u32 %v4472, 4294901760
          %4919 = vmatpush1.msra.mxu0 %v4918
          %4920 = vmatprep.subr.mxu0 0.0
          %v4921 = vand.u32 %v4473, 4294901760
          %4922 = vmatpush1.msra.mxu0 %v4921
          %4923 = vmatprep.subr.mxu0 0.0
          %v4924 = vand.u32 %v4474, 4294901760
          %4925 = vmatpush1.msra.mxu0 %v4924
          %4926 = vmatprep.subr.mxu0 0.0
          %4927 = vmatpush1.msra.mxu0 0.0
          %4928 = vmatprep.subr.mxu0 0.0
          %4929 = vmatpush1.msra.mxu0 0.0
          %4930 = vmatprep.subr.mxu0 0.0
          %4931 = vmatpush1.msra.mxu0 0.0
          %4932 = vmatprep.subr.mxu0 0.0
          %4933 = vmatpush1.msra.mxu0 0.0
          %4934 = vmatprep.subr.mxu0 0.0
          %4935 = vmatpush1.msra.mxu0 0.0
          %4936 = vmatprep.subr.mxu0 0.0
          %4937 = vmatpush1.msra.mxu0 0.0
          %4938 = vmatprep.subr.mxu0 0.0
          %4939 = vmatpush1.msra.mxu0 0.0
          %4940 = vmatprep.subr.mxu0 0.0
          %4941 = vmatpush1.msra.mxu0 0.0
          %4942 = vmatprep.subr.mxu0 0.0
          %4943 = vmatpush1.msra.mxu0 0.0
          %4944 = vmatprep.subr.mxu0 0.0
          %4945 = vmatpush1.msra.mxu0 0.0
          %4946 = vmatprep.subr.mxu0 0.0
          %4947 = vmatpush1.msra.mxu0 0.0
          %4948 = vmatprep.subr.mxu0 0.0
          %4949 = vmatpush1.msra.mxu0 0.0
          %4950 = vmatprep.subr.mxu0 0.0
          %4951 = vmatpush1.msra.mxu0 0.0
          %4952 = vmatprep.subr.mxu0 0.0
          %4953 = vmatpush1.msra.mxu0 0.0
          %4954 = vmatprep.subr.mxu0 0.0
          %4955 = vmatpush1.msra.mxu0 0.0
          %4956 = vmatprep.subr.mxu0 0.0
          %4957 = vmatpush1.msra.mxu0 0.0
          %4958 = vmatprep.mubr.f32.mxu0 0.0
          %v4959 = vsub.f32 %v3693, %v3693
          %v4960 = vand.u32 %v4959, 4294901760
          %4961 = vmatmul.mubr.f32.gmra.mrb[0].mxu0 %v4960
          %v4962 = vpop.f32.mrb[0].mxu0
          %v4963 = vadd.f32 %v4857, %v4962
          %v4964 = vpop.f32.mrb[0].mxu0
          %4965 = vmatprep.mubr.f32.mxu0 0.0
          %v4966 = vsub.f32 %v3694, %v3694
          %v4967 = vand.u32 %v4966, 4294901760
          %4968 = vmatmul.mubr.f32.gmra.mrb[0].mxu0 %v4967
          %v4969 = vpop.f32.mrb[0].mxu0
          %v4970 = vadd.f32 %v4863, %v4969
          %v4971 = vpop.f32.mrb[0].mxu0
          %4972 = vmatprep.mubr.f32.mxu0 0.0
          %v4973 = vsub.f32 %v3695, %v3695
          %v4974 = vand.u32 %v4973, 4294901760
          %4975 = vmatmul.mubr.f32.gmra.mrb[0].mxu0 %v4974
          %v4976 = vpop.f32.mrb[0].mxu0
          %v4977 = vadd.f32 %v4869, %v4976
          %v4978 = vpop.f32.mrb[0].mxu0
          %4979 = vmatprep.mubr.f32.mxu0 0.0
          %v4980 = vsub.f32 %v3696, %v3696
          %v4981 = vand.u32 %v4980, 4294901760
          %4982 = vmatmul.mubr.f32.gmra.mrb[0].mxu0 %v4981
          %v4983 = vpop.f32.mrb[0].mxu0
          %v4984 = vadd.f32 %v4875, %v4983
          %v4985 = vpop.f32.mrb[0].mxu0
          %4986 = vdwg.mxu0
          %4987 = vmatprep.subr.mxu0 0.0
          %v4988 = vand.u32 %v4459, 4294901760
          %v4989 = vsub.f32 %v4459, %v4988
          %v4990 = vand.u32 %v4989, 4294901760
          %4991 = vmatpush1.msra.mxu0 %v4990
          %4992 = vmatprep.subr.mxu0 0.0
          %v4993 = vand.u32 %v4460, 4294901760
          %v4994 = vsub.f32 %v4460, %v4993
          %v4995 = vand.u32 %v4994, 4294901760
          %4996 = vmatpush1.msra.mxu0 %v4995
          %4997 = vmatprep.subr.mxu0 0.0
          %v4998 = vand.u32 %v4461, 4294901760
          %v4999 = vsub.f32 %v4461, %v4998
          %v5000 = vand.u32 %v4999, 4294901760
          %5001 = vmatpush1.msra.mxu0 %v5000
          %5002 = vmatprep.subr.mxu0 0.0
          %v5003 = vand.u32 %v4462, 4294901760
          %v5004 = vsub.f32 %v4462, %v5003
          %v5005 = vand.u32 %v5004, 4294901760
          %5006 = vmatpush1.msra.mxu0 %v5005
          %5007 = vmatprep.subr.mxu0 0.0
          %v5008 = vand.u32 %v4463, 4294901760
          %v5009 = vsub.f32 %v4463, %v5008
          %v5010 = vand.u32 %v5009, 4294901760
          %5011 = vmatpush1.msra.mxu0 %v5010
          %5012 = vmatprep.subr.mxu0 0.0
          %v5013 = vand.u32 %v4464, 4294901760
          %v5014 = vsub.f32 %v4464, %v5013
          %v5015 = vand.u32 %v5014, 4294901760
          %5016 = vmatpush1.msra.mxu0 %v5015
          %5017 = vmatprep.subr.mxu0 0.0
          %v5018 = vand.u32 %v4465, 4294901760
          %v5019 = vsub.f32 %v4465, %v5018
          %v5020 = vand.u32 %v5019, 4294901760
          %5021 = vmatpush1.msra.mxu0 %v5020
          %5022 = vmatprep.subr.mxu0 0.0
          %v5023 = vand.u32 %v4466, 4294901760
          %v5024 = vsub.f32 %v4466, %v5023
          %v5025 = vand.u32 %v5024, 4294901760
          %5026 = vmatpush1.msra.mxu0 %v5025
          %5027 = vmatprep.subr.mxu0 0.0
          %v5028 = vand.u32 %v4467, 4294901760
          %v5029 = vsub.f32 %v4467, %v5028
          %v5030 = vand.u32 %v5029, 4294901760
          %5031 = vmatpush1.msra.mxu0 %v5030
          %5032 = vmatprep.subr.mxu0 0.0
          %v5033 = vand.u32 %v4468, 4294901760
          %v5034 = vsub.f32 %v4468, %v5033
          %v5035 = vand.u32 %v5034, 4294901760
          %5036 = vmatpush1.msra.mxu0 %v5035
          %5037 = vmatprep.subr.mxu0 0.0
          %v5038 = vand.u32 %v4469, 4294901760
          %v5039 = vsub.f32 %v4469, %v5038
          %v5040 = vand.u32 %v5039, 4294901760
          %5041 = vmatpush1.msra.mxu0 %v5040
          %5042 = vmatprep.subr.mxu0 0.0
          %v5043 = vand.u32 %v4470, 4294901760
          %v5044 = vsub.f32 %v4470, %v5043
          %v5045 = vand.u32 %v5044, 4294901760
          %5046 = vmatpush1.msra.mxu0 %v5045
          %5047 = vmatprep.subr.mxu0 0.0
          %v5048 = vand.u32 %v4471, 4294901760
          %v5049 = vsub.f32 %v4471, %v5048
          %v5050 = vand.u32 %v5049, 4294901760
          %5051 = vmatpush1.msra.mxu0 %v5050
          %5052 = vmatprep.subr.mxu0 0.0
          %v5053 = vand.u32 %v4472, 4294901760
          %v5054 = vsub.f32 %v4472, %v5053
          %v5055 = vand.u32 %v5054, 4294901760
          %5056 = vmatpush1.msra.mxu0 %v5055
          %5057 = vmatprep.subr.mxu0 0.0
          %v5058 = vand.u32 %v4473, 4294901760
          %v5059 = vsub.f32 %v4473, %v5058
          %v5060 = vand.u32 %v5059, 4294901760
          %5061 = vmatpush1.msra.mxu0 %v5060
          %5062 = vmatprep.subr.mxu0 0.0
          %v5063 = vand.u32 %v4474, 4294901760
          %v5064 = vsub.f32 %v4474, %v5063
          %v5065 = vand.u32 %v5064, 4294901760
          %5066 = vmatpush1.msra.mxu0 %v5065
          %5067 = vmatprep.subr.mxu0 0.0
          %5068 = vmatpush1.msra.mxu0 0.0
          %5069 = vmatprep.subr.mxu0 0.0
          %5070 = vmatpush1.msra.mxu0 0.0
          %5071 = vmatprep.subr.mxu0 0.0
          %5072 = vmatpush1.msra.mxu0 0.0
          %5073 = vmatprep.subr.mxu0 0.0
          %5074 = vmatpush1.msra.mxu0 0.0
          %5075 = vmatprep.subr.mxu0 0.0
          %5076 = vmatpush1.msra.mxu0 0.0
          %5077 = vmatprep.subr.mxu0 0.0
          %5078 = vmatpush1.msra.mxu0 0.0
          %5079 = vmatprep.subr.mxu0 0.0
          %5080 = vmatpush1.msra.mxu0 0.0
          %5081 = vmatprep.subr.mxu0 0.0
          %5082 = vmatpush1.msra.mxu0 0.0
          %5083 = vmatprep.subr.mxu0 0.0
          %5084 = vmatpush1.msra.mxu0 0.0
          %5085 = vmatprep.subr.mxu0 0.0
          %5086 = vmatpush1.msra.mxu0 0.0
          %5087 = vmatprep.subr.mxu0 0.0
          %5088 = vmatpush1.msra.mxu0 0.0
          %5089 = vmatprep.subr.mxu0 0.0
          %5090 = vmatpush1.msra.mxu0 0.0
          %5091 = vmatprep.subr.mxu0 0.0
          %5092 = vmatpush1.msra.mxu0 0.0
          %5093 = vmatprep.subr.mxu0 0.0
          %5094 = vmatpush1.msra.mxu0 0.0
          %5095 = vmatprep.subr.mxu0 0.0
          %5096 = vmatpush1.msra.mxu0 0.0
          %5097 = vmatprep.subr.mxu0 0.0
          %5098 = vmatpush1.msra.mxu0 0.0
          %5099 = vmatprep.mubr.f32.mxu0 0.0
          %5100 = vmatmul.mubr.f32.gmra.mrb[0].mxu0 %v3693
          %v5101 = vpop.f32.mrb[0].mxu0
          %v5102 = vadd.f32 %v4963, %v5101
          %v5103 = vpop.f32.mrb[0].mxu0
          %5104 = vmatprep.mubr.f32.mxu0 0.0
          %5105 = vmatmul.mubr.f32.gmra.mrb[0].mxu0 %v3694
          %v5106 = vpop.f32.mrb[0].mxu0
          %v5107 = vadd.f32 %v4970, %v5106
          %v5108 = vpop.f32.mrb[0].mxu0
          %5109 = vmatprep.mubr.f32.mxu0 0.0
          %5110 = vmatmul.mubr.f32.gmra.mrb[0].mxu0 %v3695
          %v5111 = vpop.f32.mrb[0].mxu0
          %v5112 = vadd.f32 %v4977, %v5111
          %v5113 = vpop.f32.mrb[0].mxu0
          %5114 = vmatprep.mubr.f32.mxu0 0.0
          %5115 = vmatmul.mubr.f32.gmra.mrb[0].mxu0 %v3696
          %v5116 = vpop.f32.mrb[0].mxu0
          %v5117 = vadd.f32 %v4984, %v5116
          %v5118 = vpop.f32.mrb[0].mxu0
          %5119 = vdwg.mxu0
          %5120 = vmatprep.subr.mxu0 0.0
          %v5121 = vand.u32 %v4459, 4294901760
          %5122 = vmatpush1.msra.mxu0 %v5121
          %5123 = vmatprep.subr.mxu0 0.0
          %v5124 = vand.u32 %v4460, 4294901760
          %5125 = vmatpush1.msra.mxu0 %v5124
          %5126 = vmatprep.subr.mxu0 0.0
          %v5127 = vand.u32 %v4461, 4294901760
          %5128 = vmatpush1.msra.mxu0 %v5127
          %5129 = vmatprep.subr.mxu0 0.0
          %v5130 = vand.u32 %v4462, 4294901760
          %5131 = vmatpush1.msra.mxu0 %v5130
          %5132 = vmatprep.subr.mxu0 0.0
          %v5133 = vand.u32 %v4463, 4294901760
          %5134 = vmatpush1.msra.mxu0 %v5133
          %5135 = vmatprep.subr.mxu0 0.0
          %v5136 = vand.u32 %v4464, 4294901760
          %5137 = vmatpush1.msra.mxu0 %v5136
          %5138 = vmatprep.subr.mxu0 0.0
          %v5139 = vand.u32 %v4465, 4294901760
          %5140 = vmatpush1.msra.mxu0 %v5139
          %5141 = vmatprep.subr.mxu0 0.0
          %v5142 = vand.u32 %v4466, 4294901760
          %5143 = vmatpush1.msra.mxu0 %v5142
          %5144 = vmatprep.subr.mxu0 0.0
          %v5145 = vand.u32 %v4467, 4294901760
          %5146 = vmatpush1.msra.mxu0 %v5145
          %5147 = vmatprep.subr.mxu0 0.0
          %v5148 = vand.u32 %v4468, 4294901760
          %5149 = vmatpush1.msra.mxu0 %v5148
          %5150 = vmatprep.subr.mxu0 0.0
          %v5151 = vand.u32 %v4469, 4294901760
          %5152 = vmatpush1.msra.mxu0 %v5151
          %5153 = vmatprep.subr.mxu0 0.0
          %v5154 = vand.u32 %v4470, 4294901760
          %5155 = vmatpush1.msra.mxu0 %v5154
          %5156 = vmatprep.subr.mxu0 0.0
          %v5157 = vand.u32 %v4471, 4294901760
          %5158 = vmatpush1.msra.mxu0 %v5157
          %5159 = vmatprep.subr.mxu0 0.0
          %v5160 = vand.u32 %v4472, 4294901760
          %5161 = vmatpush1.msra.mxu0 %v5160
          %5162 = vmatprep.subr.mxu0 0.0
          %v5163 = vand.u32 %v4473, 4294901760
          %5164 = vmatpush1.msra.mxu0 %v5163
          %5165 = vmatprep.subr.mxu0 0.0
          %v5166 = vand.u32 %v4474, 4294901760
          %5167 = vmatpush1.msra.mxu0 %v5166
          %5168 = vmatprep.subr.mxu0 0.0
          %5169 = vmatpush1.msra.mxu0 0.0
          %5170 = vmatprep.subr.mxu0 0.0
          %5171 = vmatpush1.msra.mxu0 0.0
          %5172 = vmatprep.subr.mxu0 0.0
          %5173 = vmatpush1.msra.mxu0 0.0
          %5174 = vmatprep.subr.mxu0 0.0
          %5175 = vmatpush1.msra.mxu0 0.0
          %5176 = vmatprep.subr.mxu0 0.0
          %5177 = vmatpush1.msra.mxu0 0.0
          %5178 = vmatprep.subr.mxu0 0.0
          %5179 = vmatpush1.msra.mxu0 0.0
          %5180 = vmatprep.subr.mxu0 0.0
          %5181 = vmatpush1.msra.mxu0 0.0
          %5182 = vmatprep.subr.mxu0 0.0
          %5183 = vmatpush1.msra.mxu0 0.0
          %5184 = vmatprep.subr.mxu0 0.0
          %5185 = vmatpush1.msra.mxu0 0.0
          %5186 = vmatprep.subr.mxu0 0.0
          %5187 = vmatpush1.msra.mxu0 0.0
          %5188 = vmatprep.subr.mxu0 0.0
          %5189 = vmatpush1.msra.mxu0 0.0
          %5190 = vmatprep.subr.mxu0 0.0
          %5191 = vmatpush1.msra.mxu0 0.0
          %5192 = vmatprep.subr.mxu0 0.0
          %5193 = vmatpush1.msra.mxu0 0.0
          %5194 = vmatprep.subr.mxu0 0.0
          %5195 = vmatpush1.msra.mxu0 0.0
          %5196 = vmatprep.subr.mxu0 0.0
          %5197 = vmatpush1.msra.mxu0 0.0
          %5198 = vmatprep.subr.mxu0 0.0
          %5199 = vmatpush1.msra.mxu0 0.0
          %5200 = vmatprep.mubr.f32.mxu0 0.0
          %5201 = vmatmul.mubr.f32.gmra.mrb[0].mxu0 %v3693
          %v5202 = vpop.f32.mrb[0].mxu0
          %v5203 = vadd.f32 %v5102, %v5202
          %v5204 = vpop.f32.mrb[0].mxu0
          %5205 = vmatprep.mubr.f32.mxu0 0.0
          %5206 = vmatmul.mubr.f32.gmra.mrb[0].mxu0 %v3694
          %v5207 = vpop.f32.mrb[0].mxu0
          %v5208 = vadd.f32 %v5107, %v5207
          %v5209 = vpop.f32.mrb[0].mxu0
          %5210 = vmatprep.mubr.f32.mxu0 0.0
          %5211 = vmatmul.mubr.f32.gmra.mrb[0].mxu0 %v3695
          %v5212 = vpop.f32.mrb[0].mxu0
          %v5213 = vadd.f32 %v5112, %v5212
          %v5214 = vpop.f32.mrb[0].mxu0
          %5215 = vmatprep.mubr.f32.mxu0 0.0
          %5216 = vmatmul.mubr.f32.gmra.mrb[0].mxu0 %v3696
          %v5217 = vpop.f32.mrb[0].mxu0
          %v5218 = vadd.f32 %v5117, %v5217
          %v5219 = vpop.f32.mrb[0].mxu0
          %5220 = vdwg.mxu0
          %v5221 = vmul.f32 %v296, %v4441
          %v5222 = vmul.f32 %v297, %v4446
          %v5223 = vmul.f32 %v298, %v4451
          %v5224 = vmul.f32 %v299, %v4456
          %v5225 = vadd.f32 %v5221, %v5203
          %v5226 = vadd.f32 %v5222, %v5208
          %v5227 = vadd.f32 %v5223, %v5213
          %v5228 = vadd.f32 %v5224, %v5218
          %vm5229 = vcmask 261120
          %5230 = vst.msk [vmem:[%s286] sm:$0xff] %vm5229, %v5225
          %5231 = vst.msk [vmem:[%s286 + $0x8] sm:$0xff] %vm5229, %v5226
          %5232 = vst.msk [vmem:[%s286 + $0x10] sm:$0xff] %vm5229, %v5227
          %5233 = vst.msk [vmem:[%s286 + $0x18] sm:$0xff] %vm5229, %v5228
        $region60: #{tpu_custom_call.1} parent=47 // pred_fallthru
          _
        %s5234 = sand.u32 %s195, 1
        %s5235 = scalar_lea.sflag [#allocation6], %s5234
        %s5236 = sand.u32 %s195, 1
        %s5237 = smul.addr %s5236, 32
        %s5238 = scalar_lea.vmem [#allocation5], %s5237
        // Predicated region
        $region65: #{tpu_custom_call.1} parent=47 // pred_check
          %p5239 = pneg %p205
        $region66: #{tpu_custom_call.1} parent=47 // pred_check_branch
          %5241 = sbr.rel (%p5239) target = $region68
        $region67: #{tpu_custom_call.1} parent=47 // pred_region
          %s5242 = smul.u32 %s25, %s26
          %s5243 = smul.u32 4, %s5242
          %s5245 = ssub.s32 512, 512
          %5246 = vsyncadd %s5235, %s5245
          %s5247 = smul.addr %s5243, 128
          %s5248 = scalar_lea.hbm %s7, %s5247
          %s5249 = sshll.u32 %s5238, 4
          %s5250 = int_to_ptr.vmem [resolvable:$true] %s5249
          %5255 = dma.vmem_to_hbm [thread:$0]  %s5250, 512, %s5248, %s5235, 128, 128, 8
        $region68: #{tpu_custom_call.1} parent=47 // pred_fallthru
          _
      $region48: #{tpu_custom_call.1} parent=5 // pred_fallthru
        _
      %p5256 = scmp.le.s32.totalorder 2, %s16
      // Predicated region
      $region69: #{tpu_custom_call.1} parent=5 // pred_check
        %p5257 = pneg %p5256
      $region70: #{tpu_custom_call.1} parent=5 // pred_check_branch
        %5259 = sbr.rel (%p5257) target = $region72
      $region71: #{tpu_custom_call.1} parent=5 // pred_region
        %s5260 = ssub.s32 %s16, 2
        // Predicated region
        $region73: #{tpu_custom_call.1} parent=71 // pred_check
          %p5261 = pneg %p211
        $region74: #{tpu_custom_call.1} parent=71 // pred_check_branch
          %5263 = sbr.rel (%p5261) target = $region76
        $region75: #{tpu_custom_call.1} parent=71 // pred_region
          %s5264 = sand.u32 %s196, 1
          %s5265 = scalar_lea.sflag [#allocation6], %s5264
          %s5266 = sand.u32 %s196, 1
          %s5267 = smul.addr %s5266, 32
          %s5268 = scalar_lea.vmem [#allocation5], %s5267
          %5269 = dma.done %s5265, 512
        $region76: #{tpu_custom_call.1} parent=71 // pred_fallthru
          _
      $region72: #{tpu_custom_call.1} parent=5 // pred_fallthru
        _
    $region6: #{tpu_custom_call.1} parent=1 // loop_footer
      %s20 = sadd.s32 1, %s16
    $region7: #{tpu_custom_call.1} parent=1 // loop_footer_branch
      %15 = sbr.rel target = $region3
    $region8: #{tpu_custom_call.1} parent=1 // loop_exit
      _
    %5270 = vsyncpa [#allocation6], 1
    %s5271 = scalar_lea.sflag [#allocation6], 1
    %5272 = vsyncpa %s5271, 1

</llo_original>
